<compile_context>
chip_gen: v6e
topology: v6e:2x2x1
jax: 0.10.0
libtpu: 0.0.40
codegen_flags: <defaults>
</compile_context>

<pallas_src>
import numpy as np

import jax
import jax.numpy as jnp
from jax import lax
from jax.experimental import pallas as pl
from jax.experimental.pallas import tpu as pltpu

embedding_dim = 32
num_embeddings = 512

C1_PAD = 32   # conv1 out-channels padded 28 -> 32 (lane friendly)
K1_PAD = 16   # conv1 im2col K padded 9 -> 16 (bf16 sublane tile)


# ------------------------------ Pallas kernel ------------------------------ #

def _encoder_kernel(cols1_ref, w1_ref, b1_ref,
                    sel2_ref, w2_ref, b2_ref,
                    sel3_ref, w3_ref, b3_ref,
                    w4_ref, b4_ref, o_ref):
    f32 = jnp.float32
    bf16 = jnp.bfloat16

    # conv1 (3x3, stride 2, pad 1): one matmul on the pre-im2col'd input.
    a1 = jnp.dot(cols1_ref[...], w1_ref[...], preferred_element_type=f32)
    a1 = jnp.maximum(a1 + b1_ref[...], 0.0).astype(bf16)          # [R1, 32]

    def conv3x3(a_prev, sel_ref, w_ref, b_ref):
        # Per-tap accumulation: tap t's shifted/strided window of a_prev is
        # gathered by a 0/1 selection matmul (exact in bf16), then hits the
        # MXU against that tap's [Cin, Cout] weight slice. f32 accumulate.
        r_out = sel_ref.shape[1]
        c_out = w_ref.shape[2]
        acc = jnp.zeros((r_out, c_out), f32)
        for t in range(sel_ref.shape[0]):                         # unrolled
            win = jnp.dot(sel_ref[t], a_prev, preferred_element_type=f32)
            acc = acc + jnp.dot(win.astype(bf16), w_ref[t],
                                preferred_element_type=f32)
        return acc + b_ref[...]

    a2 = jnp.maximum(conv3x3(a1, sel2_ref, w2_ref, b2_ref), 0.0).astype(bf16)
    a3 = jnp.maximum(conv3x3(a2, sel3_ref, w3_ref, b3_ref), 0.0).astype(bf16)

    # conv4 (1x1): plain matmul + bias; rows are already the NHWC latents.
    out = jnp.dot(a3, w4_ref[...], preferred_element_type=f32) + b4_ref[...]
    o_ref[...] = out.astype(o_ref.dtype)


def _full_spec(shape):
    nd = len(shape)
    return pl.BlockSpec(shape, lambda i, _n=nd: (0,) * _n)


# ---------------------- one-time host-side preprocessing ------------------- #

def _selection_matrices(batch, h, w, k=3, stride=2, pad=1):
    """0/1 matrices S[t] with (S[t] @ A)[r_out] = A[src_row(r_out, tap t)]."""
    ho = (h + 2 * pad - k) // stride + 1
    wo = (w + 2 * pad - k) // stride + 1
    sel = np.zeros((k * k, batch * ho * wo, batch * h * w), np.float32)
    for b in range(batch):
        for oh in range(ho):
            for ow in range(wo):
                ro = (b * ho + oh) * wo + ow
                for kh in range(k):
                    for kw in range(k):
                        ih = oh * stride + kh - pad
                        iw = ow * stride + kw - pad
                        if 0 <= ih < h and 0 <= iw < w:
                            sel[kh * k + kw, ro, (b * h + ih) * w + iw] = 1.0
    return sel, ho, wo


def pack_params(params, batch, height, width):
    """Re-layout weights (outside jit) into the kernel's per-tap bf16 format."""
    w1 = np.asarray(params["w1"], np.float32)       # [28, 1, 3, 3]
    b1 = np.asarray(params["b1"], np.float32)
    w2 = np.asarray(params["w2"], np.float32)       # [64, 28, 3, 3]
    b2 = np.asarray(params["b2"], np.float32)
    w3 = np.asarray(params["w3"], np.float32)       # [128, 64, 3, 3]
    b3 = np.asarray(params["b3"], np.float32)
    w4 = np.asarray(params["w4"], np.float32)       # [32, 128, 1, 1]
    b4 = np.asarray(params["b4"], np.float32)

    c1 = w1.shape[0]                                # 28

    # conv1: im2col weight [K1_PAD, 32]  (tap-major (kh, kw), cin = 1)
    w1p = np.zeros((K1_PAD, C1_PAD), np.float32)
    w1p[:9, :c1] = w1.transpose(2, 3, 1, 0).reshape(9, c1)
    b1p = np.zeros((1, C1_PAD), np.float32)
    b1p[0, :c1] = b1

    # conv2: per-tap [Cin padded to 32, 64]
    w2p = np.zeros((9, C1_PAD, w2.shape[0]), np.float32)
    for kh in range(3):
        for kw in range(3):
            w2p[kh * 3 + kw, :c1, :] = w2[:, :, kh, kw].T
    b2p = b2.reshape(1, -1)

    # conv3: per-tap [64, 128]
    w3p = np.zeros((9, w3.shape[1], w3.shape[0]), np.float32)
    for kh in range(3):
        for kw in range(3):
            w3p[kh * 3 + kw] = w3[:, :, kh, kw].T
    b3p = b3.reshape(1, -1)

    # conv4 (1x1): [128, 32]
    w4p = w4[:, :, 0, 0].T
    b4p = b4.reshape(1, -1)

    oh1 = (height + 2 - 3) // 2 + 1
    ow1 = (width + 2 - 3) // 2 + 1
    sel2, oh2, ow2 = _selection_matrices(batch, oh1, ow1)
    sel3, _, _ = _selection_matrices(batch, oh2, ow2)

    bf = jnp.bfloat16
    return dict(
        w1=jnp.asarray(w1p, bf), b1=jnp.asarray(b1p),
        sel2=jnp.asarray(sel2, bf),
        w2=jnp.asarray(w2p, bf), b2=jnp.asarray(b2p),
        sel3=jnp.asarray(sel3, bf),
        w3=jnp.asarray(w3p, bf), b3=jnp.asarray(b3p),
        w4=jnp.asarray(w4p, bf), b4=jnp.asarray(b4p),
    )


# ---------------------------------- Encoder -------------------------------- #

def init_encoder_params(key):
    """Deterministic init mimicking PyTorch conv defaults."""
    ks = jax.random.split(key, 9)

    def conv_init(kw_key, kb_key, cout, cin, k):
        fan_in = cin * k * k
        bound = 1.0 / np.sqrt(fan_in)
        w = jax.random.uniform(kw_key, (cout, cin, k, k), jnp.float32, -bound, bound)
        b = jax.random.uniform(kb_key, (cout,), jnp.float32, -bound, bound)
        return w, b

    w1, b1 = conv_init(ks[0], ks[1], 28, 1, 3)
    w2, b2 = conv_init(ks[2], ks[3], 64, 28, 3)
    w3, b3 = conv_init(ks[4], ks[5], 128, 64, 3)
    w4, b4 = conv_init(ks[6], ks[7], embedding_dim, 128, 1)
    # Embedding table exists in the module but is unused in forward().
    emb = jax.random.normal(ks[8], (num_embeddings, embedding_dim), jnp.float32)
    return dict(w1=w1, b1=b1, w2=w2, b2=b2, w3=w3, b3=b3, w4=w4, b4=b4,
                embedding=emb)


def _conv_hw(s):
    return (s + 2 - 3) // 2 + 1


@jax.jit
def encoder_forward(x_nchw, packed):
    n, _, h, w = x_nchw.shape
    oh1, ow1 = _conv_hw(h), _conv_hw(w)
    oh2, ow2 = _conv_hw(oh1), _conv_hw(ow1)
    oh3, ow3 = _conv_hw(oh2), _conv_hw(ow2)

    # NCHW -> NHWC, then im2col for conv1 only (raw 2 KB input, XLA glue).
    x = jnp.transpose(x_nchw, (0, 2, 3, 1)).astype(jnp.float32)
    xp = jnp.pad(x, ((0, 0), (1, 1), (1, 1), (0, 0)))
    taps = [xp[:, kh:kh + 2 * oh1:2, kw:kw + 2 * ow1:2, :]
            for kh in range(3) for kw in range(3)]
    cols1 = jnp.concatenate(taps, axis=-1).reshape(n * oh1 * ow1, 9)
    cols1 = jnp.pad(cols1, ((0, 0), (0, K1_PAD - 9))).astype(jnp.bfloat16)

    args = (cols1, packed["w1"], packed["b1"],
            packed["sel2"], packed["w2"], packed["b2"],
            packed["sel3"], packed["w3"], packed["b3"],
            packed["w4"], packed["b4"])

    out = pl.pallas_call(
        _encoder_kernel,
        out_shape=jax.ShapeDtypeStruct((n * oh3 * ow3, embedding_dim),
                                       jnp.float32),
        grid=(1,),
        in_specs=[_full_spec(a.shape) for a in args],
        out_specs=_full_spec((n * oh3 * ow3, embedding_dim)),
        compiler_params=pltpu.CompilerParams(
            dimension_semantics=("arbitrary",)),
    )(*args)

    # Rows are (n, oh, ow) row-major == PyTorch's x.permute(0, 2, 3, 1).
    return out.reshape(n, oh3, ow3, embedding_dim)


# ------------------------ pure-JAX reference (check) ------------------------ #

def encoder_reference(x_nchw, params):
    def conv(x, w, b, stride, pad):
        y = lax.conv_general_dilated(
            x, w, (stride, stride), [(pad, pad), (pad, pad)],
            dimension_numbers=("NCHW", "OIHW", "NCHW"))
        return y + b.reshape(1, -1, 1, 1)

    x = jax.nn.relu(conv(x_nchw, params["w1"], params["b1"], 2, 1))
    x = jax.nn.relu(conv(x, params["w2"], params["b2"], 2, 1))
    x = jax.nn.relu(conv(x, params["w3"], params["b3"], 2, 1))
    x = conv(x, params["w4"], params["b4"], 1, 0)
    return jnp.transpose(x, (0, 2, 3, 1))


# ----------------------------------- Main ----------------------------------- #

if __name__ == "__main__":
    key = jax.random.PRNGKey(0)
    pkey, xkey = jax.random.split(key)
    params = init_encoder_params(pkey)

    # conv1 expects a single input channel -> x: [batch=2, C=1, H=16, W=16]
    x = jax.random.normal(xkey, (2, 1, 16, 16), jnp.float32)

    packed = pack_params(params, batch=x.shape[0],
                         height=x.shape[2], width=x.shape[3])

    latents = encoder_forward(x, packed)
    latents = jax.block_until_ready(latents)

    assert latents.shape == (2, 2, 2, embedding_dim), latents.shape

    ref = encoder_reference(x, params)
    max_err = float(jnp.max(jnp.abs(latents - ref)))
    assert max_err < 5e-2, f"max abs error vs reference: {max_err}"

    print("KERNEL_OK")
</pallas_src>

<mosaic_0001>
module attributes {stable_mosaic.version = 11 : i64} {
  func.func @_encoder_kernel(%arg0: i32, %arg1: memref<128x16xbf16, #tpu.memory_space<vmem>>, %arg2: memref<16x32xbf16, #tpu.memory_space<vmem>>, %arg3: memref<1x32xf32, #tpu.memory_space<vmem>>, %arg4: memref<9x32x128xbf16, #tpu.memory_space<vmem>>, %arg5: memref<9x32x64xbf16, #tpu.memory_space<vmem>>, %arg6: memref<1x64xf32, #tpu.memory_space<vmem>>, %arg7: memref<9x8x32xbf16, #tpu.memory_space<vmem>>, %arg8: memref<9x64x128xbf16, #tpu.memory_space<vmem>>, %arg9: memref<1x128xf32, #tpu.memory_space<vmem>>, %arg10: memref<128x32xbf16, #tpu.memory_space<vmem>>, %arg11: memref<1x32xf32, #tpu.memory_space<vmem>>, %arg12: memref<8x32xf32, #tpu.memory_space<vmem>>) attributes {dimension_semantics = [#tpu.dimension_semantics<arbitrary>], iteration_bounds = array<i64: 1>, scalar_prefetch = 0 : i64, scratch_operands = 0 : i64, tpu.core_type = #tpu.core_type<tc>, window_params = [{pipeline_mode = #tpu.pipeline_mode<synchronous>, transform_indices = @transform_0, window_bounds = array<i64: 128, 16>}, {pipeline_mode = #tpu.pipeline_mode<synchronous>, transform_indices = @transform_1, window_bounds = array<i64: 16, 32>}, {pipeline_mode = #tpu.pipeline_mode<synchronous>, transform_indices = @transform_2, window_bounds = array<i64: 1, 32>}, {pipeline_mode = #tpu.pipeline_mode<synchronous>, transform_indices = @transform_3, window_bounds = array<i64: 9, 32, 128>}, {pipeline_mode = #tpu.pipeline_mode<synchronous>, transform_indices = @transform_4, window_bounds = array<i64: 9, 32, 64>}, {pipeline_mode = #tpu.pipeline_mode<synchronous>, transform_indices = @transform_5, window_bounds = array<i64: 1, 64>}, {pipeline_mode = #tpu.pipeline_mode<synchronous>, transform_indices = @transform_6, window_bounds = array<i64: 9, 8, 32>}, {pipeline_mode = #tpu.pipeline_mode<synchronous>, transform_indices = @transform_7, window_bounds = array<i64: 9, 64, 128>}, {pipeline_mode = #tpu.pipeline_mode<synchronous>, transform_indices = @transform_8, window_bounds = array<i64: 1, 128>}, {pipeline_mode = #tpu.pipeline_mode<synchronous>, transform_indices = @transform_9, window_bounds = array<i64: 128, 32>}, {pipeline_mode = #tpu.pipeline_mode<synchronous>, transform_indices = @transform_10, window_bounds = array<i64: 1, 32>}, {pipeline_mode = #tpu.pipeline_mode<synchronous>, transform_indices = @transform_11, window_bounds = array<i64: 8, 32>}]} {
    %c0 = arith.constant 0 : index
    %c0_0 = arith.constant 0 : index
    %0 = vector.load %arg1[%c0, %c0_0] : memref<128x16xbf16, #tpu.memory_space<vmem>>, vector<128x16xbf16>
    %c0_1 = arith.constant 0 : index
    %c0_2 = arith.constant 0 : index
    %1 = vector.load %arg2[%c0_1, %c0_2] : memref<16x32xbf16, #tpu.memory_space<vmem>>, vector<16x32xbf16>
    %cst = arith.constant dense<0.000000e+00> : vector<128x32xf32>
    %2 = tpu.matmul %0, %1, %cst {dimension_numbers = #tpu.dot_dimension_numbers<[1], [0], [0], [1], [0, 0, 1, 1], [], []>} : vector<128x16xbf16>, vector<16x32xbf16>, vector<128x32xf32> -> vector<128x32xf32>
    %c0_3 = arith.constant 0 : index
    %c0_4 = arith.constant 0 : index
    %3 = vector.load %arg3[%c0_3, %c0_4] : memref<1x32xf32, #tpu.memory_space<vmem>>, vector<1x32xf32>
    %4 = vector.broadcast %3 : vector<1x32xf32> to vector<128x32xf32>
    %5 = arith.addf %2, %4 : vector<128x32xf32>
    %cst_5 = arith.constant 0.000000e+00 : f32
    %6 = vector.broadcast %cst_5 : f32 to vector<128x32xf32>
    %7 = arith.maximumf %5, %6 : vector<128x32xf32>
    %8 = arith.truncf %7 : vector<128x32xf32> to vector<128x32xbf16>
    %cst_6 = arith.constant 0.000000e+00 : f32
    %9 = vector.broadcast %cst_6 : f32 to vector<32x64xf32>
    %c0_7 = arith.constant 0 : index
    %c0_8 = arith.constant 0 : index
    %c0_9 = arith.constant 0 : index
    %10 = vector.load %arg4[%c0_7, %c0_8, %c0_9] : memref<9x32x128xbf16, #tpu.memory_space<vmem>>, vector<1x32x128xbf16>
    %11 = vector.shape_cast %10 : vector<1x32x128xbf16> to vector<32x128xbf16>
    %cst_10 = arith.constant dense<0.000000e+00> : vector<32x32xf32>
    %12 = tpu.matmul %11, %8, %cst_10 {dimension_numbers = #tpu.dot_dimension_numbers<[1], [0], [0], [1], [0, 0, 1, 1], [], []>} : vector<32x128xbf16>, vector<128x32xbf16>, vector<32x32xf32> -> vector<32x32xf32>
    %13 = arith.truncf %12 : vector<32x32xf32> to vector<32x32xbf16>
    %c0_11 = arith.constant 0 : index
    %c0_12 = arith.constant 0 : index
    %c0_13 = arith.constant 0 : index
    %14 = vector.load %arg5[%c0_11, %c0_12, %c0_13] : memref<9x32x64xbf16, #tpu.memory_space<vmem>>, vector<1x32x64xbf16>
    %15 = vector.shape_cast %14 : vector<1x32x64xbf16> to vector<32x64xbf16>
    %cst_14 = arith.constant dense<0.000000e+00> : vector<32x64xf32>
    %16 = tpu.matmul %13, %15, %cst_14 {dimension_numbers = #tpu.dot_dimension_numbers<[1], [0], [0], [1], [0, 0, 1, 1], [], []>} : vector<32x32xbf16>, vector<32x64xbf16>, vector<32x64xf32> -> vector<32x64xf32>
    %17 = arith.addf %9, %16 : vector<32x64xf32>
    %c1 = arith.constant 1 : index
    %c0_15 = arith.constant 0 : index
    %c0_16 = arith.constant 0 : index
    %18 = vector.load %arg4[%c1, %c0_15, %c0_16] : memref<9x32x128xbf16, #tpu.memory_space<vmem>>, vector<1x32x128xbf16>
    %19 = vector.shape_cast %18 : vector<1x32x128xbf16> to vector<32x128xbf16>
    %cst_17 = arith.constant dense<0.000000e+00> : vector<32x32xf32>
    %20 = tpu.matmul %19, %8, %cst_17 {dimension_numbers = #tpu.dot_dimension_numbers<[1], [0], [0], [1], [0, 0, 1, 1], [], []>} : vector<32x128xbf16>, vector<128x32xbf16>, vector<32x32xf32> -> vector<32x32xf32>
    %21 = arith.truncf %20 : vector<32x32xf32> to vector<32x32xbf16>
    %c1_18 = arith.constant 1 : index
    %c0_19 = arith.constant 0 : index
    %c0_20 = arith.constant 0 : index
    %22 = vector.load %arg5[%c1_18, %c0_19, %c0_20] : memref<9x32x64xbf16, #tpu.memory_space<vmem>>, vector<1x32x64xbf16>
    %23 = vector.shape_cast %22 : vector<1x32x64xbf16> to vector<32x64xbf16>
    %cst_21 = arith.constant dense<0.000000e+00> : vector<32x64xf32>
    %24 = tpu.matmul %21, %23, %cst_21 {dimension_numbers = #tpu.dot_dimension_numbers<[1], [0], [0], [1], [0, 0, 1, 1], [], []>} : vector<32x32xbf16>, vector<32x64xbf16>, vector<32x64xf32> -> vector<32x64xf32>
    %25 = arith.addf %17, %24 : vector<32x64xf32>
    %c2 = arith.constant 2 : index
    %c0_22 = arith.constant 0 : index
    %c0_23 = arith.constant 0 : index
    %26 = vector.load %arg4[%c2, %c0_22, %c0_23] : memref<9x32x128xbf16, #tpu.memory_space<vmem>>, vector<1x32x128xbf16>
    %27 = vector.shape_cast %26 : vector<1x32x128xbf16> to vector<32x128xbf16>
    %cst_24 = arith.constant dense<0.000000e+00> : vector<32x32xf32>
    %28 = tpu.matmul %27, %8, %cst_24 {dimension_numbers = #tpu.dot_dimension_numbers<[1], [0], [0], [1], [0, 0, 1, 1], [], []>} : vector<32x128xbf16>, vector<128x32xbf16>, vector<32x32xf32> -> vector<32x32xf32>
    %29 = arith.truncf %28 : vector<32x32xf32> to vector<32x32xbf16>
    %c2_25 = arith.constant 2 : index
    %c0_26 = arith.constant 0 : index
    %c0_27 = arith.constant 0 : index
    %30 = vector.load %arg5[%c2_25, %c0_26, %c0_27] : memref<9x32x64xbf16, #tpu.memory_space<vmem>>, vector<1x32x64xbf16>
    %31 = vector.shape_cast %30 : vector<1x32x64xbf16> to vector<32x64xbf16>
    %cst_28 = arith.constant dense<0.000000e+00> : vector<32x64xf32>
    %32 = tpu.matmul %29, %31, %cst_28 {dimension_numbers = #tpu.dot_dimension_numbers<[1], [0], [0], [1], [0, 0, 1, 1], [], []>} : vector<32x32xbf16>, vector<32x64xbf16>, vector<32x64xf32> -> vector<32x64xf32>
    %33 = arith.addf %25, %32 : vector<32x64xf32>
    %c3 = arith.constant 3 : index
    %c0_29 = arith.constant 0 : index
    %c0_30 = arith.constant 0 : index
    %34 = vector.load %arg4[%c3, %c0_29, %c0_30] : memref<9x32x128xbf16, #tpu.memory_space<vmem>>, vector<1x32x128xbf16>
    %35 = vector.shape_cast %34 : vector<1x32x128xbf16> to vector<32x128xbf16>
    %cst_31 = arith.constant dense<0.000000e+00> : vector<32x32xf32>
    %36 = tpu.matmul %35, %8, %cst_31 {dimension_numbers = #tpu.dot_dimension_numbers<[1], [0], [0], [1], [0, 0, 1, 1], [], []>} : vector<32x128xbf16>, vector<128x32xbf16>, vector<32x32xf32> -> vector<32x32xf32>
    %37 = arith.truncf %36 : vector<32x32xf32> to vector<32x32xbf16>
    %c3_32 = arith.constant 3 : index
    %c0_33 = arith.constant 0 : index
    %c0_34 = arith.constant 0 : index
    %38 = vector.load %arg5[%c3_32, %c0_33, %c0_34] : memref<9x32x64xbf16, #tpu.memory_space<vmem>>, vector<1x32x64xbf16>
    %39 = vector.shape_cast %38 : vector<1x32x64xbf16> to vector<32x64xbf16>
    %cst_35 = arith.constant dense<0.000000e+00> : vector<32x64xf32>
    %40 = tpu.matmul %37, %39, %cst_35 {dimension_numbers = #tpu.dot_dimension_numbers<[1], [0], [0], [1], [0, 0, 1, 1], [], []>} : vector<32x32xbf16>, vector<32x64xbf16>, vector<32x64xf32> -> vector<32x64xf32>
    %41 = arith.addf %33, %40 : vector<32x64xf32>
    %c4 = arith.constant 4 : index
    %c0_36 = arith.constant 0 : index
    %c0_37 = arith.constant 0 : index
    %42 = vector.load %arg4[%c4, %c0_36, %c0_37] : memref<9x32x128xbf16, #tpu.memory_space<vmem>>, vector<1x32x128xbf16>
    %43 = vector.shape_cast %42 : vector<1x32x128xbf16> to vector<32x128xbf16>
    %cst_38 = arith.constant dense<0.000000e+00> : vector<32x32xf32>
    %44 = tpu.matmul %43, %8, %cst_38 {dimension_numbers = #tpu.dot_dimension_numbers<[1], [0], [0], [1], [0, 0, 1, 1], [], []>} : vector<32x128xbf16>, vector<128x32xbf16>, vector<32x32xf32> -> vector<32x32xf32>
    %45 = arith.truncf %44 : vector<32x32xf32> to vector<32x32xbf16>
    %c4_39 = arith.constant 4 : index
    %c0_40 = arith.constant 0 : index
    %c0_41 = arith.constant 0 : index
    %46 = vector.load %arg5[%c4_39, %c0_40, %c0_41] : memref<9x32x64xbf16, #tpu.memory_space<vmem>>, vector<1x32x64xbf16>
    %47 = vector.shape_cast %46 : vector<1x32x64xbf16> to vector<32x64xbf16>
    %cst_42 = arith.constant dense<0.000000e+00> : vector<32x64xf32>
    %48 = tpu.matmul %45, %47, %cst_42 {dimension_numbers = #tpu.dot_dimension_numbers<[1], [0], [0], [1], [0, 0, 1, 1], [], []>} : vector<32x32xbf16>, vector<32x64xbf16>, vector<32x64xf32> -> vector<32x64xf32>
    %49 = arith.addf %41, %48 : vector<32x64xf32>
    %c5 = arith.constant 5 : index
    %c0_43 = arith.constant 0 : index
    %c0_44 = arith.constant 0 : index
    %50 = vector.load %arg4[%c5, %c0_43, %c0_44] : memref<9x32x128xbf16, #tpu.memory_space<vmem>>, vector<1x32x128xbf16>
    %51 = vector.shape_cast %50 : vector<1x32x128xbf16> to vector<32x128xbf16>
    %cst_45 = arith.constant dense<0.000000e+00> : vector<32x32xf32>
    %52 = tpu.matmul %51, %8, %cst_45 {dimension_numbers = #tpu.dot_dimension_numbers<[1], [0], [0], [1], [0, 0, 1, 1], [], []>} : vector<32x128xbf16>, vector<128x32xbf16>, vector<32x32xf32> -> vector<32x32xf32>
    %53 = arith.truncf %52 : vector<32x32xf32> to vector<32x32xbf16>
    %c5_46 = arith.constant 5 : index
    %c0_47 = arith.constant 0 : index
    %c0_48 = arith.constant 0 : index
    %54 = vector.load %arg5[%c5_46, %c0_47, %c0_48] : memref<9x32x64xbf16, #tpu.memory_space<vmem>>, vector<1x32x64xbf16>
    %55 = vector.shape_cast %54 : vector<1x32x64xbf16> to vector<32x64xbf16>
    %cst_49 = arith.constant dense<0.000000e+00> : vector<32x64xf32>
    %56 = tpu.matmul %53, %55, %cst_49 {dimension_numbers = #tpu.dot_dimension_numbers<[1], [0], [0], [1], [0, 0, 1, 1], [], []>} : vector<32x32xbf16>, vector<32x64xbf16>, vector<32x64xf32> -> vector<32x64xf32>
    %57 = arith.addf %49, %56 : vector<32x64xf32>
    %c6 = arith.constant 6 : index
    %c0_50 = arith.constant 0 : index
    %c0_51 = arith.constant 0 : index
    %58 = vector.load %arg4[%c6, %c0_50, %c0_51] : memref<9x32x128xbf16, #tpu.memory_space<vmem>>, vector<1x32x128xbf16>
    %59 = vector.shape_cast %58 : vector<1x32x128xbf16> to vector<32x128xbf16>
    %cst_52 = arith.constant dense<0.000000e+00> : vector<32x32xf32>
    %60 = tpu.matmul %59, %8, %cst_52 {dimension_numbers = #tpu.dot_dimension_numbers<[1], [0], [0], [1], [0, 0, 1, 1], [], []>} : vector<32x128xbf16>, vector<128x32xbf16>, vector<32x32xf32> -> vector<32x32xf32>
    %61 = arith.truncf %60 : vector<32x32xf32> to vector<32x32xbf16>
    %c6_53 = arith.constant 6 : index
    %c0_54 = arith.constant 0 : index
    %c0_55 = arith.constant 0 : index
    %62 = vector.load %arg5[%c6_53, %c0_54, %c0_55] : memref<9x32x64xbf16, #tpu.memory_space<vmem>>, vector<1x32x64xbf16>
    %63 = vector.shape_cast %62 : vector<1x32x64xbf16> to vector<32x64xbf16>
    %cst_56 = arith.constant dense<0.000000e+00> : vector<32x64xf32>
    %64 = tpu.matmul %61, %63, %cst_56 {dimension_numbers = #tpu.dot_dimension_numbers<[1], [0], [0], [1], [0, 0, 1, 1], [], []>} : vector<32x32xbf16>, vector<32x64xbf16>, vector<32x64xf32> -> vector<32x64xf32>
    %65 = arith.addf %57, %64 : vector<32x64xf32>
    %c7 = arith.constant 7 : index
    %c0_57 = arith.constant 0 : index
    %c0_58 = arith.constant 0 : index
    %66 = vector.load %arg4[%c7, %c0_57, %c0_58] : memref<9x32x128xbf16, #tpu.memory_space<vmem>>, vector<1x32x128xbf16>
    %67 = vector.shape_cast %66 : vector<1x32x128xbf16> to vector<32x128xbf16>
    %cst_59 = arith.constant dense<0.000000e+00> : vector<32x32xf32>
    %68 = tpu.matmul %67, %8, %cst_59 {dimension_numbers = #tpu.dot_dimension_numbers<[1], [0], [0], [1], [0, 0, 1, 1], [], []>} : vector<32x128xbf16>, vector<128x32xbf16>, vector<32x32xf32> -> vector<32x32xf32>
    %69 = arith.truncf %68 : vector<32x32xf32> to vector<32x32xbf16>
    %c7_60 = arith.constant 7 : index
    %c0_61 = arith.constant 0 : index
    %c0_62 = arith.constant 0 : index
    %70 = vector.load %arg5[%c7_60, %c0_61, %c0_62] : memref<9x32x64xbf16, #tpu.memory_space<vmem>>, vector<1x32x64xbf16>
    %71 = vector.shape_cast %70 : vector<1x32x64xbf16> to vector<32x64xbf16>
    %cst_63 = arith.constant dense<0.000000e+00> : vector<32x64xf32>
    %72 = tpu.matmul %69, %71, %cst_63 {dimension_numbers = #tpu.dot_dimension_numbers<[1], [0], [0], [1], [0, 0, 1, 1], [], []>} : vector<32x32xbf16>, vector<32x64xbf16>, vector<32x64xf32> -> vector<32x64xf32>
    %73 = arith.addf %65, %72 : vector<32x64xf32>
    %c8 = arith.constant 8 : index
    %c0_64 = arith.constant 0 : index
    %c0_65 = arith.constant 0 : index
    %74 = vector.load %arg4[%c8, %c0_64, %c0_65] : memref<9x32x128xbf16, #tpu.memory_space<vmem>>, vector<1x32x128xbf16>
    %75 = vector.shape_cast %74 : vector<1x32x128xbf16> to vector<32x128xbf16>
    %cst_66 = arith.constant dense<0.000000e+00> : vector<32x32xf32>
    %76 = tpu.matmul %75, %8, %cst_66 {dimension_numbers = #tpu.dot_dimension_numbers<[1], [0], [0], [1], [0, 0, 1, 1], [], []>} : vector<32x128xbf16>, vector<128x32xbf16>, vector<32x32xf32> -> vector<32x32xf32>
    %77 = arith.truncf %76 : vector<32x32xf32> to vector<32x32xbf16>
    %c8_67 = arith.constant 8 : index
    %c0_68 = arith.constant 0 : index
    %c0_69 = arith.constant 0 : index
    %78 = vector.load %arg5[%c8_67, %c0_68, %c0_69] : memref<9x32x64xbf16, #tpu.memory_space<vmem>>, vector<1x32x64xbf16>
    %79 = vector.shape_cast %78 : vector<1x32x64xbf16> to vector<32x64xbf16>
    %cst_70 = arith.constant dense<0.000000e+00> : vector<32x64xf32>
    %80 = tpu.matmul %77, %79, %cst_70 {dimension_numbers = #tpu.dot_dimension_numbers<[1], [0], [0], [1], [0, 0, 1, 1], [], []>} : vector<32x32xbf16>, vector<32x64xbf16>, vector<32x64xf32> -> vector<32x64xf32>
    %81 = arith.addf %73, %80 : vector<32x64xf32>
    %c0_71 = arith.constant 0 : index
    %c0_72 = arith.constant 0 : index
    %82 = vector.load %arg6[%c0_71, %c0_72] : memref<1x64xf32, #tpu.memory_space<vmem>>, vector<1x64xf32>
    %83 = vector.broadcast %82 : vector<1x64xf32> to vector<32x64xf32>
    %84 = arith.addf %81, %83 : vector<32x64xf32>
    %cst_73 = arith.constant 0.000000e+00 : f32
    %85 = vector.broadcast %cst_73 : f32 to vector<32x64xf32>
    %86 = arith.maximumf %84, %85 : vector<32x64xf32>
    %87 = arith.truncf %86 : vector<32x64xf32> to vector<32x64xbf16>
    %cst_74 = arith.constant 0.000000e+00 : f32
    %88 = vector.broadcast %cst_74 : f32 to vector<8x128xf32>
    %c0_75 = arith.constant 0 : index
    %c0_76 = arith.constant 0 : index
    %c0_77 = arith.constant 0 : index
    %89 = vector.load %arg7[%c0_75, %c0_76, %c0_77] : memref<9x8x32xbf16, #tpu.memory_space<vmem>>, vector<1x8x32xbf16>
    %90 = vector.shape_cast %89 : vector<1x8x32xbf16> to vector<8x32xbf16>
    %cst_78 = arith.constant dense<0.000000e+00> : vector<8x64xf32>
    %91 = tpu.matmul %90, %87, %cst_78 {dimension_numbers = #tpu.dot_dimension_numbers<[1], [0], [0], [1], [0, 0, 1, 1], [], []>} : vector<8x32xbf16>, vector<32x64xbf16>, vector<8x64xf32> -> vector<8x64xf32>
    %92 = arith.truncf %91 : vector<8x64xf32> to vector<8x64xbf16>
    %c0_79 = arith.constant 0 : index
    %c0_80 = arith.constant 0 : index
    %c0_81 = arith.constant 0 : index
    %93 = vector.load %arg8[%c0_79, %c0_80, %c0_81] : memref<9x64x128xbf16, #tpu.memory_space<vmem>>, vector<1x64x128xbf16>
    %94 = vector.shape_cast %93 : vector<1x64x128xbf16> to vector<64x128xbf16>
    %cst_82 = arith.constant dense<0.000000e+00> : vector<8x128xf32>
    %95 = tpu.matmul %92, %94, %cst_82 {dimension_numbers = #tpu.dot_dimension_numbers<[1], [0], [0], [1], [0, 0, 1, 1], [], []>} : vector<8x64xbf16>, vector<64x128xbf16>, vector<8x128xf32> -> vector<8x128xf32>
    %96 = arith.addf %88, %95 : vector<8x128xf32>
    %c1_83 = arith.constant 1 : index
    %c0_84 = arith.constant 0 : index
    %c0_85 = arith.constant 0 : index
    %97 = vector.load %arg7[%c1_83, %c0_84, %c0_85] : memref<9x8x32xbf16, #tpu.memory_space<vmem>>, vector<1x8x32xbf16>
    %98 = vector.shape_cast %97 : vector<1x8x32xbf16> to vector<8x32xbf16>
    %cst_86 = arith.constant dense<0.000000e+00> : vector<8x64xf32>
    %99 = tpu.matmul %98, %87, %cst_86 {dimension_numbers = #tpu.dot_dimension_numbers<[1], [0], [0], [1], [0, 0, 1, 1], [], []>} : vector<8x32xbf16>, vector<32x64xbf16>, vector<8x64xf32> -> vector<8x64xf32>
    %100 = arith.truncf %99 : vector<8x64xf32> to vector<8x64xbf16>
    %c1_87 = arith.constant 1 : index
    %c0_88 = arith.constant 0 : index
    %c0_89 = arith.constant 0 : index
    %101 = vector.load %arg8[%c1_87, %c0_88, %c0_89] : memref<9x64x128xbf16, #tpu.memory_space<vmem>>, vector<1x64x128xbf16>
    %102 = vector.shape_cast %101 : vector<1x64x128xbf16> to vector<64x128xbf16>
    %cst_90 = arith.constant dense<0.000000e+00> : vector<8x128xf32>
    %103 = tpu.matmul %100, %102, %cst_90 {dimension_numbers = #tpu.dot_dimension_numbers<[1], [0], [0], [1], [0, 0, 1, 1], [], []>} : vector<8x64xbf16>, vector<64x128xbf16>, vector<8x128xf32> -> vector<8x128xf32>
    %104 = arith.addf %96, %103 : vector<8x128xf32>
    %c2_91 = arith.constant 2 : index
    %c0_92 = arith.constant 0 : index
    %c0_93 = arith.constant 0 : index
    %105 = vector.load %arg7[%c2_91, %c0_92, %c0_93] : memref<9x8x32xbf16, #tpu.memory_space<vmem>>, vector<1x8x32xbf16>
    %106 = vector.shape_cast %105 : vector<1x8x32xbf16> to vector<8x32xbf16>
    %cst_94 = arith.constant dense<0.000000e+00> : vector<8x64xf32>
    %107 = tpu.matmul %106, %87, %cst_94 {dimension_numbers = #tpu.dot_dimension_numbers<[1], [0], [0], [1], [0, 0, 1, 1], [], []>} : vector<8x32xbf16>, vector<32x64xbf16>, vector<8x64xf32> -> vector<8x64xf32>
    %108 = arith.truncf %107 : vector<8x64xf32> to vector<8x64xbf16>
    %c2_95 = arith.constant 2 : index
    %c0_96 = arith.constant 0 : index
    %c0_97 = arith.constant 0 : index
    %109 = vector.load %arg8[%c2_95, %c0_96, %c0_97] : memref<9x64x128xbf16, #tpu.memory_space<vmem>>, vector<1x64x128xbf16>
    %110 = vector.shape_cast %109 : vector<1x64x128xbf16> to vector<64x128xbf16>
    %cst_98 = arith.constant dense<0.000000e+00> : vector<8x128xf32>
    %111 = tpu.matmul %108, %110, %cst_98 {dimension_numbers = #tpu.dot_dimension_numbers<[1], [0], [0], [1], [0, 0, 1, 1], [], []>} : vector<8x64xbf16>, vector<64x128xbf16>, vector<8x128xf32> -> vector<8x128xf32>
    %112 = arith.addf %104, %111 : vector<8x128xf32>
    %c3_99 = arith.constant 3 : index
    %c0_100 = arith.constant 0 : index
    %c0_101 = arith.constant 0 : index
    %113 = vector.load %arg7[%c3_99, %c0_100, %c0_101] : memref<9x8x32xbf16, #tpu.memory_space<vmem>>, vector<1x8x32xbf16>
    %114 = vector.shape_cast %113 : vector<1x8x32xbf16> to vector<8x32xbf16>
    %cst_102 = arith.constant dense<0.000000e+00> : vector<8x64xf32>
    %115 = tpu.matmul %114, %87, %cst_102 {dimension_numbers = #tpu.dot_dimension_numbers<[1], [0], [0], [1], [0, 0, 1, 1], [], []>} : vector<8x32xbf16>, vector<32x64xbf16>, vector<8x64xf32> -> vector<8x64xf32>
    %116 = arith.truncf %115 : vector<8x64xf32> to vector<8x64xbf16>
    %c3_103 = arith.constant 3 : index
    %c0_104 = arith.constant 0 : index
    %c0_105 = arith.constant 0 : index
    %117 = vector.load %arg8[%c3_103, %c0_104, %c0_105] : memref<9x64x128xbf16, #tpu.memory_space<vmem>>, vector<1x64x128xbf16>
    %118 = vector.shape_cast %117 : vector<1x64x128xbf16> to vector<64x128xbf16>
    %cst_106 = arith.constant dense<0.000000e+00> : vector<8x128xf32>
    %119 = tpu.matmul %116, %118, %cst_106 {dimension_numbers = #tpu.dot_dimension_numbers<[1], [0], [0], [1], [0, 0, 1, 1], [], []>} : vector<8x64xbf16>, vector<64x128xbf16>, vector<8x128xf32> -> vector<8x128xf32>
    %120 = arith.addf %112, %119 : vector<8x128xf32>
    %c4_107 = arith.constant 4 : index
    %c0_108 = arith.constant 0 : index
    %c0_109 = arith.constant 0 : index
    %121 = vector.load %arg7[%c4_107, %c0_108, %c0_109] : memref<9x8x32xbf16, #tpu.memory_space<vmem>>, vector<1x8x32xbf16>
    %122 = vector.shape_cast %121 : vector<1x8x32xbf16> to vector<8x32xbf16>
    %cst_110 = arith.constant dense<0.000000e+00> : vector<8x64xf32>
    %123 = tpu.matmul %122, %87, %cst_110 {dimension_numbers = #tpu.dot_dimension_numbers<[1], [0], [0], [1], [0, 0, 1, 1], [], []>} : vector<8x32xbf16>, vector<32x64xbf16>, vector<8x64xf32> -> vector<8x64xf32>
    %124 = arith.truncf %123 : vector<8x64xf32> to vector<8x64xbf16>
    %c4_111 = arith.constant 4 : index
    %c0_112 = arith.constant 0 : index
    %c0_113 = arith.constant 0 : index
    %125 = vector.load %arg8[%c4_111, %c0_112, %c0_113] : memref<9x64x128xbf16, #tpu.memory_space<vmem>>, vector<1x64x128xbf16>
    %126 = vector.shape_cast %125 : vector<1x64x128xbf16> to vector<64x128xbf16>
    %cst_114 = arith.constant dense<0.000000e+00> : vector<8x128xf32>
    %127 = tpu.matmul %124, %126, %cst_114 {dimension_numbers = #tpu.dot_dimension_numbers<[1], [0], [0], [1], [0, 0, 1, 1], [], []>} : vector<8x64xbf16>, vector<64x128xbf16>, vector<8x128xf32> -> vector<8x128xf32>
    %128 = arith.addf %120, %127 : vector<8x128xf32>
    %c5_115 = arith.constant 5 : index
    %c0_116 = arith.constant 0 : index
    %c0_117 = arith.constant 0 : index
    %129 = vector.load %arg7[%c5_115, %c0_116, %c0_117] : memref<9x8x32xbf16, #tpu.memory_space<vmem>>, vector<1x8x32xbf16>
    %130 = vector.shape_cast %129 : vector<1x8x32xbf16> to vector<8x32xbf16>
    %cst_118 = arith.constant dense<0.000000e+00> : vector<8x64xf32>
    %131 = tpu.matmul %130, %87, %cst_118 {dimension_numbers = #tpu.dot_dimension_numbers<[1], [0], [0], [1], [0, 0, 1, 1], [], []>} : vector<8x32xbf16>, vector<32x64xbf16>, vector<8x64xf32> -> vector<8x64xf32>
    %132 = arith.truncf %131 : vector<8x64xf32> to vector<8x64xbf16>
    %c5_119 = arith.constant 5 : index
    %c0_120 = arith.constant 0 : index
    %c0_121 = arith.constant 0 : index
    %133 = vector.load %arg8[%c5_119, %c0_120, %c0_121] : memref<9x64x128xbf16, #tpu.memory_space<vmem>>, vector<1x64x128xbf16>
    %134 = vector.shape_cast %133 : vector<1x64x128xbf16> to vector<64x128xbf16>
    %cst_122 = arith.constant dense<0.000000e+00> : vector<8x128xf32>
    %135 = tpu.matmul %132, %134, %cst_122 {dimension_numbers = #tpu.dot_dimension_numbers<[1], [0], [0], [1], [0, 0, 1, 1], [], []>} : vector<8x64xbf16>, vector<64x128xbf16>, vector<8x128xf32> -> vector<8x128xf32>
    %136 = arith.addf %128, %135 : vector<8x128xf32>
    %c6_123 = arith.constant 6 : index
    %c0_124 = arith.constant 0 : index
    %c0_125 = arith.constant 0 : index
    %137 = vector.load %arg7[%c6_123, %c0_124, %c0_125] : memref<9x8x32xbf16, #tpu.memory_space<vmem>>, vector<1x8x32xbf16>
    %138 = vector.shape_cast %137 : vector<1x8x32xbf16> to vector<8x32xbf16>
    %cst_126 = arith.constant dense<0.000000e+00> : vector<8x64xf32>
    %139 = tpu.matmul %138, %87, %cst_126 {dimension_numbers = #tpu.dot_dimension_numbers<[1], [0], [0], [1], [0, 0, 1, 1], [], []>} : vector<8x32xbf16>, vector<32x64xbf16>, vector<8x64xf32> -> vector<8x64xf32>
    %140 = arith.truncf %139 : vector<8x64xf32> to vector<8x64xbf16>
    %c6_127 = arith.constant 6 : index
    %c0_128 = arith.constant 0 : index
    %c0_129 = arith.constant 0 : index
    %141 = vector.load %arg8[%c6_127, %c0_128, %c0_129] : memref<9x64x128xbf16, #tpu.memory_space<vmem>>, vector<1x64x128xbf16>
    %142 = vector.shape_cast %141 : vector<1x64x128xbf16> to vector<64x128xbf16>
    %cst_130 = arith.constant dense<0.000000e+00> : vector<8x128xf32>
    %143 = tpu.matmul %140, %142, %cst_130 {dimension_numbers = #tpu.dot_dimension_numbers<[1], [0], [0], [1], [0, 0, 1, 1], [], []>} : vector<8x64xbf16>, vector<64x128xbf16>, vector<8x128xf32> -> vector<8x128xf32>
    %144 = arith.addf %136, %143 : vector<8x128xf32>
    %c7_131 = arith.constant 7 : index
    %c0_132 = arith.constant 0 : index
    %c0_133 = arith.constant 0 : index
    %145 = vector.load %arg7[%c7_131, %c0_132, %c0_133] : memref<9x8x32xbf16, #tpu.memory_space<vmem>>, vector<1x8x32xbf16>
    %146 = vector.shape_cast %145 : vector<1x8x32xbf16> to vector<8x32xbf16>
    %cst_134 = arith.constant dense<0.000000e+00> : vector<8x64xf32>
    %147 = tpu.matmul %146, %87, %cst_134 {dimension_numbers = #tpu.dot_dimension_numbers<[1], [0], [0], [1], [0, 0, 1, 1], [], []>} : vector<8x32xbf16>, vector<32x64xbf16>, vector<8x64xf32> -> vector<8x64xf32>
    %148 = arith.truncf %147 : vector<8x64xf32> to vector<8x64xbf16>
    %c7_135 = arith.constant 7 : index
    %c0_136 = arith.constant 0 : index
    %c0_137 = arith.constant 0 : index
    %149 = vector.load %arg8[%c7_135, %c0_136, %c0_137] : memref<9x64x128xbf16, #tpu.memory_space<vmem>>, vector<1x64x128xbf16>
    %150 = vector.shape_cast %149 : vector<1x64x128xbf16> to vector<64x128xbf16>
    %cst_138 = arith.constant dense<0.000000e+00> : vector<8x128xf32>
    %151 = tpu.matmul %148, %150, %cst_138 {dimension_numbers = #tpu.dot_dimension_numbers<[1], [0], [0], [1], [0, 0, 1, 1], [], []>} : vector<8x64xbf16>, vector<64x128xbf16>, vector<8x128xf32> -> vector<8x128xf32>
    %152 = arith.addf %144, %151 : vector<8x128xf32>
    %c8_139 = arith.constant 8 : index
    %c0_140 = arith.constant 0 : index
    %c0_141 = arith.constant 0 : index
    %153 = vector.load %arg7[%c8_139, %c0_140, %c0_141] : memref<9x8x32xbf16, #tpu.memory_space<vmem>>, vector<1x8x32xbf16>
    %154 = vector.shape_cast %153 : vector<1x8x32xbf16> to vector<8x32xbf16>
    %cst_142 = arith.constant dense<0.000000e+00> : vector<8x64xf32>
    %155 = tpu.matmul %154, %87, %cst_142 {dimension_numbers = #tpu.dot_dimension_numbers<[1], [0], [0], [1], [0, 0, 1, 1], [], []>} : vector<8x32xbf16>, vector<32x64xbf16>, vector<8x64xf32> -> vector<8x64xf32>
    %156 = arith.truncf %155 : vector<8x64xf32> to vector<8x64xbf16>
    %c8_143 = arith.constant 8 : index
    %c0_144 = arith.constant 0 : index
    %c0_145 = arith.constant 0 : index
    %157 = vector.load %arg8[%c8_143, %c0_144, %c0_145] : memref<9x64x128xbf16, #tpu.memory_space<vmem>>, vector<1x64x128xbf16>
    %158 = vector.shape_cast %157 : vector<1x64x128xbf16> to vector<64x128xbf16>
    %cst_146 = arith.constant dense<0.000000e+00> : vector<8x128xf32>
    %159 = tpu.matmul %156, %158, %cst_146 {dimension_numbers = #tpu.dot_dimension_numbers<[1], [0], [0], [1], [0, 0, 1, 1], [], []>} : vector<8x64xbf16>, vector<64x128xbf16>, vector<8x128xf32> -> vector<8x128xf32>
    %160 = arith.addf %152, %159 : vector<8x128xf32>
    %c0_147 = arith.constant 0 : index
    %c0_148 = arith.constant 0 : index
    %161 = vector.load %arg9[%c0_147, %c0_148] : memref<1x128xf32, #tpu.memory_space<vmem>>, vector<1x128xf32>
    %162 = vector.broadcast %161 : vector<1x128xf32> to vector<8x128xf32>
    %163 = arith.addf %160, %162 : vector<8x128xf32>
    %cst_149 = arith.constant 0.000000e+00 : f32
    %164 = vector.broadcast %cst_149 : f32 to vector<8x128xf32>
    %165 = arith.maximumf %163, %164 : vector<8x128xf32>
    %166 = arith.truncf %165 : vector<8x128xf32> to vector<8x128xbf16>
    %c0_150 = arith.constant 0 : index
    %c0_151 = arith.constant 0 : index
    %167 = vector.load %arg10[%c0_150, %c0_151] : memref<128x32xbf16, #tpu.memory_space<vmem>>, vector<128x32xbf16>
    %cst_152 = arith.constant dense<0.000000e+00> : vector<8x32xf32>
    %168 = tpu.matmul %166, %167, %cst_152 {dimension_numbers = #tpu.dot_dimension_numbers<[1], [0], [0], [1], [0, 0, 1, 1], [], []>} : vector<8x128xbf16>, vector<128x32xbf16>, vector<8x32xf32> -> vector<8x32xf32>
    %c0_153 = arith.constant 0 : index
    %c0_154 = arith.constant 0 : index
    %169 = vector.load %arg11[%c0_153, %c0_154] : memref<1x32xf32, #tpu.memory_space<vmem>>, vector<1x32xf32>
    %170 = vector.broadcast %169 : vector<1x32xf32> to vector<8x32xf32>
    %171 = arith.addf %168, %170 : vector<8x32xf32>
    %c0_155 = arith.constant 0 : index
    %c0_156 = arith.constant 0 : index
    %172 = vector.load %arg12[%c0_155, %c0_156] : memref<8x32xf32, #tpu.memory_space<vmem>>, vector<8x32xf32>
    tpu.vector_store %arg12[%c0_155, %c0_156], %171 {strides = array<i32>} : memref<8x32xf32, #tpu.memory_space<vmem>>, vector<8x32xf32>,
    return
  }
  func.func @transform_0(%arg0: i32) -> (i32, i32) {
    %c0_i32 = arith.constant 0 : i32
    %c0_i32_0 = arith.constant 0 : i32
    %c0_i32_1 = arith.constant 0 : i32
    return %c0_i32, %c0_i32_0 : i32, i32
  }
  func.func @transform_1(%arg0: i32) -> (i32, i32) {
    %c0_i32 = arith.constant 0 : i32
    %c0_i32_0 = arith.constant 0 : i32
    %c0_i32_1 = arith.constant 0 : i32
    return %c0_i32, %c0_i32_0 : i32, i32
  }
  func.func @transform_2(%arg0: i32) -> (i32, i32) {
    %c0_i32 = arith.constant 0 : i32
    %c0_i32_0 = arith.constant 0 : i32
    %c0_i32_1 = arith.constant 0 : i32
    return %c0_i32, %c0_i32_0 : i32, i32
  }
  func.func @transform_3(%arg0: i32) -> (i32, i32, i32) {
    %c0_i32 = arith.constant 0 : i32
    %c0_i32_0 = arith.constant 0 : i32
    %c0_i32_1 = arith.constant 0 : i32
    %c0_i32_2 = arith.constant 0 : i32
    return %c0_i32, %c0_i32_0, %c0_i32_1 : i32, i32, i32
  }
  func.func @transform_4(%arg0: i32) -> (i32, i32, i32) {
    %c0_i32 = arith.constant 0 : i32
    %c0_i32_0 = arith.constant 0 : i32
    %c0_i32_1 = arith.constant 0 : i32
    %c0_i32_2 = arith.constant 0 : i32
    return %c0_i32, %c0_i32_0, %c0_i32_1 : i32, i32, i32
  }
  func.func @transform_5(%arg0: i32) -> (i32, i32) {
    %c0_i32 = arith.constant 0 : i32
    %c0_i32_0 = arith.constant 0 : i32
    %c0_i32_1 = arith.constant 0 : i32
    return %c0_i32, %c0_i32_0 : i32, i32
  }
  func.func @transform_6(%arg0: i32) -> (i32, i32, i32) {
    %c0_i32 = arith.constant 0 : i32
    %c0_i32_0 = arith.constant 0 : i32
    %c0_i32_1 = arith.constant 0 : i32
    %c0_i32_2 = arith.constant 0 : i32
    return %c0_i32, %c0_i32_0, %c0_i32_1 : i32, i32, i32
  }
  func.func @transform_7(%arg0: i32) -> (i32, i32, i32) {
    %c0_i32 = arith.constant 0 : i32
    %c0_i32_0 = arith.constant 0 : i32
    %c0_i32_1 = arith.constant 0 : i32
    %c0_i32_2 = arith.constant 0 : i32
    return %c0_i32, %c0_i32_0, %c0_i32_1 : i32, i32, i32
  }
  func.func @transform_8(%arg0: i32) -> (i32, i32) {
    %c0_i32 = arith.constant 0 : i32
    %c0_i32_0 = arith.constant 0 : i32
    %c0_i32_1 = arith.constant 0 : i32
    return %c0_i32, %c0_i32_0 : i32, i32
  }
  func.func @transform_9(%arg0: i32) -> (i32, i32) {
    %c0_i32 = arith.constant 0 : i32
    %c0_i32_0 = arith.constant 0 : i32
    %c0_i32_1 = arith.constant 0 : i32
    return %c0_i32, %c0_i32_0 : i32, i32
  }
  func.func @transform_10(%arg0: i32) -> (i32, i32) {
    %c0_i32 = arith.constant 0 : i32
    %c0_i32_0 = arith.constant 0 : i32
    %c0_i32_1 = arith.constant 0 : i32
    return %c0_i32, %c0_i32_0 : i32, i32
  }
  func.func @transform_11(%arg0: i32) -> (i32, i32) {
    %c0_i32 = arith.constant 0 : i32
    %c0_i32_0 = arith.constant 0 : i32
    %c0_i32_1 = arith.constant 0 : i32
    return %c0_i32, %c0_i32_0 : i32, i32
  }
}

</mosaic_0001>

<llo_original>
// kernel: encoder_forward.1
$region0: #{encoder_forward.1}
  #allocation0 [shape = 'u32[]', space=smem, size = 0x4, offset = 0x4, fixed_abs, tag = 'smem constant byte address 0x4 - core index']
  #allocation1 [shape = 'u32[144,128]{1,0:T(1,128)}', space=vmem, size = 0x12000, scoped, tag = 'internal scratch']
  %s0 = inlined_call_operand.vmem [shape: bf16[128,16], index: 0, kind: input, shape index: {}]
  %s1 = inlined_call_operand.vmem [shape: bf16[16,32], index: 1, kind: input, shape index: {}]
  %s2 = inlined_call_operand.vmem [shape: f32[1,32], index: 2, kind: input, shape index: {}]
  %s3 = inlined_call_operand.vmem [shape: bf16[9,32,128], index: 3, kind: input, shape index: {}]
  %s4 = inlined_call_operand.vmem [shape: bf16[9,32,64], index: 4, kind: input, shape index: {}]
  %s5 = inlined_call_operand.vmem [shape: f32[1,64], index: 5, kind: input, shape index: {}]
  %s6 = inlined_call_operand.vmem [shape: bf16[9,8,32], index: 6, kind: input, shape index: {}]
  %s7 = inlined_call_operand.vmem [shape: bf16[9,64,128], index: 7, kind: input, shape index: {}]
  %s8 = inlined_call_operand.vmem [shape: f32[1,128], index: 8, kind: input, shape index: {}]
  %s9 = inlined_call_operand.vmem [shape: bf16[128,32], index: 9, kind: input, shape index: {}]
  %s10 = inlined_call_operand.vmem [shape: f32[1,32], index: 10, kind: input, shape index: {}]
  %s11 = inlined_call_operand.hbm [shape: f32[8,32], index: 11, kind: output, shape index: {}]
  %s12 = sld [smem:[#allocation0]]
  $region54: #{encoder_forward.1} parent=0
    _
  %s14 = ssub.s32 1, %s12
  %s15 = scalar_select 0, %s14, %s12
  $region1: #{encoder_forward.1} parent=0
    #allocation2 [shape = 'u8[4096]{0}', space=vmem, size = 0x1000, scoped, tag = 'output window, operand 0, single buffered']
    #allocation3 [shape = 's32[1]{0}', space=sflag, size = 0x4, scoped, tag = 'scoped memory for encoder_forward.1']
    %16 = vsyncpa [#allocation3], 0
    // Predicated region
    $region2: #{encoder_forward.1} parent=1 // pred_check
      _
    $region3: #{encoder_forward.1} parent=1 // pred_check_branch
      %18 = sbr.rel (0) target = $region5
    $region4: #{encoder_forward.1} parent=1 // pred_region
      _
    $region5: #{encoder_forward.1} parent=1 // pred_fallthru
      _
    // Predicated region
    $region6: #{encoder_forward.1} parent=1 // pred_check
      _
    $region7: #{encoder_forward.1} parent=1 // pred_check_branch
      %20 = sbr.rel (0) target = $region9
    $region8: #{encoder_forward.1} parent=1 // pred_region
      _
    $region9: #{encoder_forward.1} parent=1 // pred_fallthru
      _
    // Predicated region
    $region10: #{encoder_forward.1} parent=1 // pred_check
      _
    $region11: #{encoder_forward.1} parent=1 // pred_check_branch
      %22 = sbr.rel (0) target = $region13
    $region12: #{encoder_forward.1} parent=1 // pred_region
      _
    $region13: #{encoder_forward.1} parent=1 // pred_fallthru
      _
    // Predicated region
    $region14: #{encoder_forward.1} parent=1 // pred_check
      _
    $region15: #{encoder_forward.1} parent=1 // pred_check_branch
      %24 = sbr.rel (0) target = $region17
    $region16: #{encoder_forward.1} parent=1 // pred_region
      _
    $region17: #{encoder_forward.1} parent=1 // pred_fallthru
      _
    // Predicated region
    $region18: #{encoder_forward.1} parent=1 // pred_check
      _
    $region19: #{encoder_forward.1} parent=1 // pred_check_branch
      %26 = sbr.rel (0) target = $region21
    $region20: #{encoder_forward.1} parent=1 // pred_region
      _
    $region21: #{encoder_forward.1} parent=1 // pred_fallthru
      _
    // Predicated region
    $region22: #{encoder_forward.1} parent=1 // pred_check
      _
    $region23: #{encoder_forward.1} parent=1 // pred_check_branch
      %28 = sbr.rel (0) target = $region25
    $region24: #{encoder_forward.1} parent=1 // pred_region
      _
    $region25: #{encoder_forward.1} parent=1 // pred_fallthru
      _
    // Predicated region
    $region26: #{encoder_forward.1} parent=1 // pred_check
      _
    $region27: #{encoder_forward.1} parent=1 // pred_check_branch
      %30 = sbr.rel (0) target = $region29
    $region28: #{encoder_forward.1} parent=1 // pred_region
      _
    $region29: #{encoder_forward.1} parent=1 // pred_fallthru
      _
    // Predicated region
    $region30: #{encoder_forward.1} parent=1 // pred_check
      _
    $region31: #{encoder_forward.1} parent=1 // pred_check_branch
      %32 = sbr.rel (0) target = $region33
    $region32: #{encoder_forward.1} parent=1 // pred_region
      _
    $region33: #{encoder_forward.1} parent=1 // pred_fallthru
      _
    // Predicated region
    $region34: #{encoder_forward.1} parent=1 // pred_check
      _
    $region35: #{encoder_forward.1} parent=1 // pred_check_branch
      %34 = sbr.rel (0) target = $region37
    $region36: #{encoder_forward.1} parent=1 // pred_region
      _
    $region37: #{encoder_forward.1} parent=1 // pred_fallthru
      _
    // Predicated region
    $region38: #{encoder_forward.1} parent=1 // pred_check
      _
    $region39: #{encoder_forward.1} parent=1 // pred_check_branch
      %36 = sbr.rel (0) target = $region41
    $region40: #{encoder_forward.1} parent=1 // pred_region
      _
    $region41: #{encoder_forward.1} parent=1 // pred_fallthru
      _
    // Predicated region
    $region42: #{encoder_forward.1} parent=1 // pred_check
      _
    $region43: #{encoder_forward.1} parent=1 // pred_check_branch
      %38 = sbr.rel (0) target = $region45
    $region44: #{encoder_forward.1} parent=1 // pred_region
      _
    $region45: #{encoder_forward.1} parent=1 // pred_fallthru
      _
    %v40 = vld [vmem:[%s0] sm:$0xf]
    %v41 = vld [vmem:[%s0 + $0x4] sm:$0xf]
    %v42 = vld [vmem:[%s0 + $0x8] sm:$0xf]
    %v43 = vld [vmem:[%s0 + $0xc] sm:$0xf]
    %v44 = vld [vmem:[%s0 + $0x10] sm:$0xf]
    %v45 = vld [vmem:[%s0 + $0x14] sm:$0xf]
    %v46 = vld [vmem:[%s0 + $0x18] sm:$0xf]
    %v47 = vld [vmem:[%s0 + $0x1c] sm:$0xf]
    %v48 = vld [vmem:[%s0 + $0x20] sm:$0xf]
    %v49 = vld [vmem:[%s0 + $0x24] sm:$0xf]
    %v50 = vld [vmem:[%s0 + $0x28] sm:$0xf]
    %v51 = vld [vmem:[%s0 + $0x2c] sm:$0xf]
    %v52 = vld [vmem:[%s0 + $0x30] sm:$0xf]
    %v53 = vld [vmem:[%s0 + $0x34] sm:$0xf]
    %v54 = vld [vmem:[%s0 + $0x38] sm:$0xf]
    %v55 = vld [vmem:[%s0 + $0x3c] sm:$0xf]
    %v56 = vld [vmem:[%s1] sm:$0xf]
    %v57 = vld [vmem:[%s1 + $0x4] sm:$0xf]
    %v58 = vld [vmem:[%s2] sm:$0x1]
    %v60 = vlaneseq
    %v61 = vshrl.u32 %v60, 7
    %v62 = vsub.s32 0, %v61
    %v63 = vrot.slane %v58, %v62
    %v81 = vunpack.c.l.b16 %v40
    %v82 = vunpack.c.l.b16 %v41
    %v83 = vunpack.c.l.b16 %v42
    %v84 = vunpack.c.l.b16 %v43
    %v85 = vunpack.c.l.b16 %v44
    %v86 = vunpack.c.l.b16 %v45
    %v87 = vunpack.c.l.b16 %v46
    %v88 = vunpack.c.l.b16 %v47
    %v89 = vunpack.c.l.b16 %v48
    %v90 = vunpack.c.l.b16 %v49
    %v91 = vunpack.c.l.b16 %v50
    %v92 = vunpack.c.l.b16 %v51
    %v93 = vunpack.c.l.b16 %v52
    %v94 = vunpack.c.l.b16 %v53
    %v95 = vunpack.c.l.b16 %v54
    %v96 = vunpack.c.l.b16 %v55
    %v97 = vpack.c.b16 %v82, %v81
    %v98 = vpack.c.b16 %v84, %v83
    %v99 = vpack.c.b16 %v86, %v85
    %v100 = vpack.c.b16 %v88, %v87
    %v101 = vpack.c.b16 %v90, %v89
    %v102 = vpack.c.b16 %v92, %v91
    %v103 = vpack.c.b16 %v94, %v93
    %v104 = vpack.c.b16 %v96, %v95
    %v107 = vunpack.c.l.b16 %v56
    %v108 = vunpack.c.l.b16 %v57
    %v109 = vpack.c.b16 %v108, %v107
    %vm111 = vcmask 130048
    %v113 = vsel %vm111, %v97, 0
    %v116 = vsel %vm111, %v98, 0
    %v119 = vsel %vm111, %v99, 0
    %v122 = vsel %vm111, %v100, 0
    %v125 = vsel %vm111, %v101, 0
    %v128 = vsel %vm111, %v102, 0
    %v131 = vsel %vm111, %v103, 0
    %v134 = vsel %vm111, %v104, 0
    %136 = vmatprep.subr.bf16.mxu0 0
    %137 = vmatpush1.bf16.msra.mxu0 0
    %138 = vmatprep.subr.bf16.mxu0 0
    %139 = vmatpush1.bf16.msra.mxu0 0
    %140 = vmatprep.subr.bf16.mxu0 0
    %141 = vmatpush1.bf16.msra.mxu0 0
    %142 = vmatprep.subr.bf16.mxu0 0
    %143 = vmatpush1.bf16.msra.mxu0 0
    %144 = vmatprep.subr.bf16.mxu0 0
    %145 = vmatpush1.bf16.msra.mxu0 0
    %146 = vmatprep.subr.bf16.mxu0 0
    %147 = vmatpush1.bf16.msra.mxu0 0
    %148 = vmatprep.subr.bf16.mxu0 0
    %149 = vmatpush1.bf16.msra.mxu0 0
    %150 = vmatprep.subr.bf16.mxu0 0
    %151 = vmatpush1.bf16.msra.mxu0 %v109
    %152 = vmatprep.subr.bf16.mxu0 0
    %153 = vmatpush2.bf16.msra.mxu0 0
    %154 = vmatprep.subr.bf16.mxu0 0
    %155 = vmatpush2.bf16.msra.mxu0 0
    %156 = vmatprep.subr.bf16.mxu0 0
    %157 = vmatpush2.bf16.msra.mxu0 0
    %158 = vmatprep.subr.bf16.mxu0 0
    %159 = vmatpush2.bf16.msra.mxu0 0
    %160 = vmatprep.subr.bf16.mxu0 0
    %161 = vmatpush2.bf16.msra.mxu0 0
    %162 = vmatprep.subr.bf16.mxu0 0
    %163 = vmatpush2.bf16.msra.mxu0 0
    %164 = vmatprep.subr.bf16.mxu0 0
    %165 = vmatpush2.bf16.msra.mxu0 0
    %166 = vmatprep.subr.bf16.mxu0 0
    %167 = vmatpush2.bf16.msra.mxu0 0
    %168 = vmatprep.mubr.bf16.mxu0 0
    %169 = vmatmul.mubr.bf16.gmra.mxu0 %v113
    %v170 = vpop.f32.mrf.mxu0
    %v171 = vadd.f32 %v63, %v170
    %v172 = vpop.f32.mrf.mxu0
    %v173 = vpop.f32.mrf.mxu0
    %v174 = vadd.f32 %v63, %v173
    %v175 = vpop.f32.mrf.mxu0
    %176 = vmatprep.mubr.bf16.mxu0 0
    %177 = vmatmul.mubr.bf16.gmra.mxu0 %v116
    %v178 = vpop.f32.mrf.mxu0
    %v179 = vadd.f32 %v63, %v178
    %v180 = vpop.f32.mrf.mxu0
    %v181 = vpop.f32.mrf.mxu0
    %v182 = vadd.f32 %v63, %v181
    %v183 = vpop.f32.mrf.mxu0
    %184 = vmatprep.mubr.bf16.mxu0 0
    %185 = vmatmul.mubr.bf16.gmra.mxu0 %v119
    %v186 = vpop.f32.mrf.mxu0
    %v187 = vadd.f32 %v63, %v186
    %v188 = vpop.f32.mrf.mxu0
    %v189 = vpop.f32.mrf.mxu0
    %v190 = vadd.f32 %v63, %v189
    %v191 = vpop.f32.mrf.mxu0
    %192 = vmatprep.mubr.bf16.mxu0 0
    %193 = vmatmul.mubr.bf16.gmra.mxu0 %v122
    %v194 = vpop.f32.mrf.mxu0
    %v195 = vadd.f32 %v63, %v194
    %v196 = vpop.f32.mrf.mxu0
    %v197 = vpop.f32.mrf.mxu0
    %v198 = vadd.f32 %v63, %v197
    %v199 = vpop.f32.mrf.mxu0
    %200 = vmatprep.mubr.bf16.mxu0 0
    %201 = vmatmul.mubr.bf16.gmra.mxu0 %v125
    %v202 = vpop.f32.mrf.mxu0
    %v203 = vadd.f32 %v63, %v202
    %v204 = vpop.f32.mrf.mxu0
    %v205 = vpop.f32.mrf.mxu0
    %v206 = vadd.f32 %v63, %v205
    %v207 = vpop.f32.mrf.mxu0
    %208 = vmatprep.mubr.bf16.mxu0 0
    %209 = vmatmul.mubr.bf16.gmra.mxu0 %v128
    %v210 = vpop.f32.mrf.mxu0
    %v211 = vadd.f32 %v63, %v210
    %v212 = vpop.f32.mrf.mxu0
    %v213 = vpop.f32.mrf.mxu0
    %v214 = vadd.f32 %v63, %v213
    %v215 = vpop.f32.mrf.mxu0
    %216 = vmatprep.mubr.bf16.mxu0 0
    %217 = vmatmul.mubr.bf16.gmra.mxu0 %v131
    %v218 = vpop.f32.mrf.mxu0
    %v219 = vadd.f32 %v63, %v218
    %v220 = vpop.f32.mrf.mxu0
    %v221 = vpop.f32.mrf.mxu0
    %v222 = vadd.f32 %v63, %v221
    %v223 = vpop.f32.mrf.mxu0
    %224 = vmatprep.mubr.bf16.mxu0 0
    %225 = vmatmul.mubr.bf16.gmra.mxu0 %v134
    %v226 = vpop.f32.mrf.mxu0
    %v227 = vadd.f32 %v63, %v226
    %v228 = vpop.f32.mrf.mxu0
    %v229 = vpop.f32.mrf.mxu0
    %v230 = vadd.f32 %v63, %v229
    %v231 = vpop.f32.mrf.mxu0
    %232 = vdwg.mxu0
    %v233 = vmax.f32 %v171, 0.0
    %v234 = vmax.f32 %v174, 0.0
    %v235 = vmax.f32 %v179, 0.0
    %v236 = vmax.f32 %v182, 0.0
    %v237 = vmax.f32 %v187, 0.0
    %v238 = vmax.f32 %v190, 0.0
    %v239 = vmax.f32 %v195, 0.0
    %v240 = vmax.f32 %v198, 0.0
    %v241 = vmax.f32 %v203, 0.0
    %v242 = vmax.f32 %v206, 0.0
    %v243 = vmax.f32 %v211, 0.0
    %v244 = vmax.f32 %v214, 0.0
    %v245 = vmax.f32 %v219, 0.0
    %v246 = vmax.f32 %v222, 0.0
    %v247 = vmax.f32 %v227, 0.0
    %v248 = vmax.f32 %v230, 0.0
    %v249 = vpack.c.bf16 %v234, %v233
    %v250 = vpack.c.bf16 %v236, %v235
    %v251 = vpack.c.bf16 %v238, %v237
    %v252 = vpack.c.bf16 %v240, %v239
    %v253 = vpack.c.bf16 %v242, %v241
    %v254 = vpack.c.bf16 %v244, %v243
    %v255 = vpack.c.bf16 %v246, %v245
    %v256 = vpack.c.bf16 %v248, %v247
    %v257 = vld [vmem:[%s3] sm:$0xf]
    %v258 = vld [vmem:[%s3 + $0x4] sm:$0xf]
    %v259 = vld [vmem:[%s3 + $0x8] sm:$0xf]
    %v260 = vld [vmem:[%s3 + $0xc] sm:$0xf]
    %v265 = vunpack.c.l.b16 %v257
    %v266 = vunpack.c.l.b16 %v258
    %v267 = vunpack.c.l.b16 %v259
    %v268 = vunpack.c.l.b16 %v260
    %v269 = vpack.c.b16 %v266, %v265
    %v270 = vpack.c.b16 %v268, %v267
    %273 = vmatprep.subr.bf16.mxu0 0
    %274 = vmatpush1.bf16.msra.mxu0 %v256
    %275 = vmatprep.subr.bf16.mxu0 0
    %276 = vmatpush1.bf16.msra.mxu0 %v255
    %277 = vmatprep.subr.bf16.mxu0 0
    %278 = vmatpush1.bf16.msra.mxu0 %v254
    %279 = vmatprep.subr.bf16.mxu0 0
    %280 = vmatpush1.bf16.msra.mxu0 %v253
    %281 = vmatprep.subr.bf16.mxu0 0
    %282 = vmatpush1.bf16.msra.mxu0 %v252
    %283 = vmatprep.subr.bf16.mxu0 0
    %284 = vmatpush1.bf16.msra.mxu0 %v251
    %285 = vmatprep.subr.bf16.mxu0 0
    %286 = vmatpush1.bf16.msra.mxu0 %v250
    %287 = vmatprep.subr.bf16.mxu0 0
    %288 = vmatpush1.bf16.msra.mxu0 %v249
    %289 = vmatprep.subr.bf16.mxu0 0
    %290 = vmatpush2.bf16.msra.mxu0 0
    %291 = vmatprep.subr.bf16.mxu0 0
    %292 = vmatpush2.bf16.msra.mxu0 0
    %293 = vmatprep.subr.bf16.mxu0 0
    %294 = vmatpush2.bf16.msra.mxu0 0
    %295 = vmatprep.subr.bf16.mxu0 0
    %296 = vmatpush2.bf16.msra.mxu0 0
    %297 = vmatprep.subr.bf16.mxu0 0
    %298 = vmatpush2.bf16.msra.mxu0 0
    %299 = vmatprep.subr.bf16.mxu0 0
    %300 = vmatpush2.bf16.msra.mxu0 0
    %301 = vmatprep.subr.bf16.mxu0 0
    %302 = vmatpush2.bf16.msra.mxu0 0
    %303 = vmatprep.subr.bf16.mxu0 0
    %304 = vmatpush2.bf16.msra.mxu0 0
    %305 = vmatprep.mubr.bf16.mxu0 0
    %306 = vmatmul.mubr.bf16.gmra.mxu0 %v269
    %v307 = vpop.f32.mrf.mxu0
    %v308 = vadd.f32 0.0, %v307
    %v309 = vpop.f32.mrf.mxu0
    %v310 = vpop.f32.mrf.mxu0
    %v311 = vadd.f32 0.0, %v310
    %v312 = vpop.f32.mrf.mxu0
    %313 = vmatprep.mubr.bf16.mxu0 0
    %314 = vmatmul.mubr.bf16.gmra.mxu0 %v270
    %v315 = vpop.f32.mrf.mxu0
    %v316 = vadd.f32 0.0, %v315
    %v317 = vpop.f32.mrf.mxu0
    %v318 = vpop.f32.mrf.mxu0
    %v319 = vadd.f32 0.0, %v318
    %v320 = vpop.f32.mrf.mxu0
    %321 = vdwg.mxu0
    %v322 = vpack.c.bf16 %v311, %v308
    %v323 = vpack.c.bf16 %v319, %v316
    %v324 = vld [vmem:[%s4] sm:$0xf]
    %v325 = vld [vmem:[%s4 + $0x4] sm:$0xf]
    %v326 = vld [vmem:[%s4 + $0x8] sm:$0xf]
    %v327 = vld [vmem:[%s4 + $0xc] sm:$0xf]
    %s328 = scalar_lea.vmem %s3, 16
    %v329 = vld [vmem:[%s328] sm:$0xf]
    %v330 = vld [vmem:[%s328 + $0x4] sm:$0xf]
    %v331 = vld [vmem:[%s328 + $0x8] sm:$0xf]
    %v332 = vld [vmem:[%s328 + $0xc] sm:$0xf]
    %v337 = vunpack.c.l.b16 %v329
    %v338 = vunpack.c.l.b16 %v330
    %v339 = vunpack.c.l.b16 %v331
    %v340 = vunpack.c.l.b16 %v332
    %v341 = vpack.c.b16 %v338, %v337
    %v342 = vpack.c.b16 %v340, %v339
    %345 = vmatprep.subr.bf16.mxu0 0
    %346 = vmatpush1.bf16.msra.mxu0 %v256
    %347 = vmatprep.subr.bf16.mxu0 0
    %348 = vmatpush1.bf16.msra.mxu0 %v255
    %349 = vmatprep.subr.bf16.mxu0 0
    %350 = vmatpush1.bf16.msra.mxu0 %v254
    %351 = vmatprep.subr.bf16.mxu0 0
    %352 = vmatpush1.bf16.msra.mxu0 %v253
    %353 = vmatprep.subr.bf16.mxu0 0
    %354 = vmatpush1.bf16.msra.mxu0 %v252
    %355 = vmatprep.subr.bf16.mxu0 0
    %356 = vmatpush1.bf16.msra.mxu0 %v251
    %357 = vmatprep.subr.bf16.mxu0 0
    %358 = vmatpush1.bf16.msra.mxu0 %v250
    %359 = vmatprep.subr.bf16.mxu0 0
    %360 = vmatpush1.bf16.msra.mxu0 %v249
    %361 = vmatprep.subr.bf16.mxu0 0
    %362 = vmatpush2.bf16.msra.mxu0 0
    %363 = vmatprep.subr.bf16.mxu0 0
    %364 = vmatpush2.bf16.msra.mxu0 0
    %365 = vmatprep.subr.bf16.mxu0 0
    %366 = vmatpush2.bf16.msra.mxu0 0
    %367 = vmatprep.subr.bf16.mxu0 0
    %368 = vmatpush2.bf16.msra.mxu0 0
    %369 = vmatprep.subr.bf16.mxu0 0
    %370 = vmatpush2.bf16.msra.mxu0 0
    %371 = vmatprep.subr.bf16.mxu0 0
    %372 = vmatpush2.bf16.msra.mxu0 0
    %373 = vmatprep.subr.bf16.mxu0 0
    %374 = vmatpush2.bf16.msra.mxu0 0
    %375 = vmatprep.subr.bf16.mxu0 0
    %376 = vmatpush2.bf16.msra.mxu0 0
    %377 = vmatprep.mubr.bf16.mxu0 0
    %378 = vmatmul.mubr.bf16.gmra.mxu0 %v341
    %v379 = vpop.f32.mrf.mxu0
    %v380 = vadd.f32 0.0, %v379
    %v381 = vpop.f32.mrf.mxu0
    %v382 = vpop.f32.mrf.mxu0
    %v383 = vadd.f32 0.0, %v382
    %v384 = vpop.f32.mrf.mxu0
    %385 = vmatprep.mubr.bf16.mxu0 0
    %386 = vmatmul.mubr.bf16.gmra.mxu0 %v342
    %v387 = vpop.f32.mrf.mxu0
    %v388 = vadd.f32 0.0, %v387
    %v389 = vpop.f32.mrf.mxu0
    %v390 = vpop.f32.mrf.mxu0
    %v391 = vadd.f32 0.0, %v390
    %v392 = vpop.f32.mrf.mxu0
    %393 = vdwg.mxu0
    %v394 = vpack.c.bf16 %v383, %v380
    %v395 = vpack.c.bf16 %v391, %v388
    %s396 = scalar_lea.vmem %s4, 16
    %v397 = vld [vmem:[%s396] sm:$0xf]
    %v398 = vld [vmem:[%s396 + $0x4] sm:$0xf]
    %v399 = vld [vmem:[%s396 + $0x8] sm:$0xf]
    %v400 = vld [vmem:[%s396 + $0xc] sm:$0xf]
    %v405 = vunpack.c.l.b16 %v397
    %v406 = vunpack.c.l.b16 %v398
    %v407 = vunpack.c.l.b16 %v399
    %v408 = vunpack.c.l.b16 %v400
    %v409 = vpack.c.b16 %v406, %v405
    %v410 = vpack.c.b16 %v408, %v407
    %vm413 = vcmask 261120
    %v415 = vsel %vm413, %v394, 0
    %v418 = vsel %vm413, %v395, 0
    %420 = vmatprep.subr.bf16.mxu0 0
    %421 = vmatpush1.bf16.msra.mxu0 0
    %422 = vmatprep.subr.bf16.mxu0 0
    %423 = vmatpush1.bf16.msra.mxu0 0
    %424 = vmatprep.subr.bf16.mxu0 0
    %425 = vmatpush1.bf16.msra.mxu0 0
    %426 = vmatprep.subr.bf16.mxu0 0
    %427 = vmatpush1.bf16.msra.mxu0 0
    %428 = vmatprep.subr.bf16.mxu0 0
    %429 = vmatpush1.bf16.msra.mxu0 0
    %430 = vmatprep.subr.bf16.mxu0 0
    %431 = vmatpush1.bf16.msra.mxu0 0
    %432 = vmatprep.subr.bf16.mxu0 0
    %433 = vmatpush1.bf16.msra.mxu0 %v410
    %434 = vmatprep.subr.bf16.mxu0 0
    %435 = vmatpush1.bf16.msra.mxu0 %v409
    %436 = vmatprep.subr.bf16.mxu0 0
    %437 = vmatpush2.bf16.msra.mxu0 0
    %438 = vmatprep.subr.bf16.mxu0 0
    %439 = vmatpush2.bf16.msra.mxu0 0
    %440 = vmatprep.subr.bf16.mxu0 0
    %441 = vmatpush2.bf16.msra.mxu0 0
    %442 = vmatprep.subr.bf16.mxu0 0
    %443 = vmatpush2.bf16.msra.mxu0 0
    %444 = vmatprep.subr.bf16.mxu0 0
    %445 = vmatpush2.bf16.msra.mxu0 0
    %446 = vmatprep.subr.bf16.mxu0 0
    %447 = vmatpush2.bf16.msra.mxu0 0
    %448 = vmatprep.subr.bf16.mxu0 0
    %449 = vmatpush2.bf16.msra.mxu0 0
    %450 = vmatprep.subr.bf16.mxu0 0
    %451 = vmatpush2.bf16.msra.mxu0 0
    %452 = vmatprep.mubr.bf16.mxu0 0
    %453 = vmatmul.mubr.bf16.gmra.mxu0 %v415
    %v454 = vpop.f32.mrf.mxu0
    %v455 = vadd.f32 0.0, %v454
    %v456 = vpop.f32.mrf.mxu0
    %v457 = vpop.f32.mrf.mxu0
    %v458 = vadd.f32 0.0, %v457
    %v459 = vpop.f32.mrf.mxu0
    %460 = vmatprep.mubr.bf16.mxu0 0
    %461 = vmatmul.mubr.bf16.gmra.mxu0 %v418
    %v462 = vpop.f32.mrf.mxu0
    %v463 = vadd.f32 0.0, %v462
    %v464 = vpop.f32.mrf.mxu0
    %v465 = vpop.f32.mrf.mxu0
    %v466 = vadd.f32 0.0, %v465
    %v467 = vpop.f32.mrf.mxu0
    %468 = vdwg.mxu0
    %v473 = vunpack.c.l.b16 %v324
    %v474 = vunpack.c.l.b16 %v325
    %v475 = vunpack.c.l.b16 %v326
    %v476 = vunpack.c.l.b16 %v327
    %v477 = vpack.c.b16 %v474, %v473
    %v478 = vpack.c.b16 %v476, %v475
    %v482 = vsel %vm413, %v322, 0
    %v485 = vsel %vm413, %v323, 0
    %487 = vmatprep.subr.bf16.mxu0 0
    %488 = vmatpush1.bf16.msra.mxu0 0
    %489 = vmatprep.subr.bf16.mxu0 0
    %490 = vmatpush1.bf16.msra.mxu0 0
    %491 = vmatprep.subr.bf16.mxu0 0
    %492 = vmatpush1.bf16.msra.mxu0 0
    %493 = vmatprep.subr.bf16.mxu0 0
    %494 = vmatpush1.bf16.msra.mxu0 0
    %495 = vmatprep.subr.bf16.mxu0 0
    %496 = vmatpush1.bf16.msra.mxu0 0
    %497 = vmatprep.subr.bf16.mxu0 0
    %498 = vmatpush1.bf16.msra.mxu0 0
    %499 = vmatprep.subr.bf16.mxu0 0
    %500 = vmatpush1.bf16.msra.mxu0 %v478
    %501 = vmatprep.subr.bf16.mxu0 0
    %502 = vmatpush1.bf16.msra.mxu0 %v477
    %503 = vmatprep.subr.bf16.mxu0 0
    %504 = vmatpush2.bf16.msra.mxu0 0
    %505 = vmatprep.subr.bf16.mxu0 0
    %506 = vmatpush2.bf16.msra.mxu0 0
    %507 = vmatprep.subr.bf16.mxu0 0
    %508 = vmatpush2.bf16.msra.mxu0 0
    %509 = vmatprep.subr.bf16.mxu0 0
    %510 = vmatpush2.bf16.msra.mxu0 0
    %511 = vmatprep.subr.bf16.mxu0 0
    %512 = vmatpush2.bf16.msra.mxu0 0
    %513 = vmatprep.subr.bf16.mxu0 0
    %514 = vmatpush2.bf16.msra.mxu0 0
    %515 = vmatprep.subr.bf16.mxu0 0
    %516 = vmatpush2.bf16.msra.mxu0 0
    %517 = vmatprep.subr.bf16.mxu0 0
    %518 = vmatpush2.bf16.msra.mxu0 0
    %519 = vmatprep.mubr.bf16.mxu0 0
    %520 = vmatmul.mubr.bf16.gmra.mxu0 %v482
    %v521 = vpop.f32.mrf.mxu0
    %v522 = vadd.f32 %v455, %v521
    %v523 = vpop.f32.mrf.mxu0
    %v524 = vpop.f32.mrf.mxu0
    %v525 = vadd.f32 %v458, %v524
    %v526 = vpop.f32.mrf.mxu0
    %527 = vmatprep.mubr.bf16.mxu0 0
    %528 = vmatmul.mubr.bf16.gmra.mxu0 %v485
    %v529 = vpop.f32.mrf.mxu0
    %v530 = vadd.f32 %v463, %v529
    %v531 = vpop.f32.mrf.mxu0
    %v532 = vpop.f32.mrf.mxu0
    %v533 = vadd.f32 %v466, %v532
    %v534 = vpop.f32.mrf.mxu0
    %535 = vdwg.mxu0
    %s536 = scalar_lea.vmem %s3, 32
    %v537 = vld [vmem:[%s536] sm:$0xf]
    %v538 = vld [vmem:[%s536 + $0x4] sm:$0xf]
    %v539 = vld [vmem:[%s536 + $0x8] sm:$0xf]
    %v540 = vld [vmem:[%s536 + $0xc] sm:$0xf]
    %v545 = vunpack.c.l.b16 %v537
    %v546 = vunpack.c.l.b16 %v538
    %v547 = vunpack.c.l.b16 %v539
    %v548 = vunpack.c.l.b16 %v540
    %v549 = vpack.c.b16 %v546, %v545
    %v550 = vpack.c.b16 %v548, %v547
    %553 = vmatprep.subr.bf16.mxu0 0
    %554 = vmatpush1.bf16.msra.mxu0 %v256
    %555 = vmatprep.subr.bf16.mxu0 0
    %556 = vmatpush1.bf16.msra.mxu0 %v255
    %557 = vmatprep.subr.bf16.mxu0 0
    %558 = vmatpush1.bf16.msra.mxu0 %v254
    %559 = vmatprep.subr.bf16.mxu0 0
    %560 = vmatpush1.bf16.msra.mxu0 %v253
    %561 = vmatprep.subr.bf16.mxu0 0
    %562 = vmatpush1.bf16.msra.mxu0 %v252
    %563 = vmatprep.subr.bf16.mxu0 0
    %564 = vmatpush1.bf16.msra.mxu0 %v251
    %565 = vmatprep.subr.bf16.mxu0 0
    %566 = vmatpush1.bf16.msra.mxu0 %v250
    %567 = vmatprep.subr.bf16.mxu0 0
    %568 = vmatpush1.bf16.msra.mxu0 %v249
    %569 = vmatprep.subr.bf16.mxu0 0
    %570 = vmatpush2.bf16.msra.mxu0 0
    %571 = vmatprep.subr.bf16.mxu0 0
    %572 = vmatpush2.bf16.msra.mxu0 0
    %573 = vmatprep.subr.bf16.mxu0 0
    %574 = vmatpush2.bf16.msra.mxu0 0
    %575 = vmatprep.subr.bf16.mxu0 0
    %576 = vmatpush2.bf16.msra.mxu0 0
    %577 = vmatprep.subr.bf16.mxu0 0
    %578 = vmatpush2.bf16.msra.mxu0 0
    %579 = vmatprep.subr.bf16.mxu0 0
    %580 = vmatpush2.bf16.msra.mxu0 0
    %581 = vmatprep.subr.bf16.mxu0 0
    %582 = vmatpush2.bf16.msra.mxu0 0
    %583 = vmatprep.subr.bf16.mxu0 0
    %584 = vmatpush2.bf16.msra.mxu0 0
    %585 = vmatprep.mubr.bf16.mxu0 0
    %586 = vmatmul.mubr.bf16.gmra.mxu0 %v549
    %v587 = vpop.f32.mrf.mxu0
    %v588 = vadd.f32 0.0, %v587
    %v589 = vpop.f32.mrf.mxu0
    %v590 = vpop.f32.mrf.mxu0
    %v591 = vadd.f32 0.0, %v590
    %v592 = vpop.f32.mrf.mxu0
    %593 = vmatprep.mubr.bf16.mxu0 0
    %594 = vmatmul.mubr.bf16.gmra.mxu0 %v550
    %v595 = vpop.f32.mrf.mxu0
    %v596 = vadd.f32 0.0, %v595
    %v597 = vpop.f32.mrf.mxu0
    %v598 = vpop.f32.mrf.mxu0
    %v599 = vadd.f32 0.0, %v598
    %v600 = vpop.f32.mrf.mxu0
    %601 = vdwg.mxu0
    %v602 = vpack.c.bf16 %v591, %v588
    %v603 = vpack.c.bf16 %v599, %v596
    %s604 = scalar_lea.vmem %s4, 32
    %v605 = vld [vmem:[%s604] sm:$0xf]
    %v606 = vld [vmem:[%s604 + $0x4] sm:$0xf]
    %v607 = vld [vmem:[%s604 + $0x8] sm:$0xf]
    %v608 = vld [vmem:[%s604 + $0xc] sm:$0xf]
    %v613 = vunpack.c.l.b16 %v605
    %v614 = vunpack.c.l.b16 %v606
    %v615 = vunpack.c.l.b16 %v607
    %v616 = vunpack.c.l.b16 %v608
    %v617 = vpack.c.b16 %v614, %v613
    %v618 = vpack.c.b16 %v616, %v615
    %v622 = vsel %vm413, %v602, 0
    %v625 = vsel %vm413, %v603, 0
    %627 = vmatprep.subr.bf16.mxu0 0
    %628 = vmatpush1.bf16.msra.mxu0 0
    %629 = vmatprep.subr.bf16.mxu0 0
    %630 = vmatpush1.bf16.msra.mxu0 0
    %631 = vmatprep.subr.bf16.mxu0 0
    %632 = vmatpush1.bf16.msra.mxu0 0
    %633 = vmatprep.subr.bf16.mxu0 0
    %634 = vmatpush1.bf16.msra.mxu0 0
    %635 = vmatprep.subr.bf16.mxu0 0
    %636 = vmatpush1.bf16.msra.mxu0 0
    %637 = vmatprep.subr.bf16.mxu0 0
    %638 = vmatpush1.bf16.msra.mxu0 0
    %639 = vmatprep.subr.bf16.mxu0 0
    %640 = vmatpush1.bf16.msra.mxu0 %v618
    %641 = vmatprep.subr.bf16.mxu0 0
    %642 = vmatpush1.bf16.msra.mxu0 %v617
    %643 = vmatprep.subr.bf16.mxu0 0
    %644 = vmatpush2.bf16.msra.mxu0 0
    %645 = vmatprep.subr.bf16.mxu0 0
    %646 = vmatpush2.bf16.msra.mxu0 0
    %647 = vmatprep.subr.bf16.mxu0 0
    %648 = vmatpush2.bf16.msra.mxu0 0
    %649 = vmatprep.subr.bf16.mxu0 0
    %650 = vmatpush2.bf16.msra.mxu0 0
    %651 = vmatprep.subr.bf16.mxu0 0
    %652 = vmatpush2.bf16.msra.mxu0 0
    %653 = vmatprep.subr.bf16.mxu0 0
    %654 = vmatpush2.bf16.msra.mxu0 0
    %655 = vmatprep.subr.bf16.mxu0 0
    %656 = vmatpush2.bf16.msra.mxu0 0
    %657 = vmatprep.subr.bf16.mxu0 0
    %658 = vmatpush2.bf16.msra.mxu0 0
    %659 = vmatprep.mubr.bf16.mxu0 0
    %660 = vmatmul.mubr.bf16.gmra.mxu0 %v622
    %v661 = vpop.f32.mrf.mxu0
    %v662 = vadd.f32 0.0, %v661
    %v663 = vpop.f32.mrf.mxu0
    %v664 = vpop.f32.mrf.mxu0
    %v665 = vadd.f32 0.0, %v664
    %v666 = vpop.f32.mrf.mxu0
    %667 = vmatprep.mubr.bf16.mxu0 0
    %668 = vmatmul.mubr.bf16.gmra.mxu0 %v625
    %v669 = vpop.f32.mrf.mxu0
    %v670 = vadd.f32 0.0, %v669
    %v671 = vpop.f32.mrf.mxu0
    %v672 = vpop.f32.mrf.mxu0
    %v673 = vadd.f32 0.0, %v672
    %v674 = vpop.f32.mrf.mxu0
    %675 = vdwg.mxu0
    %v676 = vadd.f32 %v522, %v662
    %v677 = vadd.f32 %v525, %v665
    %v678 = vadd.f32 %v530, %v670
    %v679 = vadd.f32 %v533, %v673
    %s680 = scalar_lea.vmem %s3, 48
    %v681 = vld [vmem:[%s680] sm:$0xf]
    %v682 = vld [vmem:[%s680 + $0x4] sm:$0xf]
    %v683 = vld [vmem:[%s680 + $0x8] sm:$0xf]
    %v684 = vld [vmem:[%s680 + $0xc] sm:$0xf]
    %v689 = vunpack.c.l.b16 %v681
    %v690 = vunpack.c.l.b16 %v682
    %v691 = vunpack.c.l.b16 %v683
    %v692 = vunpack.c.l.b16 %v684
    %v693 = vpack.c.b16 %v690, %v689
    %v694 = vpack.c.b16 %v692, %v691
    %697 = vmatprep.subr.bf16.mxu0 0
    %698 = vmatpush1.bf16.msra.mxu0 %v256
    %699 = vmatprep.subr.bf16.mxu0 0
    %700 = vmatpush1.bf16.msra.mxu0 %v255
    %701 = vmatprep.subr.bf16.mxu0 0
    %702 = vmatpush1.bf16.msra.mxu0 %v254
    %703 = vmatprep.subr.bf16.mxu0 0
    %704 = vmatpush1.bf16.msra.mxu0 %v253
    %705 = vmatprep.subr.bf16.mxu0 0
    %706 = vmatpush1.bf16.msra.mxu0 %v252
    %707 = vmatprep.subr.bf16.mxu0 0
    %708 = vmatpush1.bf16.msra.mxu0 %v251
    %709 = vmatprep.subr.bf16.mxu0 0
    %710 = vmatpush1.bf16.msra.mxu0 %v250
    %711 = vmatprep.subr.bf16.mxu0 0
    %712 = vmatpush1.bf16.msra.mxu0 %v249
    %713 = vmatprep.subr.bf16.mxu0 0
    %714 = vmatpush2.bf16.msra.mxu0 0
    %715 = vmatprep.subr.bf16.mxu0 0
    %716 = vmatpush2.bf16.msra.mxu0 0
    %717 = vmatprep.subr.bf16.mxu0 0
    %718 = vmatpush2.bf16.msra.mxu0 0
    %719 = vmatprep.subr.bf16.mxu0 0
    %720 = vmatpush2.bf16.msra.mxu0 0
    %721 = vmatprep.subr.bf16.mxu0 0
    %722 = vmatpush2.bf16.msra.mxu0 0
    %723 = vmatprep.subr.bf16.mxu0 0
    %724 = vmatpush2.bf16.msra.mxu0 0
    %725 = vmatprep.subr.bf16.mxu0 0
    %726 = vmatpush2.bf16.msra.mxu0 0
    %727 = vmatprep.subr.bf16.mxu0 0
    %728 = vmatpush2.bf16.msra.mxu0 0
    %729 = vmatprep.mubr.bf16.mxu0 0
    %730 = vmatmul.mubr.bf16.gmra.mxu0 %v693
    %v731 = vpop.f32.mrf.mxu0
    %v732 = vadd.f32 0.0, %v731
    %v733 = vpop.f32.mrf.mxu0
    %v734 = vpop.f32.mrf.mxu0
    %v735 = vadd.f32 0.0, %v734
    %v736 = vpop.f32.mrf.mxu0
    %737 = vmatprep.mubr.bf16.mxu0 0
    %738 = vmatmul.mubr.bf16.gmra.mxu0 %v694
    %v739 = vpop.f32.mrf.mxu0
    %v740 = vadd.f32 0.0, %v739
    %v741 = vpop.f32.mrf.mxu0
    %v742 = vpop.f32.mrf.mxu0
    %v743 = vadd.f32 0.0, %v742
    %v744 = vpop.f32.mrf.mxu0
    %745 = vdwg.mxu0
    %v746 = vpack.c.bf16 %v735, %v732
    %v747 = vpack.c.bf16 %v743, %v740
    %s748 = scalar_lea.vmem %s4, 48
    %v749 = vld [vmem:[%s748] sm:$0xf]
    %v750 = vld [vmem:[%s748 + $0x4] sm:$0xf]
    %v751 = vld [vmem:[%s748 + $0x8] sm:$0xf]
    %v752 = vld [vmem:[%s748 + $0xc] sm:$0xf]
    %v757 = vunpack.c.l.b16 %v749
    %v758 = vunpack.c.l.b16 %v750
    %v759 = vunpack.c.l.b16 %v751
    %v760 = vunpack.c.l.b16 %v752
    %v761 = vpack.c.b16 %v758, %v757
    %v762 = vpack.c.b16 %v760, %v759
    %v766 = vsel %vm413, %v746, 0
    %v769 = vsel %vm413, %v747, 0
    %771 = vmatprep.subr.bf16.mxu0 0
    %772 = vmatpush1.bf16.msra.mxu0 0
    %773 = vmatprep.subr.bf16.mxu0 0
    %774 = vmatpush1.bf16.msra.mxu0 0
    %775 = vmatprep.subr.bf16.mxu0 0
    %776 = vmatpush1.bf16.msra.mxu0 0
    %777 = vmatprep.subr.bf16.mxu0 0
    %778 = vmatpush1.bf16.msra.mxu0 0
    %779 = vmatprep.subr.bf16.mxu0 0
    %780 = vmatpush1.bf16.msra.mxu0 0
    %781 = vmatprep.subr.bf16.mxu0 0
    %782 = vmatpush1.bf16.msra.mxu0 0
    %783 = vmatprep.subr.bf16.mxu0 0
    %784 = vmatpush1.bf16.msra.mxu0 %v762
    %785 = vmatprep.subr.bf16.mxu0 0
    %786 = vmatpush1.bf16.msra.mxu0 %v761
    %787 = vmatprep.subr.bf16.mxu0 0
    %788 = vmatpush2.bf16.msra.mxu0 0
    %789 = vmatprep.subr.bf16.mxu0 0
    %790 = vmatpush2.bf16.msra.mxu0 0
    %791 = vmatprep.subr.bf16.mxu0 0
    %792 = vmatpush2.bf16.msra.mxu0 0
    %793 = vmatprep.subr.bf16.mxu0 0
    %794 = vmatpush2.bf16.msra.mxu0 0
    %795 = vmatprep.subr.bf16.mxu0 0
    %796 = vmatpush2.bf16.msra.mxu0 0
    %797 = vmatprep.subr.bf16.mxu0 0
    %798 = vmatpush2.bf16.msra.mxu0 0
    %799 = vmatprep.subr.bf16.mxu0 0
    %800 = vmatpush2.bf16.msra.mxu0 0
    %801 = vmatprep.subr.bf16.mxu0 0
    %802 = vmatpush2.bf16.msra.mxu0 0
    %803 = vmatprep.mubr.bf16.mxu0 0
    %804 = vmatmul.mubr.bf16.gmra.mxu0 %v766
    %v805 = vpop.f32.mrf.mxu0
    %v806 = vadd.f32 0.0, %v805
    %v807 = vpop.f32.mrf.mxu0
    %v808 = vpop.f32.mrf.mxu0
    %v809 = vadd.f32 0.0, %v808
    %v810 = vpop.f32.mrf.mxu0
    %811 = vmatprep.mubr.bf16.mxu0 0
    %812 = vmatmul.mubr.bf16.gmra.mxu0 %v769
    %v813 = vpop.f32.mrf.mxu0
    %v814 = vadd.f32 0.0, %v813
    %v815 = vpop.f32.mrf.mxu0
    %v816 = vpop.f32.mrf.mxu0
    %v817 = vadd.f32 0.0, %v816
    %v818 = vpop.f32.mrf.mxu0
    %819 = vdwg.mxu0
    %v820 = vadd.f32 %v676, %v806
    %v821 = vadd.f32 %v677, %v809
    %v822 = vadd.f32 %v678, %v814
    %v823 = vadd.f32 %v679, %v817
    %s824 = scalar_lea.vmem %s3, 64
    %v825 = vld [vmem:[%s824] sm:$0xf]
    %v826 = vld [vmem:[%s824 + $0x4] sm:$0xf]
    %v827 = vld [vmem:[%s824 + $0x8] sm:$0xf]
    %v828 = vld [vmem:[%s824 + $0xc] sm:$0xf]
    %v833 = vunpack.c.l.b16 %v825
    %v834 = vunpack.c.l.b16 %v826
    %v835 = vunpack.c.l.b16 %v827
    %v836 = vunpack.c.l.b16 %v828
    %v837 = vpack.c.b16 %v834, %v833
    %v838 = vpack.c.b16 %v836, %v835
    %841 = vmatprep.subr.bf16.mxu0 0
    %842 = vmatpush1.bf16.msra.mxu0 %v256
    %843 = vmatprep.subr.bf16.mxu0 0
    %844 = vmatpush1.bf16.msra.mxu0 %v255
    %845 = vmatprep.subr.bf16.mxu0 0
    %846 = vmatpush1.bf16.msra.mxu0 %v254
    %847 = vmatprep.subr.bf16.mxu0 0
    %848 = vmatpush1.bf16.msra.mxu0 %v253
    %849 = vmatprep.subr.bf16.mxu0 0
    %850 = vmatpush1.bf16.msra.mxu0 %v252
    %851 = vmatprep.subr.bf16.mxu0 0
    %852 = vmatpush1.bf16.msra.mxu0 %v251
    %853 = vmatprep.subr.bf16.mxu0 0
    %854 = vmatpush1.bf16.msra.mxu0 %v250
    %855 = vmatprep.subr.bf16.mxu0 0
    %856 = vmatpush1.bf16.msra.mxu0 %v249
    %857 = vmatprep.subr.bf16.mxu0 0
    %858 = vmatpush2.bf16.msra.mxu0 0
    %859 = vmatprep.subr.bf16.mxu0 0
    %860 = vmatpush2.bf16.msra.mxu0 0
    %861 = vmatprep.subr.bf16.mxu0 0
    %862 = vmatpush2.bf16.msra.mxu0 0
    %863 = vmatprep.subr.bf16.mxu0 0
    %864 = vmatpush2.bf16.msra.mxu0 0
    %865 = vmatprep.subr.bf16.mxu0 0
    %866 = vmatpush2.bf16.msra.mxu0 0
    %867 = vmatprep.subr.bf16.mxu0 0
    %868 = vmatpush2.bf16.msra.mxu0 0
    %869 = vmatprep.subr.bf16.mxu0 0
    %870 = vmatpush2.bf16.msra.mxu0 0
    %871 = vmatprep.subr.bf16.mxu0 0
    %872 = vmatpush2.bf16.msra.mxu0 0
    %873 = vmatprep.mubr.bf16.mxu0 0
    %874 = vmatmul.mubr.bf16.gmra.mxu0 %v837
    %v875 = vpop.f32.mrf.mxu0
    %v876 = vadd.f32 0.0, %v875
    %v877 = vpop.f32.mrf.mxu0
    %v878 = vpop.f32.mrf.mxu0
    %v879 = vadd.f32 0.0, %v878
    %v880 = vpop.f32.mrf.mxu0
    %881 = vmatprep.mubr.bf16.mxu0 0
    %882 = vmatmul.mubr.bf16.gmra.mxu0 %v838
    %v883 = vpop.f32.mrf.mxu0
    %v884 = vadd.f32 0.0, %v883
    %v885 = vpop.f32.mrf.mxu0
    %v886 = vpop.f32.mrf.mxu0
    %v887 = vadd.f32 0.0, %v886
    %v888 = vpop.f32.mrf.mxu0
    %889 = vdwg.mxu0
    %v890 = vpack.c.bf16 %v879, %v876
    %v891 = vpack.c.bf16 %v887, %v884
    %s892 = scalar_lea.vmem %s4, 64
    %v893 = vld [vmem:[%s892] sm:$0xf]
    %v894 = vld [vmem:[%s892 + $0x4] sm:$0xf]
    %v895 = vld [vmem:[%s892 + $0x8] sm:$0xf]
    %v896 = vld [vmem:[%s892 + $0xc] sm:$0xf]
    %v901 = vunpack.c.l.b16 %v893
    %v902 = vunpack.c.l.b16 %v894
    %v903 = vunpack.c.l.b16 %v895
    %v904 = vunpack.c.l.b16 %v896
    %v905 = vpack.c.b16 %v902, %v901
    %v906 = vpack.c.b16 %v904, %v903
    %v910 = vsel %vm413, %v890, 0
    %v913 = vsel %vm413, %v891, 0
    %915 = vmatprep.subr.bf16.mxu0 0
    %916 = vmatpush1.bf16.msra.mxu0 0
    %917 = vmatprep.subr.bf16.mxu0 0
    %918 = vmatpush1.bf16.msra.mxu0 0
    %919 = vmatprep.subr.bf16.mxu0 0
    %920 = vmatpush1.bf16.msra.mxu0 0
    %921 = vmatprep.subr.bf16.mxu0 0
    %922 = vmatpush1.bf16.msra.mxu0 0
    %923 = vmatprep.subr.bf16.mxu0 0
    %924 = vmatpush1.bf16.msra.mxu0 0
    %925 = vmatprep.subr.bf16.mxu0 0
    %926 = vmatpush1.bf16.msra.mxu0 0
    %927 = vmatprep.subr.bf16.mxu0 0
    %928 = vmatpush1.bf16.msra.mxu0 %v906
    %929 = vmatprep.subr.bf16.mxu0 0
    %930 = vmatpush1.bf16.msra.mxu0 %v905
    %931 = vmatprep.subr.bf16.mxu0 0
    %932 = vmatpush2.bf16.msra.mxu0 0
    %933 = vmatprep.subr.bf16.mxu0 0
    %934 = vmatpush2.bf16.msra.mxu0 0
    %935 = vmatprep.subr.bf16.mxu0 0
    %936 = vmatpush2.bf16.msra.mxu0 0
    %937 = vmatprep.subr.bf16.mxu0 0
    %938 = vmatpush2.bf16.msra.mxu0 0
    %939 = vmatprep.subr.bf16.mxu0 0
    %940 = vmatpush2.bf16.msra.mxu0 0
    %941 = vmatprep.subr.bf16.mxu0 0
    %942 = vmatpush2.bf16.msra.mxu0 0
    %943 = vmatprep.subr.bf16.mxu0 0
    %944 = vmatpush2.bf16.msra.mxu0 0
    %945 = vmatprep.subr.bf16.mxu0 0
    %946 = vmatpush2.bf16.msra.mxu0 0
    %947 = vmatprep.mubr.bf16.mxu0 0
    %948 = vmatmul.mubr.bf16.gmra.mxu0 %v910
    %v949 = vpop.f32.mrf.mxu0
    %v950 = vadd.f32 0.0, %v949
    %v951 = vpop.f32.mrf.mxu0
    %v952 = vpop.f32.mrf.mxu0
    %v953 = vadd.f32 0.0, %v952
    %v954 = vpop.f32.mrf.mxu0
    %955 = vmatprep.mubr.bf16.mxu0 0
    %956 = vmatmul.mubr.bf16.gmra.mxu0 %v913
    %v957 = vpop.f32.mrf.mxu0
    %v958 = vadd.f32 0.0, %v957
    %v959 = vpop.f32.mrf.mxu0
    %v960 = vpop.f32.mrf.mxu0
    %v961 = vadd.f32 0.0, %v960
    %v962 = vpop.f32.mrf.mxu0
    %963 = vdwg.mxu0
    %v964 = vadd.f32 %v820, %v950
    %v965 = vadd.f32 %v821, %v953
    %v966 = vadd.f32 %v822, %v958
    %v967 = vadd.f32 %v823, %v961
    %s968 = scalar_lea.vmem %s3, 80
    %v969 = vld [vmem:[%s968] sm:$0xf]
    %v970 = vld [vmem:[%s968 + $0x4] sm:$0xf]
    %v971 = vld [vmem:[%s968 + $0x8] sm:$0xf]
    %v972 = vld [vmem:[%s968 + $0xc] sm:$0xf]
    %v977 = vunpack.c.l.b16 %v969
    %v978 = vunpack.c.l.b16 %v970
    %v979 = vunpack.c.l.b16 %v971
    %v980 = vunpack.c.l.b16 %v972
    %v981 = vpack.c.b16 %v978, %v977
    %v982 = vpack.c.b16 %v980, %v979
    %985 = vmatprep.subr.bf16.mxu0 0
    %986 = vmatpush1.bf16.msra.mxu0 %v256
    %987 = vmatprep.subr.bf16.mxu0 0
    %988 = vmatpush1.bf16.msra.mxu0 %v255
    %989 = vmatprep.subr.bf16.mxu0 0
    %990 = vmatpush1.bf16.msra.mxu0 %v254
    %991 = vmatprep.subr.bf16.mxu0 0
    %992 = vmatpush1.bf16.msra.mxu0 %v253
    %993 = vmatprep.subr.bf16.mxu0 0
    %994 = vmatpush1.bf16.msra.mxu0 %v252
    %995 = vmatprep.subr.bf16.mxu0 0
    %996 = vmatpush1.bf16.msra.mxu0 %v251
    %997 = vmatprep.subr.bf16.mxu0 0
    %998 = vmatpush1.bf16.msra.mxu0 %v250
    %999 = vmatprep.subr.bf16.mxu0 0
    %1000 = vmatpush1.bf16.msra.mxu0 %v249
    %1001 = vmatprep.subr.bf16.mxu0 0
    %1002 = vmatpush2.bf16.msra.mxu0 0
    %1003 = vmatprep.subr.bf16.mxu0 0
    %1004 = vmatpush2.bf16.msra.mxu0 0
    %1005 = vmatprep.subr.bf16.mxu0 0
    %1006 = vmatpush2.bf16.msra.mxu0 0
    %1007 = vmatprep.subr.bf16.mxu0 0
    %1008 = vmatpush2.bf16.msra.mxu0 0
    %1009 = vmatprep.subr.bf16.mxu0 0
    %1010 = vmatpush2.bf16.msra.mxu0 0
    %1011 = vmatprep.subr.bf16.mxu0 0
    %1012 = vmatpush2.bf16.msra.mxu0 0
    %1013 = vmatprep.subr.bf16.mxu0 0
    %1014 = vmatpush2.bf16.msra.mxu0 0
    %1015 = vmatprep.subr.bf16.mxu0 0
    %1016 = vmatpush2.bf16.msra.mxu0 0
    %1017 = vmatprep.mubr.bf16.mxu0 0
    %1018 = vmatmul.mubr.bf16.gmra.mxu0 %v981
    %v1019 = vpop.f32.mrf.mxu0
    %v1020 = vadd.f32 0.0, %v1019
    %v1021 = vpop.f32.mrf.mxu0
    %v1022 = vpop.f32.mrf.mxu0
    %v1023 = vadd.f32 0.0, %v1022
    %v1024 = vpop.f32.mrf.mxu0
    %1025 = vmatprep.mubr.bf16.mxu0 0
    %1026 = vmatmul.mubr.bf16.gmra.mxu0 %v982
    %v1027 = vpop.f32.mrf.mxu0
    %v1028 = vadd.f32 0.0, %v1027
    %v1029 = vpop.f32.mrf.mxu0
    %v1030 = vpop.f32.mrf.mxu0
    %v1031 = vadd.f32 0.0, %v1030
    %v1032 = vpop.f32.mrf.mxu0
    %1033 = vdwg.mxu0
    %v1034 = vpack.c.bf16 %v1023, %v1020
    %v1035 = vpack.c.bf16 %v1031, %v1028
    %s1036 = scalar_lea.vmem %s4, 80
    %v1037 = vld [vmem:[%s1036] sm:$0xf]
    %v1038 = vld [vmem:[%s1036 + $0x4] sm:$0xf]
    %v1039 = vld [vmem:[%s1036 + $0x8] sm:$0xf]
    %v1040 = vld [vmem:[%s1036 + $0xc] sm:$0xf]
    %v1045 = vunpack.c.l.b16 %v1037
    %v1046 = vunpack.c.l.b16 %v1038
    %v1047 = vunpack.c.l.b16 %v1039
    %v1048 = vunpack.c.l.b16 %v1040
    %v1049 = vpack.c.b16 %v1046, %v1045
    %v1050 = vpack.c.b16 %v1048, %v1047
    %v1054 = vsel %vm413, %v1034, 0
    %v1057 = vsel %vm413, %v1035, 0
    %1059 = vmatprep.subr.bf16.mxu0 0
    %1060 = vmatpush1.bf16.msra.mxu0 0
    %1061 = vmatprep.subr.bf16.mxu0 0
    %1062 = vmatpush1.bf16.msra.mxu0 0
    %1063 = vmatprep.subr.bf16.mxu0 0
    %1064 = vmatpush1.bf16.msra.mxu0 0
    %1065 = vmatprep.subr.bf16.mxu0 0
    %1066 = vmatpush1.bf16.msra.mxu0 0
    %1067 = vmatprep.subr.bf16.mxu0 0
    %1068 = vmatpush1.bf16.msra.mxu0 0
    %1069 = vmatprep.subr.bf16.mxu0 0
    %1070 = vmatpush1.bf16.msra.mxu0 0
    %1071 = vmatprep.subr.bf16.mxu0 0
    %1072 = vmatpush1.bf16.msra.mxu0 %v1050
    %1073 = vmatprep.subr.bf16.mxu0 0
    %1074 = vmatpush1.bf16.msra.mxu0 %v1049
    %1075 = vmatprep.subr.bf16.mxu0 0
    %1076 = vmatpush2.bf16.msra.mxu0 0
    %1077 = vmatprep.subr.bf16.mxu0 0
    %1078 = vmatpush2.bf16.msra.mxu0 0
    %1079 = vmatprep.subr.bf16.mxu0 0
    %1080 = vmatpush2.bf16.msra.mxu0 0
    %1081 = vmatprep.subr.bf16.mxu0 0
    %1082 = vmatpush2.bf16.msra.mxu0 0
    %1083 = vmatprep.subr.bf16.mxu0 0
    %1084 = vmatpush2.bf16.msra.mxu0 0
    %1085 = vmatprep.subr.bf16.mxu0 0
    %1086 = vmatpush2.bf16.msra.mxu0 0
    %1087 = vmatprep.subr.bf16.mxu0 0
    %1088 = vmatpush2.bf16.msra.mxu0 0
    %1089 = vmatprep.subr.bf16.mxu0 0
    %1090 = vmatpush2.bf16.msra.mxu0 0
    %1091 = vmatprep.mubr.bf16.mxu0 0
    %1092 = vmatmul.mubr.bf16.gmra.mxu0 %v1054
    %v1093 = vpop.f32.mrf.mxu0
    %v1094 = vadd.f32 0.0, %v1093
    %v1095 = vpop.f32.mrf.mxu0
    %v1096 = vpop.f32.mrf.mxu0
    %v1097 = vadd.f32 0.0, %v1096
    %v1098 = vpop.f32.mrf.mxu0
    %1099 = vmatprep.mubr.bf16.mxu0 0
    %1100 = vmatmul.mubr.bf16.gmra.mxu0 %v1057
    %v1101 = vpop.f32.mrf.mxu0
    %v1102 = vadd.f32 0.0, %v1101
    %v1103 = vpop.f32.mrf.mxu0
    %v1104 = vpop.f32.mrf.mxu0
    %v1105 = vadd.f32 0.0, %v1104
    %v1106 = vpop.f32.mrf.mxu0
    %1107 = vdwg.mxu0
    %v1108 = vadd.f32 %v964, %v1094
    %v1109 = vadd.f32 %v965, %v1097
    %v1110 = vadd.f32 %v966, %v1102
    %v1111 = vadd.f32 %v967, %v1105
    %s1112 = scalar_lea.vmem %s3, 96
    %v1113 = vld [vmem:[%s1112] sm:$0xf]
    %v1114 = vld [vmem:[%s1112 + $0x4] sm:$0xf]
    %v1115 = vld [vmem:[%s1112 + $0x8] sm:$0xf]
    %v1116 = vld [vmem:[%s1112 + $0xc] sm:$0xf]
    %v1121 = vunpack.c.l.b16 %v1113
    %v1122 = vunpack.c.l.b16 %v1114
    %v1123 = vunpack.c.l.b16 %v1115
    %v1124 = vunpack.c.l.b16 %v1116
    %v1125 = vpack.c.b16 %v1122, %v1121
    %v1126 = vpack.c.b16 %v1124, %v1123
    %1129 = vmatprep.subr.bf16.mxu0 0
    %1130 = vmatpush1.bf16.msra.mxu0 %v256
    %1131 = vmatprep.subr.bf16.mxu0 0
    %1132 = vmatpush1.bf16.msra.mxu0 %v255
    %1133 = vmatprep.subr.bf16.mxu0 0
    %1134 = vmatpush1.bf16.msra.mxu0 %v254
    %1135 = vmatprep.subr.bf16.mxu0 0
    %1136 = vmatpush1.bf16.msra.mxu0 %v253
    %1137 = vmatprep.subr.bf16.mxu0 0
    %1138 = vmatpush1.bf16.msra.mxu0 %v252
    %1139 = vmatprep.subr.bf16.mxu0 0
    %1140 = vmatpush1.bf16.msra.mxu0 %v251
    %1141 = vmatprep.subr.bf16.mxu0 0
    %1142 = vmatpush1.bf16.msra.mxu0 %v250
    %1143 = vmatprep.subr.bf16.mxu0 0
    %1144 = vmatpush1.bf16.msra.mxu0 %v249
    %1145 = vmatprep.subr.bf16.mxu0 0
    %1146 = vmatpush2.bf16.msra.mxu0 0
    %1147 = vmatprep.subr.bf16.mxu0 0
    %1148 = vmatpush2.bf16.msra.mxu0 0
    %1149 = vmatprep.subr.bf16.mxu0 0
    %1150 = vmatpush2.bf16.msra.mxu0 0
    %1151 = vmatprep.subr.bf16.mxu0 0
    %1152 = vmatpush2.bf16.msra.mxu0 0
    %1153 = vmatprep.subr.bf16.mxu0 0
    %1154 = vmatpush2.bf16.msra.mxu0 0
    %1155 = vmatprep.subr.bf16.mxu0 0
    %1156 = vmatpush2.bf16.msra.mxu0 0
    %1157 = vmatprep.subr.bf16.mxu0 0
    %1158 = vmatpush2.bf16.msra.mxu0 0
    %1159 = vmatprep.subr.bf16.mxu0 0
    %1160 = vmatpush2.bf16.msra.mxu0 0
    %1161 = vmatprep.mubr.bf16.mxu0 0
    %1162 = vmatmul.mubr.bf16.gmra.mxu0 %v1125
    %v1163 = vpop.f32.mrf.mxu0
    %v1164 = vadd.f32 0.0, %v1163
    %v1165 = vpop.f32.mrf.mxu0
    %v1166 = vpop.f32.mrf.mxu0
    %v1167 = vadd.f32 0.0, %v1166
    %v1168 = vpop.f32.mrf.mxu0
    %1169 = vmatprep.mubr.bf16.mxu0 0
    %1170 = vmatmul.mubr.bf16.gmra.mxu0 %v1126
    %v1171 = vpop.f32.mrf.mxu0
    %v1172 = vadd.f32 0.0, %v1171
    %v1173 = vpop.f32.mrf.mxu0
    %v1174 = vpop.f32.mrf.mxu0
    %v1175 = vadd.f32 0.0, %v1174
    %v1176 = vpop.f32.mrf.mxu0
    %1177 = vdwg.mxu0
    %v1178 = vpack.c.bf16 %v1167, %v1164
    %v1179 = vpack.c.bf16 %v1175, %v1172
    %s1180 = scalar_lea.vmem %s4, 96
    %v1181 = vld [vmem:[%s1180] sm:$0xf]
    %v1182 = vld [vmem:[%s1180 + $0x4] sm:$0xf]
    %v1183 = vld [vmem:[%s1180 + $0x8] sm:$0xf]
    %v1184 = vld [vmem:[%s1180 + $0xc] sm:$0xf]
    %v1189 = vunpack.c.l.b16 %v1181
    %v1190 = vunpack.c.l.b16 %v1182
    %v1191 = vunpack.c.l.b16 %v1183
    %v1192 = vunpack.c.l.b16 %v1184
    %v1193 = vpack.c.b16 %v1190, %v1189
    %v1194 = vpack.c.b16 %v1192, %v1191
    %v1198 = vsel %vm413, %v1178, 0
    %v1201 = vsel %vm413, %v1179, 0
    %1203 = vmatprep.subr.bf16.mxu0 0
    %1204 = vmatpush1.bf16.msra.mxu0 0
    %1205 = vmatprep.subr.bf16.mxu0 0
    %1206 = vmatpush1.bf16.msra.mxu0 0
    %1207 = vmatprep.subr.bf16.mxu0 0
    %1208 = vmatpush1.bf16.msra.mxu0 0
    %1209 = vmatprep.subr.bf16.mxu0 0
    %1210 = vmatpush1.bf16.msra.mxu0 0
    %1211 = vmatprep.subr.bf16.mxu0 0
    %1212 = vmatpush1.bf16.msra.mxu0 0
    %1213 = vmatprep.subr.bf16.mxu0 0
    %1214 = vmatpush1.bf16.msra.mxu0 0
    %1215 = vmatprep.subr.bf16.mxu0 0
    %1216 = vmatpush1.bf16.msra.mxu0 %v1194
    %1217 = vmatprep.subr.bf16.mxu0 0
    %1218 = vmatpush1.bf16.msra.mxu0 %v1193
    %1219 = vmatprep.subr.bf16.mxu0 0
    %1220 = vmatpush2.bf16.msra.mxu0 0
    %1221 = vmatprep.subr.bf16.mxu0 0
    %1222 = vmatpush2.bf16.msra.mxu0 0
    %1223 = vmatprep.subr.bf16.mxu0 0
    %1224 = vmatpush2.bf16.msra.mxu0 0
    %1225 = vmatprep.subr.bf16.mxu0 0
    %1226 = vmatpush2.bf16.msra.mxu0 0
    %1227 = vmatprep.subr.bf16.mxu0 0
    %1228 = vmatpush2.bf16.msra.mxu0 0
    %1229 = vmatprep.subr.bf16.mxu0 0
    %1230 = vmatpush2.bf16.msra.mxu0 0
    %1231 = vmatprep.subr.bf16.mxu0 0
    %1232 = vmatpush2.bf16.msra.mxu0 0
    %1233 = vmatprep.subr.bf16.mxu0 0
    %1234 = vmatpush2.bf16.msra.mxu0 0
    %1235 = vmatprep.mubr.bf16.mxu0 0
    %1236 = vmatmul.mubr.bf16.gmra.mxu0 %v1198
    %v1237 = vpop.f32.mrf.mxu0
    %v1238 = vadd.f32 0.0, %v1237
    %v1239 = vpop.f32.mrf.mxu0
    %v1240 = vpop.f32.mrf.mxu0
    %v1241 = vadd.f32 0.0, %v1240
    %v1242 = vpop.f32.mrf.mxu0
    %1243 = vmatprep.mubr.bf16.mxu0 0
    %1244 = vmatmul.mubr.bf16.gmra.mxu0 %v1201
    %v1245 = vpop.f32.mrf.mxu0
    %v1246 = vadd.f32 0.0, %v1245
    %v1247 = vpop.f32.mrf.mxu0
    %v1248 = vpop.f32.mrf.mxu0
    %v1249 = vadd.f32 0.0, %v1248
    %v1250 = vpop.f32.mrf.mxu0
    %1251 = vdwg.mxu0
    %v1252 = vadd.f32 %v1108, %v1238
    %v1253 = vadd.f32 %v1109, %v1241
    %v1254 = vadd.f32 %v1110, %v1246
    %v1255 = vadd.f32 %v1111, %v1249
    %s1256 = scalar_lea.vmem %s3, 112
    %v1257 = vld [vmem:[%s1256] sm:$0xf]
    %v1258 = vld [vmem:[%s1256 + $0x4] sm:$0xf]
    %v1259 = vld [vmem:[%s1256 + $0x8] sm:$0xf]
    %v1260 = vld [vmem:[%s1256 + $0xc] sm:$0xf]
    %v1265 = vunpack.c.l.b16 %v1257
    %v1266 = vunpack.c.l.b16 %v1258
    %v1267 = vunpack.c.l.b16 %v1259
    %v1268 = vunpack.c.l.b16 %v1260
    %v1269 = vpack.c.b16 %v1266, %v1265
    %v1270 = vpack.c.b16 %v1268, %v1267
    %1273 = vmatprep.subr.bf16.mxu0 0
    %1274 = vmatpush1.bf16.msra.mxu0 %v256
    %1275 = vmatprep.subr.bf16.mxu0 0
    %1276 = vmatpush1.bf16.msra.mxu0 %v255
    %1277 = vmatprep.subr.bf16.mxu0 0
    %1278 = vmatpush1.bf16.msra.mxu0 %v254
    %1279 = vmatprep.subr.bf16.mxu0 0
    %1280 = vmatpush1.bf16.msra.mxu0 %v253
    %1281 = vmatprep.subr.bf16.mxu0 0
    %1282 = vmatpush1.bf16.msra.mxu0 %v252
    %1283 = vmatprep.subr.bf16.mxu0 0
    %1284 = vmatpush1.bf16.msra.mxu0 %v251
    %1285 = vmatprep.subr.bf16.mxu0 0
    %1286 = vmatpush1.bf16.msra.mxu0 %v250
    %1287 = vmatprep.subr.bf16.mxu0 0
    %1288 = vmatpush1.bf16.msra.mxu0 %v249
    %1289 = vmatprep.subr.bf16.mxu0 0
    %1290 = vmatpush2.bf16.msra.mxu0 0
    %1291 = vmatprep.subr.bf16.mxu0 0
    %1292 = vmatpush2.bf16.msra.mxu0 0
    %1293 = vmatprep.subr.bf16.mxu0 0
    %1294 = vmatpush2.bf16.msra.mxu0 0
    %1295 = vmatprep.subr.bf16.mxu0 0
    %1296 = vmatpush2.bf16.msra.mxu0 0
    %1297 = vmatprep.subr.bf16.mxu0 0
    %1298 = vmatpush2.bf16.msra.mxu0 0
    %1299 = vmatprep.subr.bf16.mxu0 0
    %1300 = vmatpush2.bf16.msra.mxu0 0
    %1301 = vmatprep.subr.bf16.mxu0 0
    %1302 = vmatpush2.bf16.msra.mxu0 0
    %1303 = vmatprep.subr.bf16.mxu0 0
    %1304 = vmatpush2.bf16.msra.mxu0 0
    %1305 = vmatprep.mubr.bf16.mxu0 0
    %1306 = vmatmul.mubr.bf16.gmra.mxu0 %v1269
    %v1307 = vpop.f32.mrf.mxu0
    %v1308 = vadd.f32 0.0, %v1307
    %v1309 = vpop.f32.mrf.mxu0
    %v1310 = vpop.f32.mrf.mxu0
    %v1311 = vadd.f32 0.0, %v1310
    %v1312 = vpop.f32.mrf.mxu0
    %1313 = vmatprep.mubr.bf16.mxu0 0
    %1314 = vmatmul.mubr.bf16.gmra.mxu0 %v1270
    %v1315 = vpop.f32.mrf.mxu0
    %v1316 = vadd.f32 0.0, %v1315
    %v1317 = vpop.f32.mrf.mxu0
    %v1318 = vpop.f32.mrf.mxu0
    %v1319 = vadd.f32 0.0, %v1318
    %v1320 = vpop.f32.mrf.mxu0
    %1321 = vdwg.mxu0
    %v1322 = vpack.c.bf16 %v1311, %v1308
    %v1323 = vpack.c.bf16 %v1319, %v1316
    %s1324 = scalar_lea.vmem %s4, 112
    %v1325 = vld [vmem:[%s1324] sm:$0xf]
    %v1326 = vld [vmem:[%s1324 + $0x4] sm:$0xf]
    %v1327 = vld [vmem:[%s1324 + $0x8] sm:$0xf]
    %v1328 = vld [vmem:[%s1324 + $0xc] sm:$0xf]
    %v1333 = vunpack.c.l.b16 %v1325
    %v1334 = vunpack.c.l.b16 %v1326
    %v1335 = vunpack.c.l.b16 %v1327
    %v1336 = vunpack.c.l.b16 %v1328
    %v1337 = vpack.c.b16 %v1334, %v1333
    %v1338 = vpack.c.b16 %v1336, %v1335
    %v1342 = vsel %vm413, %v1322, 0
    %v1345 = vsel %vm413, %v1323, 0
    %1347 = vmatprep.subr.bf16.mxu0 0
    %1348 = vmatpush1.bf16.msra.mxu0 0
    %1349 = vmatprep.subr.bf16.mxu0 0
    %1350 = vmatpush1.bf16.msra.mxu0 0
    %1351 = vmatprep.subr.bf16.mxu0 0
    %1352 = vmatpush1.bf16.msra.mxu0 0
    %1353 = vmatprep.subr.bf16.mxu0 0
    %1354 = vmatpush1.bf16.msra.mxu0 0
    %1355 = vmatprep.subr.bf16.mxu0 0
    %1356 = vmatpush1.bf16.msra.mxu0 0
    %1357 = vmatprep.subr.bf16.mxu0 0
    %1358 = vmatpush1.bf16.msra.mxu0 0
    %1359 = vmatprep.subr.bf16.mxu0 0
    %1360 = vmatpush1.bf16.msra.mxu0 %v1338
    %1361 = vmatprep.subr.bf16.mxu0 0
    %1362 = vmatpush1.bf16.msra.mxu0 %v1337
    %1363 = vmatprep.subr.bf16.mxu0 0
    %1364 = vmatpush2.bf16.msra.mxu0 0
    %1365 = vmatprep.subr.bf16.mxu0 0
    %1366 = vmatpush2.bf16.msra.mxu0 0
    %1367 = vmatprep.subr.bf16.mxu0 0
    %1368 = vmatpush2.bf16.msra.mxu0 0
    %1369 = vmatprep.subr.bf16.mxu0 0
    %1370 = vmatpush2.bf16.msra.mxu0 0
    %1371 = vmatprep.subr.bf16.mxu0 0
    %1372 = vmatpush2.bf16.msra.mxu0 0
    %1373 = vmatprep.subr.bf16.mxu0 0
    %1374 = vmatpush2.bf16.msra.mxu0 0
    %1375 = vmatprep.subr.bf16.mxu0 0
    %1376 = vmatpush2.bf16.msra.mxu0 0
    %1377 = vmatprep.subr.bf16.mxu0 0
    %1378 = vmatpush2.bf16.msra.mxu0 0
    %1379 = vmatprep.mubr.bf16.mxu0 0
    %1380 = vmatmul.mubr.bf16.gmra.mxu0 %v1342
    %v1381 = vpop.f32.mrf.mxu0
    %v1382 = vadd.f32 0.0, %v1381
    %v1383 = vpop.f32.mrf.mxu0
    %v1384 = vpop.f32.mrf.mxu0
    %v1385 = vadd.f32 0.0, %v1384
    %v1386 = vpop.f32.mrf.mxu0
    %1387 = vmatprep.mubr.bf16.mxu0 0
    %1388 = vmatmul.mubr.bf16.gmra.mxu0 %v1345
    %v1389 = vpop.f32.mrf.mxu0
    %v1390 = vadd.f32 0.0, %v1389
    %v1391 = vpop.f32.mrf.mxu0
    %v1392 = vpop.f32.mrf.mxu0
    %v1393 = vadd.f32 0.0, %v1392
    %v1394 = vpop.f32.mrf.mxu0
    %1395 = vdwg.mxu0
    %v1396 = vadd.f32 %v1252, %v1382
    %v1397 = vadd.f32 %v1253, %v1385
    %v1398 = vadd.f32 %v1254, %v1390
    %v1399 = vadd.f32 %v1255, %v1393
    %s1400 = scalar_lea.vmem %s3, 128
    %v1401 = vld [vmem:[%s1400] sm:$0xf]
    %v1402 = vld [vmem:[%s1400 + $0x4] sm:$0xf]
    %v1403 = vld [vmem:[%s1400 + $0x8] sm:$0xf]
    %v1404 = vld [vmem:[%s1400 + $0xc] sm:$0xf]
    %v1409 = vunpack.c.l.b16 %v1401
    %v1410 = vunpack.c.l.b16 %v1402
    %v1411 = vunpack.c.l.b16 %v1403
    %v1412 = vunpack.c.l.b16 %v1404
    %v1413 = vpack.c.b16 %v1410, %v1409
    %v1414 = vpack.c.b16 %v1412, %v1411
    %1417 = vmatprep.subr.bf16.mxu0 0
    %1418 = vmatpush1.bf16.msra.mxu0 %v256
    %1419 = vmatprep.subr.bf16.mxu0 0
    %1420 = vmatpush1.bf16.msra.mxu0 %v255
    %1421 = vmatprep.subr.bf16.mxu0 0
    %1422 = vmatpush1.bf16.msra.mxu0 %v254
    %1423 = vmatprep.subr.bf16.mxu0 0
    %1424 = vmatpush1.bf16.msra.mxu0 %v253
    %1425 = vmatprep.subr.bf16.mxu0 0
    %1426 = vmatpush1.bf16.msra.mxu0 %v252
    %1427 = vmatprep.subr.bf16.mxu0 0
    %1428 = vmatpush1.bf16.msra.mxu0 %v251
    %1429 = vmatprep.subr.bf16.mxu0 0
    %1430 = vmatpush1.bf16.msra.mxu0 %v250
    %1431 = vmatprep.subr.bf16.mxu0 0
    %1432 = vmatpush1.bf16.msra.mxu0 %v249
    %1433 = vmatprep.subr.bf16.mxu0 0
    %1434 = vmatpush2.bf16.msra.mxu0 0
    %1435 = vmatprep.subr.bf16.mxu0 0
    %1436 = vmatpush2.bf16.msra.mxu0 0
    %1437 = vmatprep.subr.bf16.mxu0 0
    %1438 = vmatpush2.bf16.msra.mxu0 0
    %1439 = vmatprep.subr.bf16.mxu0 0
    %1440 = vmatpush2.bf16.msra.mxu0 0
    %1441 = vmatprep.subr.bf16.mxu0 0
    %1442 = vmatpush2.bf16.msra.mxu0 0
    %1443 = vmatprep.subr.bf16.mxu0 0
    %1444 = vmatpush2.bf16.msra.mxu0 0
    %1445 = vmatprep.subr.bf16.mxu0 0
    %1446 = vmatpush2.bf16.msra.mxu0 0
    %1447 = vmatprep.subr.bf16.mxu0 0
    %1448 = vmatpush2.bf16.msra.mxu0 0
    %1449 = vmatprep.mubr.bf16.mxu0 0
    %1450 = vmatmul.mubr.bf16.gmra.mxu0 %v1413
    %v1451 = vpop.f32.mrf.mxu0
    %v1452 = vadd.f32 0.0, %v1451
    %v1453 = vpop.f32.mrf.mxu0
    %v1454 = vpop.f32.mrf.mxu0
    %v1455 = vadd.f32 0.0, %v1454
    %v1456 = vpop.f32.mrf.mxu0
    %1457 = vmatprep.mubr.bf16.mxu0 0
    %1458 = vmatmul.mubr.bf16.gmra.mxu0 %v1414
    %v1459 = vpop.f32.mrf.mxu0
    %v1460 = vadd.f32 0.0, %v1459
    %v1461 = vpop.f32.mrf.mxu0
    %v1462 = vpop.f32.mrf.mxu0
    %v1463 = vadd.f32 0.0, %v1462
    %v1464 = vpop.f32.mrf.mxu0
    %1465 = vdwg.mxu0
    %v1466 = vpack.c.bf16 %v1455, %v1452
    %v1467 = vpack.c.bf16 %v1463, %v1460
    %s1468 = scalar_lea.vmem %s4, 128
    %v1469 = vld [vmem:[%s1468] sm:$0xf]
    %v1470 = vld [vmem:[%s1468 + $0x4] sm:$0xf]
    %v1471 = vld [vmem:[%s1468 + $0x8] sm:$0xf]
    %v1472 = vld [vmem:[%s1468 + $0xc] sm:$0xf]
    %v1477 = vunpack.c.l.b16 %v1469
    %v1478 = vunpack.c.l.b16 %v1470
    %v1479 = vunpack.c.l.b16 %v1471
    %v1480 = vunpack.c.l.b16 %v1472
    %v1481 = vpack.c.b16 %v1478, %v1477
    %v1482 = vpack.c.b16 %v1480, %v1479
    %v1486 = vsel %vm413, %v1466, 0
    %v1489 = vsel %vm413, %v1467, 0
    %1491 = vmatprep.subr.bf16.mxu0 0
    %1492 = vmatpush1.bf16.msra.mxu0 0
    %1493 = vmatprep.subr.bf16.mxu0 0
    %1494 = vmatpush1.bf16.msra.mxu0 0
    %1495 = vmatprep.subr.bf16.mxu0 0
    %1496 = vmatpush1.bf16.msra.mxu0 0
    %1497 = vmatprep.subr.bf16.mxu0 0
    %1498 = vmatpush1.bf16.msra.mxu0 0
    %1499 = vmatprep.subr.bf16.mxu0 0
    %1500 = vmatpush1.bf16.msra.mxu0 0
    %1501 = vmatprep.subr.bf16.mxu0 0
    %1502 = vmatpush1.bf16.msra.mxu0 0
    %1503 = vmatprep.subr.bf16.mxu0 0
    %1504 = vmatpush1.bf16.msra.mxu0 %v1482
    %1505 = vmatprep.subr.bf16.mxu0 0
    %1506 = vmatpush1.bf16.msra.mxu0 %v1481
    %1507 = vmatprep.subr.bf16.mxu0 0
    %1508 = vmatpush2.bf16.msra.mxu0 0
    %1509 = vmatprep.subr.bf16.mxu0 0
    %1510 = vmatpush2.bf16.msra.mxu0 0
    %1511 = vmatprep.subr.bf16.mxu0 0
    %1512 = vmatpush2.bf16.msra.mxu0 0
    %1513 = vmatprep.subr.bf16.mxu0 0
    %1514 = vmatpush2.bf16.msra.mxu0 0
    %1515 = vmatprep.subr.bf16.mxu0 0
    %1516 = vmatpush2.bf16.msra.mxu0 0
    %1517 = vmatprep.subr.bf16.mxu0 0
    %1518 = vmatpush2.bf16.msra.mxu0 0
    %1519 = vmatprep.subr.bf16.mxu0 0
    %1520 = vmatpush2.bf16.msra.mxu0 0
    %1521 = vmatprep.subr.bf16.mxu0 0
    %1522 = vmatpush2.bf16.msra.mxu0 0
    %1523 = vmatprep.mubr.bf16.mxu0 0
    %1524 = vmatmul.mubr.bf16.gmra.mxu0 %v1486
    %v1525 = vpop.f32.mrf.mxu0
    %v1526 = vadd.f32 0.0, %v1525
    %v1527 = vpop.f32.mrf.mxu0
    %v1528 = vpop.f32.mrf.mxu0
    %v1529 = vadd.f32 0.0, %v1528
    %v1530 = vpop.f32.mrf.mxu0
    %1531 = vmatprep.mubr.bf16.mxu0 0
    %1532 = vmatmul.mubr.bf16.gmra.mxu0 %v1489
    %v1533 = vpop.f32.mrf.mxu0
    %v1534 = vadd.f32 0.0, %v1533
    %v1535 = vpop.f32.mrf.mxu0
    %v1536 = vpop.f32.mrf.mxu0
    %v1537 = vadd.f32 0.0, %v1536
    %v1538 = vpop.f32.mrf.mxu0
    %1539 = vdwg.mxu0
    %v1540 = vadd.f32 %v1396, %v1526
    %v1541 = vadd.f32 %v1397, %v1529
    %v1542 = vadd.f32 %v1398, %v1534
    %v1543 = vadd.f32 %v1399, %v1537
    %v1544 = vld [vmem:[%s5] sm:$0x1]
    %v1546 = vlaneseq
    %v1547 = vshrl.u32 %v1546, 7
    %v1548 = vsub.s32 0, %v1547
    %v1549 = vrot.slane %v1544, %v1548
    %v1551 = vadd.f32 %v1540, %v1549
    %v1552 = vadd.f32 %v1541, %v1549
    %v1553 = vadd.f32 %v1542, %v1549
    %v1554 = vadd.f32 %v1543, %v1549
    %v1555 = vmax.f32 %v1551, 0.0
    %v1556 = vmax.f32 %v1552, 0.0
    %v1557 = vmax.f32 %v1553, 0.0
    %v1558 = vmax.f32 %v1554, 0.0
    %v1559 = vpack.c.bf16 %v1556, %v1555
    %v1560 = vpack.c.bf16 %v1558, %v1557
    %v1561 = vld [vmem:[%s6] sm:$0xf]
    %v1563 = vsel %vm413, %v1561, 0
    %1565 = vmatprep.subr.bf16.mxu0 0
    %1566 = vmatpush1.bf16.msra.mxu0 0
    %1567 = vmatprep.subr.bf16.mxu0 0
    %1568 = vmatpush1.bf16.msra.mxu0 0
    %1569 = vmatprep.subr.bf16.mxu0 0
    %1570 = vmatpush1.bf16.msra.mxu0 0
    %1571 = vmatprep.subr.bf16.mxu0 0
    %1572 = vmatpush1.bf16.msra.mxu0 0
    %1573 = vmatprep.subr.bf16.mxu0 0
    %1574 = vmatpush1.bf16.msra.mxu0 0
    %1575 = vmatprep.subr.bf16.mxu0 0
    %1576 = vmatpush1.bf16.msra.mxu0 0
    %1577 = vmatprep.subr.bf16.mxu0 0
    %1578 = vmatpush1.bf16.msra.mxu0 %v1560
    %1579 = vmatprep.subr.bf16.mxu0 0
    %1580 = vmatpush1.bf16.msra.mxu0 %v1559
    %1581 = vmatprep.subr.bf16.mxu0 0
    %1582 = vmatpush2.bf16.msra.mxu0 0
    %1583 = vmatprep.subr.bf16.mxu0 0
    %1584 = vmatpush2.bf16.msra.mxu0 0
    %1585 = vmatprep.subr.bf16.mxu0 0
    %1586 = vmatpush2.bf16.msra.mxu0 0
    %1587 = vmatprep.subr.bf16.mxu0 0
    %1588 = vmatpush2.bf16.msra.mxu0 0
    %1589 = vmatprep.subr.bf16.mxu0 0
    %1590 = vmatpush2.bf16.msra.mxu0 0
    %1591 = vmatprep.subr.bf16.mxu0 0
    %1592 = vmatpush2.bf16.msra.mxu0 0
    %1593 = vmatprep.subr.bf16.mxu0 0
    %1594 = vmatpush2.bf16.msra.mxu0 0
    %1595 = vmatprep.subr.bf16.mxu0 0
    %1596 = vmatpush2.bf16.msra.mxu0 0
    %1597 = vmatprep.mubr.bf16.mxu0 0
    %1598 = vmatmul.mubr.bf16.gmra.mxu0 %v1563
    %v1599 = vpop.f32.mrf.mxu0
    %v1600 = vadd.f32 0.0, %v1599
    %v1601 = vpop.f32.mrf.mxu0
    %v1602 = vpop.f32.mrf.mxu0
    %v1603 = vpop.f32.mrf.mxu0
    %1604 = vdwg.mxu0
    %v1605 = vpack.c.bf16 %v1600, %v1600
    %v1606 = vld [vmem:[%s7] sm:$0xf]
    %v1607 = vld [vmem:[%s7 + $0x4] sm:$0xf]
    %v1608 = vld [vmem:[%s7 + $0x8] sm:$0xf]
    %v1609 = vld [vmem:[%s7 + $0xc] sm:$0xf]
    %v1610 = vld [vmem:[%s7 + $0x10] sm:$0xf]
    %v1611 = vld [vmem:[%s7 + $0x14] sm:$0xf]
    %v1612 = vld [vmem:[%s7 + $0x18] sm:$0xf]
    %v1613 = vld [vmem:[%s7 + $0x1c] sm:$0xf]
    %s1614 = scalar_lea.vmem %s6, 4
    %v1615 = vld [vmem:[%s1614] sm:$0xf]
    %v1617 = vsel %vm413, %v1615, 0
    %1619 = vmatprep.subr.bf16.mxu0 0
    %1620 = vmatpush1.bf16.msra.mxu0 0
    %1621 = vmatprep.subr.bf16.mxu0 0
    %1622 = vmatpush1.bf16.msra.mxu0 0
    %1623 = vmatprep.subr.bf16.mxu0 0
    %1624 = vmatpush1.bf16.msra.mxu0 0
    %1625 = vmatprep.subr.bf16.mxu0 0
    %1626 = vmatpush1.bf16.msra.mxu0 0
    %1627 = vmatprep.subr.bf16.mxu0 0
    %1628 = vmatpush1.bf16.msra.mxu0 0
    %1629 = vmatprep.subr.bf16.mxu0 0
    %1630 = vmatpush1.bf16.msra.mxu0 0
    %1631 = vmatprep.subr.bf16.mxu0 0
    %1632 = vmatpush1.bf16.msra.mxu0 %v1560
    %1633 = vmatprep.subr.bf16.mxu0 0
    %1634 = vmatpush1.bf16.msra.mxu0 %v1559
    %1635 = vmatprep.subr.bf16.mxu0 0
    %1636 = vmatpush2.bf16.msra.mxu0 0
    %1637 = vmatprep.subr.bf16.mxu0 0
    %1638 = vmatpush2.bf16.msra.mxu0 0
    %1639 = vmatprep.subr.bf16.mxu0 0
    %1640 = vmatpush2.bf16.msra.mxu0 0
    %1641 = vmatprep.subr.bf16.mxu0 0
    %1642 = vmatpush2.bf16.msra.mxu0 0
    %1643 = vmatprep.subr.bf16.mxu0 0
    %1644 = vmatpush2.bf16.msra.mxu0 0
    %1645 = vmatprep.subr.bf16.mxu0 0
    %1646 = vmatpush2.bf16.msra.mxu0 0
    %1647 = vmatprep.subr.bf16.mxu0 0
    %1648 = vmatpush2.bf16.msra.mxu0 0
    %1649 = vmatprep.subr.bf16.mxu0 0
    %1650 = vmatpush2.bf16.msra.mxu0 0
    %1651 = vmatprep.mubr.bf16.mxu0 0
    %1652 = vmatmul.mubr.bf16.gmra.mxu0 %v1617
    %v1653 = vpop.f32.mrf.mxu0
    %v1654 = vadd.f32 0.0, %v1653
    %v1655 = vpop.f32.mrf.mxu0
    %v1656 = vpop.f32.mrf.mxu0
    %v1657 = vpop.f32.mrf.mxu0
    %1658 = vdwg.mxu0
    %v1659 = vpack.c.bf16 %v1654, %v1654
    %s1660 = scalar_lea.vmem %s7, 32
    %v1661 = vld [vmem:[%s1660] sm:$0xf]
    %v1662 = vld [vmem:[%s1660 + $0x4] sm:$0xf]
    %v1663 = vld [vmem:[%s1660 + $0x8] sm:$0xf]
    %v1664 = vld [vmem:[%s1660 + $0xc] sm:$0xf]
    %v1665 = vld [vmem:[%s1660 + $0x10] sm:$0xf]
    %v1666 = vld [vmem:[%s1660 + $0x14] sm:$0xf]
    %v1667 = vld [vmem:[%s1660 + $0x18] sm:$0xf]
    %v1668 = vld [vmem:[%s1660 + $0x1c] sm:$0xf]
    %v1677 = vunpack.c.l.b16 %v1661
    %v1678 = vunpack.c.l.b16 %v1662
    %v1679 = vunpack.c.l.b16 %v1663
    %v1680 = vunpack.c.l.b16 %v1664
    %v1681 = vunpack.c.l.b16 %v1665
    %v1682 = vunpack.c.l.b16 %v1666
    %v1683 = vunpack.c.l.b16 %v1667
    %v1684 = vunpack.c.l.b16 %v1668
    %v1685 = vpack.c.b16 %v1678, %v1677
    %v1686 = vpack.c.b16 %v1680, %v1679
    %v1687 = vpack.c.b16 %v1682, %v1681
    %v1688 = vpack.c.b16 %v1684, %v1683
    %vm1693 = vcmask 523264
    %v1695 = vsel %vm1693, %v1659, 0
    %1697 = vmatprep.subr.bf16.mxu0 0
    %1698 = vmatpush1.bf16.msra.mxu0 0
    %1699 = vmatprep.subr.bf16.mxu0 0
    %1700 = vmatpush1.bf16.msra.mxu0 0
    %1701 = vmatprep.subr.bf16.mxu0 0
    %1702 = vmatpush1.bf16.msra.mxu0 0
    %1703 = vmatprep.subr.bf16.mxu0 0
    %1704 = vmatpush1.bf16.msra.mxu0 0
    %1705 = vmatprep.subr.bf16.mxu0 0
    %1706 = vmatpush1.bf16.msra.mxu0 %v1688
    %1707 = vmatprep.subr.bf16.mxu0 0
    %1708 = vmatpush1.bf16.msra.mxu0 %v1687
    %1709 = vmatprep.subr.bf16.mxu0 0
    %1710 = vmatpush1.bf16.msra.mxu0 %v1686
    %1711 = vmatprep.subr.bf16.mxu0 0
    %1712 = vmatpush1.bf16.msra.mxu0 %v1685
    %1713 = vmatprep.subr.bf16.mxu0 0
    %1714 = vmatpush2.bf16.msra.mxu0 0
    %1715 = vmatprep.subr.bf16.mxu0 0
    %1716 = vmatpush2.bf16.msra.mxu0 0
    %1717 = vmatprep.subr.bf16.mxu0 0
    %1718 = vmatpush2.bf16.msra.mxu0 0
    %1719 = vmatprep.subr.bf16.mxu0 0
    %1720 = vmatpush2.bf16.msra.mxu0 0
    %1721 = vmatprep.subr.bf16.mxu0 0
    %1722 = vmatpush2.bf16.msra.mxu0 0
    %1723 = vmatprep.subr.bf16.mxu0 0
    %1724 = vmatpush2.bf16.msra.mxu0 0
    %1725 = vmatprep.subr.bf16.mxu0 0
    %1726 = vmatpush2.bf16.msra.mxu0 0
    %1727 = vmatprep.subr.bf16.mxu0 0
    %1728 = vmatpush2.bf16.msra.mxu0 0
    %1729 = vmatprep.mubr.bf16.mxu0 0
    %1730 = vmatmul.mubr.bf16.gmra.mxu0 %v1695
    %v1731 = vpop.f32.mrf.mxu0
    %v1732 = vadd.f32 0.0, %v1731
    %v1733 = vpop.f32.mrf.mxu0
    %v1734 = vpop.f32.mrf.mxu0
    %v1735 = vpop.f32.mrf.mxu0
    %1736 = vdwg.mxu0
    %v1745 = vunpack.c.l.b16 %v1606
    %v1746 = vunpack.c.l.b16 %v1607
    %v1747 = vunpack.c.l.b16 %v1608
    %v1748 = vunpack.c.l.b16 %v1609
    %v1749 = vunpack.c.l.b16 %v1610
    %v1750 = vunpack.c.l.b16 %v1611
    %v1751 = vunpack.c.l.b16 %v1612
    %v1752 = vunpack.c.l.b16 %v1613
    %v1753 = vpack.c.b16 %v1746, %v1745
    %v1754 = vpack.c.b16 %v1748, %v1747
    %v1755 = vpack.c.b16 %v1750, %v1749
    %v1756 = vpack.c.b16 %v1752, %v1751
    %v1762 = vsel %vm1693, %v1605, 0
    %1764 = vmatprep.subr.bf16.mxu0 0
    %1765 = vmatpush1.bf16.msra.mxu0 0
    %1766 = vmatprep.subr.bf16.mxu0 0
    %1767 = vmatpush1.bf16.msra.mxu0 0
    %1768 = vmatprep.subr.bf16.mxu0 0
    %1769 = vmatpush1.bf16.msra.mxu0 0
    %1770 = vmatprep.subr.bf16.mxu0 0
    %1771 = vmatpush1.bf16.msra.mxu0 0
    %1772 = vmatprep.subr.bf16.mxu0 0
    %1773 = vmatpush1.bf16.msra.mxu0 %v1756
    %1774 = vmatprep.subr.bf16.mxu0 0
    %1775 = vmatpush1.bf16.msra.mxu0 %v1755
    %1776 = vmatprep.subr.bf16.mxu0 0
    %1777 = vmatpush1.bf16.msra.mxu0 %v1754
    %1778 = vmatprep.subr.bf16.mxu0 0
    %1779 = vmatpush1.bf16.msra.mxu0 %v1753
    %1780 = vmatprep.subr.bf16.mxu0 0
    %1781 = vmatpush2.bf16.msra.mxu0 0
    %1782 = vmatprep.subr.bf16.mxu0 0
    %1783 = vmatpush2.bf16.msra.mxu0 0
    %1784 = vmatprep.subr.bf16.mxu0 0
    %1785 = vmatpush2.bf16.msra.mxu0 0
    %1786 = vmatprep.subr.bf16.mxu0 0
    %1787 = vmatpush2.bf16.msra.mxu0 0
    %1788 = vmatprep.subr.bf16.mxu0 0
    %1789 = vmatpush2.bf16.msra.mxu0 0
    %1790 = vmatprep.subr.bf16.mxu0 0
    %1791 = vmatpush2.bf16.msra.mxu0 0
    %1792 = vmatprep.subr.bf16.mxu0 0
    %1793 = vmatpush2.bf16.msra.mxu0 0
    %1794 = vmatprep.subr.bf16.mxu0 0
    %1795 = vmatpush2.bf16.msra.mxu0 0
    %1796 = vmatprep.mubr.bf16.mxu0 0
    %1797 = vmatmul.mubr.bf16.gmra.mxu0 %v1762
    %v1798 = vpop.f32.mrf.mxu0
    %v1799 = vadd.f32 %v1732, %v1798
    %v1800 = vpop.f32.mrf.mxu0
    %v1801 = vpop.f32.mrf.mxu0
    %v1802 = vpop.f32.mrf.mxu0
    %1803 = vdwg.mxu0
    %s1804 = scalar_lea.vmem %s6, 8
    %v1805 = vld [vmem:[%s1804] sm:$0xf]
    %v1807 = vsel %vm413, %v1805, 0
    %1809 = vmatprep.subr.bf16.mxu0 0
    %1810 = vmatpush1.bf16.msra.mxu0 0
    %1811 = vmatprep.subr.bf16.mxu0 0
    %1812 = vmatpush1.bf16.msra.mxu0 0
    %1813 = vmatprep.subr.bf16.mxu0 0
    %1814 = vmatpush1.bf16.msra.mxu0 0
    %1815 = vmatprep.subr.bf16.mxu0 0
    %1816 = vmatpush1.bf16.msra.mxu0 0
    %1817 = vmatprep.subr.bf16.mxu0 0
    %1818 = vmatpush1.bf16.msra.mxu0 0
    %1819 = vmatprep.subr.bf16.mxu0 0
    %1820 = vmatpush1.bf16.msra.mxu0 0
    %1821 = vmatprep.subr.bf16.mxu0 0
    %1822 = vmatpush1.bf16.msra.mxu0 %v1560
    %1823 = vmatprep.subr.bf16.mxu0 0
    %1824 = vmatpush1.bf16.msra.mxu0 %v1559
    %1825 = vmatprep.subr.bf16.mxu0 0
    %1826 = vmatpush2.bf16.msra.mxu0 0
    %1827 = vmatprep.subr.bf16.mxu0 0
    %1828 = vmatpush2.bf16.msra.mxu0 0
    %1829 = vmatprep.subr.bf16.mxu0 0
    %1830 = vmatpush2.bf16.msra.mxu0 0
    %1831 = vmatprep.subr.bf16.mxu0 0
    %1832 = vmatpush2.bf16.msra.mxu0 0
    %1833 = vmatprep.subr.bf16.mxu0 0
    %1834 = vmatpush2.bf16.msra.mxu0 0
    %1835 = vmatprep.subr.bf16.mxu0 0
    %1836 = vmatpush2.bf16.msra.mxu0 0
    %1837 = vmatprep.subr.bf16.mxu0 0
    %1838 = vmatpush2.bf16.msra.mxu0 0
    %1839 = vmatprep.subr.bf16.mxu0 0
    %1840 = vmatpush2.bf16.msra.mxu0 0
    %1841 = vmatprep.mubr.bf16.mxu0 0
    %1842 = vmatmul.mubr.bf16.gmra.mxu0 %v1807
    %v1843 = vpop.f32.mrf.mxu0
    %v1844 = vadd.f32 0.0, %v1843
    %v1845 = vpop.f32.mrf.mxu0
    %v1846 = vpop.f32.mrf.mxu0
    %v1847 = vpop.f32.mrf.mxu0
    %1848 = vdwg.mxu0
    %v1849 = vpack.c.bf16 %v1844, %v1844
    %s1850 = scalar_lea.vmem %s7, 64
    %v1851 = vld [vmem:[%s1850] sm:$0xf]
    %v1852 = vld [vmem:[%s1850 + $0x4] sm:$0xf]
    %v1853 = vld [vmem:[%s1850 + $0x8] sm:$0xf]
    %v1854 = vld [vmem:[%s1850 + $0xc] sm:$0xf]
    %v1855 = vld [vmem:[%s1850 + $0x10] sm:$0xf]
    %v1856 = vld [vmem:[%s1850 + $0x14] sm:$0xf]
    %v1857 = vld [vmem:[%s1850 + $0x18] sm:$0xf]
    %v1858 = vld [vmem:[%s1850 + $0x1c] sm:$0xf]
    %v1867 = vunpack.c.l.b16 %v1851
    %v1868 = vunpack.c.l.b16 %v1852
    %v1869 = vunpack.c.l.b16 %v1853
    %v1870 = vunpack.c.l.b16 %v1854
    %v1871 = vunpack.c.l.b16 %v1855
    %v1872 = vunpack.c.l.b16 %v1856
    %v1873 = vunpack.c.l.b16 %v1857
    %v1874 = vunpack.c.l.b16 %v1858
    %v1875 = vpack.c.b16 %v1868, %v1867
    %v1876 = vpack.c.b16 %v1870, %v1869
    %v1877 = vpack.c.b16 %v1872, %v1871
    %v1878 = vpack.c.b16 %v1874, %v1873
    %v1884 = vsel %vm1693, %v1849, 0
    %1886 = vmatprep.subr.bf16.mxu0 0
    %1887 = vmatpush1.bf16.msra.mxu0 0
    %1888 = vmatprep.subr.bf16.mxu0 0
    %1889 = vmatpush1.bf16.msra.mxu0 0
    %1890 = vmatprep.subr.bf16.mxu0 0
    %1891 = vmatpush1.bf16.msra.mxu0 0
    %1892 = vmatprep.subr.bf16.mxu0 0
    %1893 = vmatpush1.bf16.msra.mxu0 0
    %1894 = vmatprep.subr.bf16.mxu0 0
    %1895 = vmatpush1.bf16.msra.mxu0 %v1878
    %1896 = vmatprep.subr.bf16.mxu0 0
    %1897 = vmatpush1.bf16.msra.mxu0 %v1877
    %1898 = vmatprep.subr.bf16.mxu0 0
    %1899 = vmatpush1.bf16.msra.mxu0 %v1876
    %1900 = vmatprep.subr.bf16.mxu0 0
    %1901 = vmatpush1.bf16.msra.mxu0 %v1875
    %1902 = vmatprep.subr.bf16.mxu0 0
    %1903 = vmatpush2.bf16.msra.mxu0 0
    %1904 = vmatprep.subr.bf16.mxu0 0
    %1905 = vmatpush2.bf16.msra.mxu0 0
    %1906 = vmatprep.subr.bf16.mxu0 0
    %1907 = vmatpush2.bf16.msra.mxu0 0
    %1908 = vmatprep.subr.bf16.mxu0 0
    %1909 = vmatpush2.bf16.msra.mxu0 0
    %1910 = vmatprep.subr.bf16.mxu0 0
    %1911 = vmatpush2.bf16.msra.mxu0 0
    %1912 = vmatprep.subr.bf16.mxu0 0
    %1913 = vmatpush2.bf16.msra.mxu0 0
    %1914 = vmatprep.subr.bf16.mxu0 0
    %1915 = vmatpush2.bf16.msra.mxu0 0
    %1916 = vmatprep.subr.bf16.mxu0 0
    %1917 = vmatpush2.bf16.msra.mxu0 0
    %1918 = vmatprep.mubr.bf16.mxu0 0
    %1919 = vmatmul.mubr.bf16.gmra.mxu0 %v1884
    %v1920 = vpop.f32.mrf.mxu0
    %v1921 = vadd.f32 0.0, %v1920
    %v1922 = vpop.f32.mrf.mxu0
    %v1923 = vpop.f32.mrf.mxu0
    %v1924 = vpop.f32.mrf.mxu0
    %1925 = vdwg.mxu0
    %v1926 = vadd.f32 %v1799, %v1921
    %s1927 = scalar_lea.vmem %s6, 12
    %v1928 = vld [vmem:[%s1927] sm:$0xf]
    %v1930 = vsel %vm413, %v1928, 0
    %1932 = vmatprep.subr.bf16.mxu0 0
    %1933 = vmatpush1.bf16.msra.mxu0 0
    %1934 = vmatprep.subr.bf16.mxu0 0
    %1935 = vmatpush1.bf16.msra.mxu0 0
    %1936 = vmatprep.subr.bf16.mxu0 0
    %1937 = vmatpush1.bf16.msra.mxu0 0
    %1938 = vmatprep.subr.bf16.mxu0 0
    %1939 = vmatpush1.bf16.msra.mxu0 0
    %1940 = vmatprep.subr.bf16.mxu0 0
    %1941 = vmatpush1.bf16.msra.mxu0 0
    %1942 = vmatprep.subr.bf16.mxu0 0
    %1943 = vmatpush1.bf16.msra.mxu0 0
    %1944 = vmatprep.subr.bf16.mxu0 0
    %1945 = vmatpush1.bf16.msra.mxu0 %v1560
    %1946 = vmatprep.subr.bf16.mxu0 0
    %1947 = vmatpush1.bf16.msra.mxu0 %v1559
    %1948 = vmatprep.subr.bf16.mxu0 0
    %1949 = vmatpush2.bf16.msra.mxu0 0
    %1950 = vmatprep.subr.bf16.mxu0 0
    %1951 = vmatpush2.bf16.msra.mxu0 0
    %1952 = vmatprep.subr.bf16.mxu0 0
    %1953 = vmatpush2.bf16.msra.mxu0 0
    %1954 = vmatprep.subr.bf16.mxu0 0
    %1955 = vmatpush2.bf16.msra.mxu0 0
    %1956 = vmatprep.subr.bf16.mxu0 0
    %1957 = vmatpush2.bf16.msra.mxu0 0
    %1958 = vmatprep.subr.bf16.mxu0 0
    %1959 = vmatpush2.bf16.msra.mxu0 0
    %1960 = vmatprep.subr.bf16.mxu0 0
    %1961 = vmatpush2.bf16.msra.mxu0 0
    %1962 = vmatprep.subr.bf16.mxu0 0
    %1963 = vmatpush2.bf16.msra.mxu0 0
    %1964 = vmatprep.mubr.bf16.mxu0 0
    %1965 = vmatmul.mubr.bf16.gmra.mxu0 %v1930
    %v1966 = vpop.f32.mrf.mxu0
    %v1967 = vadd.f32 0.0, %v1966
    %v1968 = vpop.f32.mrf.mxu0
    %v1969 = vpop.f32.mrf.mxu0
    %v1970 = vpop.f32.mrf.mxu0
    %1971 = vdwg.mxu0
    %v1972 = vpack.c.bf16 %v1967, %v1967
    %s1973 = scalar_lea.vmem %s7, 96
    %v1974 = vld [vmem:[%s1973] sm:$0xf]
    %v1975 = vld [vmem:[%s1973 + $0x4] sm:$0xf]
    %v1976 = vld [vmem:[%s1973 + $0x8] sm:$0xf]
    %v1977 = vld [vmem:[%s1973 + $0xc] sm:$0xf]
    %v1978 = vld [vmem:[%s1973 + $0x10] sm:$0xf]
    %v1979 = vld [vmem:[%s1973 + $0x14] sm:$0xf]
    %v1980 = vld [vmem:[%s1973 + $0x18] sm:$0xf]
    %v1981 = vld [vmem:[%s1973 + $0x1c] sm:$0xf]
    %v1990 = vunpack.c.l.b16 %v1974
    %v1991 = vunpack.c.l.b16 %v1975
    %v1992 = vunpack.c.l.b16 %v1976
    %v1993 = vunpack.c.l.b16 %v1977
    %v1994 = vunpack.c.l.b16 %v1978
    %v1995 = vunpack.c.l.b16 %v1979
    %v1996 = vunpack.c.l.b16 %v1980
    %v1997 = vunpack.c.l.b16 %v1981
    %v1998 = vpack.c.b16 %v1991, %v1990
    %v1999 = vpack.c.b16 %v1993, %v1992
    %v2000 = vpack.c.b16 %v1995, %v1994
    %v2001 = vpack.c.b16 %v1997, %v1996
    %v2007 = vsel %vm1693, %v1972, 0
    %2009 = vmatprep.subr.bf16.mxu0 0
    %2010 = vmatpush1.bf16.msra.mxu0 0
    %2011 = vmatprep.subr.bf16.mxu0 0
    %2012 = vmatpush1.bf16.msra.mxu0 0
    %2013 = vmatprep.subr.bf16.mxu0 0
    %2014 = vmatpush1.bf16.msra.mxu0 0
    %2015 = vmatprep.subr.bf16.mxu0 0
    %2016 = vmatpush1.bf16.msra.mxu0 0
    %2017 = vmatprep.subr.bf16.mxu0 0
    %2018 = vmatpush1.bf16.msra.mxu0 %v2001
    %2019 = vmatprep.subr.bf16.mxu0 0
    %2020 = vmatpush1.bf16.msra.mxu0 %v2000
    %2021 = vmatprep.subr.bf16.mxu0 0
    %2022 = vmatpush1.bf16.msra.mxu0 %v1999
    %2023 = vmatprep.subr.bf16.mxu0 0
    %2024 = vmatpush1.bf16.msra.mxu0 %v1998
    %2025 = vmatprep.subr.bf16.mxu0 0
    %2026 = vmatpush2.bf16.msra.mxu0 0
    %2027 = vmatprep.subr.bf16.mxu0 0
    %2028 = vmatpush2.bf16.msra.mxu0 0
    %2029 = vmatprep.subr.bf16.mxu0 0
    %2030 = vmatpush2.bf16.msra.mxu0 0
    %2031 = vmatprep.subr.bf16.mxu0 0
    %2032 = vmatpush2.bf16.msra.mxu0 0
    %2033 = vmatprep.subr.bf16.mxu0 0
    %2034 = vmatpush2.bf16.msra.mxu0 0
    %2035 = vmatprep.subr.bf16.mxu0 0
    %2036 = vmatpush2.bf16.msra.mxu0 0
    %2037 = vmatprep.subr.bf16.mxu0 0
    %2038 = vmatpush2.bf16.msra.mxu0 0
    %2039 = vmatprep.subr.bf16.mxu0 0
    %2040 = vmatpush2.bf16.msra.mxu0 0
    %2041 = vmatprep.mubr.bf16.mxu0 0
    %2042 = vmatmul.mubr.bf16.gmra.mxu0 %v2007
    %v2043 = vpop.f32.mrf.mxu0
    %v2044 = vadd.f32 0.0, %v2043
    %v2045 = vpop.f32.mrf.mxu0
    %v2046 = vpop.f32.mrf.mxu0
    %v2047 = vpop.f32.mrf.mxu0
    %2048 = vdwg.mxu0
    %v2049 = vadd.f32 %v1926, %v2044
    %s2050 = scalar_lea.vmem %s6, 16
    %v2051 = vld [vmem:[%s2050] sm:$0xf]
    %v2053 = vsel %vm413, %v2051, 0
    %2055 = vmatprep.subr.bf16.mxu0 0
    %2056 = vmatpush1.bf16.msra.mxu0 0
    %2057 = vmatprep.subr.bf16.mxu0 0
    %2058 = vmatpush1.bf16.msra.mxu0 0
    %2059 = vmatprep.subr.bf16.mxu0 0
    %2060 = vmatpush1.bf16.msra.mxu0 0
    %2061 = vmatprep.subr.bf16.mxu0 0
    %2062 = vmatpush1.bf16.msra.mxu0 0
    %2063 = vmatprep.subr.bf16.mxu0 0
    %2064 = vmatpush1.bf16.msra.mxu0 0
    %2065 = vmatprep.subr.bf16.mxu0 0
    %2066 = vmatpush1.bf16.msra.mxu0 0
    %2067 = vmatprep.subr.bf16.mxu0 0
    %2068 = vmatpush1.bf16.msra.mxu0 %v1560
    %2069 = vmatprep.subr.bf16.mxu0 0
    %2070 = vmatpush1.bf16.msra.mxu0 %v1559
    %2071 = vmatprep.subr.bf16.mxu0 0
    %2072 = vmatpush2.bf16.msra.mxu0 0
    %2073 = vmatprep.subr.bf16.mxu0 0
    %2074 = vmatpush2.bf16.msra.mxu0 0
    %2075 = vmatprep.subr.bf16.mxu0 0
    %2076 = vmatpush2.bf16.msra.mxu0 0
    %2077 = vmatprep.subr.bf16.mxu0 0
    %2078 = vmatpush2.bf16.msra.mxu0 0
    %2079 = vmatprep.subr.bf16.mxu0 0
    %2080 = vmatpush2.bf16.msra.mxu0 0
    %2081 = vmatprep.subr.bf16.mxu0 0
    %2082 = vmatpush2.bf16.msra.mxu0 0
    %2083 = vmatprep.subr.bf16.mxu0 0
    %2084 = vmatpush2.bf16.msra.mxu0 0
    %2085 = vmatprep.subr.bf16.mxu0 0
    %2086 = vmatpush2.bf16.msra.mxu0 0
    %2087 = vmatprep.mubr.bf16.mxu0 0
    %2088 = vmatmul.mubr.bf16.gmra.mxu0 %v2053
    %v2089 = vpop.f32.mrf.mxu0
    %v2090 = vadd.f32 0.0, %v2089
    %v2091 = vpop.f32.mrf.mxu0
    %v2092 = vpop.f32.mrf.mxu0
    %v2093 = vpop.f32.mrf.mxu0
    %2094 = vdwg.mxu0
    %v2095 = vpack.c.bf16 %v2090, %v2090
    %s2096 = scalar_lea.vmem %s7, 128
    %v2097 = vld [vmem:[%s2096] sm:$0xf]
    %v2098 = vld [vmem:[%s2096 + $0x4] sm:$0xf]
    %v2099 = vld [vmem:[%s2096 + $0x8] sm:$0xf]
    %v2100 = vld [vmem:[%s2096 + $0xc] sm:$0xf]
    %v2101 = vld [vmem:[%s2096 + $0x10] sm:$0xf]
    %v2102 = vld [vmem:[%s2096 + $0x14] sm:$0xf]
    %v2103 = vld [vmem:[%s2096 + $0x18] sm:$0xf]
    %v2104 = vld [vmem:[%s2096 + $0x1c] sm:$0xf]
    %v2113 = vunpack.c.l.b16 %v2097
    %v2114 = vunpack.c.l.b16 %v2098
    %v2115 = vunpack.c.l.b16 %v2099
    %v2116 = vunpack.c.l.b16 %v2100
    %v2117 = vunpack.c.l.b16 %v2101
    %v2118 = vunpack.c.l.b16 %v2102
    %v2119 = vunpack.c.l.b16 %v2103
    %v2120 = vunpack.c.l.b16 %v2104
    %v2121 = vpack.c.b16 %v2114, %v2113
    %v2122 = vpack.c.b16 %v2116, %v2115
    %v2123 = vpack.c.b16 %v2118, %v2117
    %v2124 = vpack.c.b16 %v2120, %v2119
    %v2130 = vsel %vm1693, %v2095, 0
    %2132 = vmatprep.subr.bf16.mxu0 0
    %2133 = vmatpush1.bf16.msra.mxu0 0
    %2134 = vmatprep.subr.bf16.mxu0 0
    %2135 = vmatpush1.bf16.msra.mxu0 0
    %2136 = vmatprep.subr.bf16.mxu0 0
    %2137 = vmatpush1.bf16.msra.mxu0 0
    %2138 = vmatprep.subr.bf16.mxu0 0
    %2139 = vmatpush1.bf16.msra.mxu0 0
    %2140 = vmatprep.subr.bf16.mxu0 0
    %2141 = vmatpush1.bf16.msra.mxu0 %v2124
    %2142 = vmatprep.subr.bf16.mxu0 0
    %2143 = vmatpush1.bf16.msra.mxu0 %v2123
    %2144 = vmatprep.subr.bf16.mxu0 0
    %2145 = vmatpush1.bf16.msra.mxu0 %v2122
    %2146 = vmatprep.subr.bf16.mxu0 0
    %2147 = vmatpush1.bf16.msra.mxu0 %v2121
    %2148 = vmatprep.subr.bf16.mxu0 0
    %2149 = vmatpush2.bf16.msra.mxu0 0
    %2150 = vmatprep.subr.bf16.mxu0 0
    %2151 = vmatpush2.bf16.msra.mxu0 0
    %2152 = vmatprep.subr.bf16.mxu0 0
    %2153 = vmatpush2.bf16.msra.mxu0 0
    %2154 = vmatprep.subr.bf16.mxu0 0
    %2155 = vmatpush2.bf16.msra.mxu0 0
    %2156 = vmatprep.subr.bf16.mxu0 0
    %2157 = vmatpush2.bf16.msra.mxu0 0
    %2158 = vmatprep.subr.bf16.mxu0 0
    %2159 = vmatpush2.bf16.msra.mxu0 0
    %2160 = vmatprep.subr.bf16.mxu0 0
    %2161 = vmatpush2.bf16.msra.mxu0 0
    %2162 = vmatprep.subr.bf16.mxu0 0
    %2163 = vmatpush2.bf16.msra.mxu0 0
    %2164 = vmatprep.mubr.bf16.mxu0 0
    %2165 = vmatmul.mubr.bf16.gmra.mxu0 %v2130
    %v2166 = vpop.f32.mrf.mxu0
    %v2167 = vadd.f32 0.0, %v2166
    %v2168 = vpop.f32.mrf.mxu0
    %v2169 = vpop.f32.mrf.mxu0
    %v2170 = vpop.f32.mrf.mxu0
    %2171 = vdwg.mxu0
    %v2172 = vadd.f32 %v2049, %v2167
    %s2173 = scalar_lea.vmem %s6, 20
    %v2174 = vld [vmem:[%s2173] sm:$0xf]
    %v2176 = vsel %vm413, %v2174, 0
    %2178 = vmatprep.subr.bf16.mxu0 0
    %2179 = vmatpush1.bf16.msra.mxu0 0
    %2180 = vmatprep.subr.bf16.mxu0 0
    %2181 = vmatpush1.bf16.msra.mxu0 0
    %2182 = vmatprep.subr.bf16.mxu0 0
    %2183 = vmatpush1.bf16.msra.mxu0 0
    %2184 = vmatprep.subr.bf16.mxu0 0
    %2185 = vmatpush1.bf16.msra.mxu0 0
    %2186 = vmatprep.subr.bf16.mxu0 0
    %2187 = vmatpush1.bf16.msra.mxu0 0
    %2188 = vmatprep.subr.bf16.mxu0 0
    %2189 = vmatpush1.bf16.msra.mxu0 0
    %2190 = vmatprep.subr.bf16.mxu0 0
    %2191 = vmatpush1.bf16.msra.mxu0 %v1560
    %2192 = vmatprep.subr.bf16.mxu0 0
    %2193 = vmatpush1.bf16.msra.mxu0 %v1559
    %2194 = vmatprep.subr.bf16.mxu0 0
    %2195 = vmatpush2.bf16.msra.mxu0 0
    %2196 = vmatprep.subr.bf16.mxu0 0
    %2197 = vmatpush2.bf16.msra.mxu0 0
    %2198 = vmatprep.subr.bf16.mxu0 0
    %2199 = vmatpush2.bf16.msra.mxu0 0
    %2200 = vmatprep.subr.bf16.mxu0 0
    %2201 = vmatpush2.bf16.msra.mxu0 0
    %2202 = vmatprep.subr.bf16.mxu0 0
    %2203 = vmatpush2.bf16.msra.mxu0 0
    %2204 = vmatprep.subr.bf16.mxu0 0
    %2205 = vmatpush2.bf16.msra.mxu0 0
    %2206 = vmatprep.subr.bf16.mxu0 0
    %2207 = vmatpush2.bf16.msra.mxu0 0
    %2208 = vmatprep.subr.bf16.mxu0 0
    %2209 = vmatpush2.bf16.msra.mxu0 0
    %2210 = vmatprep.mubr.bf16.mxu0 0
    %2211 = vmatmul.mubr.bf16.gmra.mxu0 %v2176
    %v2212 = vpop.f32.mrf.mxu0
    %v2213 = vadd.f32 0.0, %v2212
    %v2214 = vpop.f32.mrf.mxu0
    %v2215 = vpop.f32.mrf.mxu0
    %v2216 = vpop.f32.mrf.mxu0
    %2217 = vdwg.mxu0
    %v2218 = vpack.c.bf16 %v2213, %v2213
    %s2219 = scalar_lea.vmem %s7, 160
    %v2220 = vld [vmem:[%s2219] sm:$0xf]
    %v2221 = vld [vmem:[%s2219 + $0x4] sm:$0xf]
    %v2222 = vld [vmem:[%s2219 + $0x8] sm:$0xf]
    %v2223 = vld [vmem:[%s2219 + $0xc] sm:$0xf]
    %v2224 = vld [vmem:[%s2219 + $0x10] sm:$0xf]
    %v2225 = vld [vmem:[%s2219 + $0x14] sm:$0xf]
    %v2226 = vld [vmem:[%s2219 + $0x18] sm:$0xf]
    %v2227 = vld [vmem:[%s2219 + $0x1c] sm:$0xf]
    %v2236 = vunpack.c.l.b16 %v2220
    %v2237 = vunpack.c.l.b16 %v2221
    %v2238 = vunpack.c.l.b16 %v2222
    %v2239 = vunpack.c.l.b16 %v2223
    %v2240 = vunpack.c.l.b16 %v2224
    %v2241 = vunpack.c.l.b16 %v2225
    %v2242 = vunpack.c.l.b16 %v2226
    %v2243 = vunpack.c.l.b16 %v2227
    %v2244 = vpack.c.b16 %v2237, %v2236
    %v2245 = vpack.c.b16 %v2239, %v2238
    %v2246 = vpack.c.b16 %v2241, %v2240
    %v2247 = vpack.c.b16 %v2243, %v2242
    %v2253 = vsel %vm1693, %v2218, 0
    %2255 = vmatprep.subr.bf16.mxu0 0
    %2256 = vmatpush1.bf16.msra.mxu0 0
    %2257 = vmatprep.subr.bf16.mxu0 0
    %2258 = vmatpush1.bf16.msra.mxu0 0
    %2259 = vmatprep.subr.bf16.mxu0 0
    %2260 = vmatpush1.bf16.msra.mxu0 0
    %2261 = vmatprep.subr.bf16.mxu0 0
    %2262 = vmatpush1.bf16.msra.mxu0 0
    %2263 = vmatprep.subr.bf16.mxu0 0
    %2264 = vmatpush1.bf16.msra.mxu0 %v2247
    %2265 = vmatprep.subr.bf16.mxu0 0
    %2266 = vmatpush1.bf16.msra.mxu0 %v2246
    %2267 = vmatprep.subr.bf16.mxu0 0
    %2268 = vmatpush1.bf16.msra.mxu0 %v2245
    %2269 = vmatprep.subr.bf16.mxu0 0
    %2270 = vmatpush1.bf16.msra.mxu0 %v2244
    %2271 = vmatprep.subr.bf16.mxu0 0
    %2272 = vmatpush2.bf16.msra.mxu0 0
    %2273 = vmatprep.subr.bf16.mxu0 0
    %2274 = vmatpush2.bf16.msra.mxu0 0
    %2275 = vmatprep.subr.bf16.mxu0 0
    %2276 = vmatpush2.bf16.msra.mxu0 0
    %2277 = vmatprep.subr.bf16.mxu0 0
    %2278 = vmatpush2.bf16.msra.mxu0 0
    %2279 = vmatprep.subr.bf16.mxu0 0
    %2280 = vmatpush2.bf16.msra.mxu0 0
    %2281 = vmatprep.subr.bf16.mxu0 0
    %2282 = vmatpush2.bf16.msra.mxu0 0
    %2283 = vmatprep.subr.bf16.mxu0 0
    %2284 = vmatpush2.bf16.msra.mxu0 0
    %2285 = vmatprep.subr.bf16.mxu0 0
    %2286 = vmatpush2.bf16.msra.mxu0 0
    %2287 = vmatprep.mubr.bf16.mxu0 0
    %2288 = vmatmul.mubr.bf16.gmra.mxu0 %v2253
    %v2289 = vpop.f32.mrf.mxu0
    %v2290 = vadd.f32 0.0, %v2289
    %v2291 = vpop.f32.mrf.mxu0
    %v2292 = vpop.f32.mrf.mxu0
    %v2293 = vpop.f32.mrf.mxu0
    %2294 = vdwg.mxu0
    %v2295 = vadd.f32 %v2172, %v2290
    %s2296 = scalar_lea.vmem %s6, 24
    %v2297 = vld [vmem:[%s2296] sm:$0xf]
    %v2299 = vsel %vm413, %v2297, 0
    %2301 = vmatprep.subr.bf16.mxu0 0
    %2302 = vmatpush1.bf16.msra.mxu0 0
    %2303 = vmatprep.subr.bf16.mxu0 0
    %2304 = vmatpush1.bf16.msra.mxu0 0
    %2305 = vmatprep.subr.bf16.mxu0 0
    %2306 = vmatpush1.bf16.msra.mxu0 0
    %2307 = vmatprep.subr.bf16.mxu0 0
    %2308 = vmatpush1.bf16.msra.mxu0 0
    %2309 = vmatprep.subr.bf16.mxu0 0
    %2310 = vmatpush1.bf16.msra.mxu0 0
    %2311 = vmatprep.subr.bf16.mxu0 0
    %2312 = vmatpush1.bf16.msra.mxu0 0
    %2313 = vmatprep.subr.bf16.mxu0 0
    %2314 = vmatpush1.bf16.msra.mxu0 %v1560
    %2315 = vmatprep.subr.bf16.mxu0 0
    %2316 = vmatpush1.bf16.msra.mxu0 %v1559
    %2317 = vmatprep.subr.bf16.mxu0 0
    %2318 = vmatpush2.bf16.msra.mxu0 0
    %2319 = vmatprep.subr.bf16.mxu0 0
    %2320 = vmatpush2.bf16.msra.mxu0 0
    %2321 = vmatprep.subr.bf16.mxu0 0
    %2322 = vmatpush2.bf16.msra.mxu0 0
    %2323 = vmatprep.subr.bf16.mxu0 0
    %2324 = vmatpush2.bf16.msra.mxu0 0
    %2325 = vmatprep.subr.bf16.mxu0 0
    %2326 = vmatpush2.bf16.msra.mxu0 0
    %2327 = vmatprep.subr.bf16.mxu0 0
    %2328 = vmatpush2.bf16.msra.mxu0 0
    %2329 = vmatprep.subr.bf16.mxu0 0
    %2330 = vmatpush2.bf16.msra.mxu0 0
    %2331 = vmatprep.subr.bf16.mxu0 0
    %2332 = vmatpush2.bf16.msra.mxu0 0
    %2333 = vmatprep.mubr.bf16.mxu0 0
    %2334 = vmatmul.mubr.bf16.gmra.mxu0 %v2299
    %v2335 = vpop.f32.mrf.mxu0
    %v2336 = vadd.f32 0.0, %v2335
    %v2337 = vpop.f32.mrf.mxu0
    %v2338 = vpop.f32.mrf.mxu0
    %v2339 = vpop.f32.mrf.mxu0
    %2340 = vdwg.mxu0
    %v2341 = vpack.c.bf16 %v2336, %v2336
    %s2342 = scalar_lea.vmem %s7, 192
    %v2343 = vld [vmem:[%s2342] sm:$0xf]
    %v2344 = vld [vmem:[%s2342 + $0x4] sm:$0xf]
    %v2345 = vld [vmem:[%s2342 + $0x8] sm:$0xf]
    %v2346 = vld [vmem:[%s2342 + $0xc] sm:$0xf]
    %v2347 = vld [vmem:[%s2342 + $0x10] sm:$0xf]
    %v2348 = vld [vmem:[%s2342 + $0x14] sm:$0xf]
    %v2349 = vld [vmem:[%s2342 + $0x18] sm:$0xf]
    %v2350 = vld [vmem:[%s2342 + $0x1c] sm:$0xf]
    %v2359 = vunpack.c.l.b16 %v2343
    %v2360 = vunpack.c.l.b16 %v2344
    %v2361 = vunpack.c.l.b16 %v2345
    %v2362 = vunpack.c.l.b16 %v2346
    %v2363 = vunpack.c.l.b16 %v2347
    %v2364 = vunpack.c.l.b16 %v2348
    %v2365 = vunpack.c.l.b16 %v2349
    %v2366 = vunpack.c.l.b16 %v2350
    %v2367 = vpack.c.b16 %v2360, %v2359
    %v2368 = vpack.c.b16 %v2362, %v2361
    %v2369 = vpack.c.b16 %v2364, %v2363
    %v2370 = vpack.c.b16 %v2366, %v2365
    %v2376 = vsel %vm1693, %v2341, 0
    %2378 = vmatprep.subr.bf16.mxu0 0
    %2379 = vmatpush1.bf16.msra.mxu0 0
    %2380 = vmatprep.subr.bf16.mxu0 0
    %2381 = vmatpush1.bf16.msra.mxu0 0
    %2382 = vmatprep.subr.bf16.mxu0 0
    %2383 = vmatpush1.bf16.msra.mxu0 0
    %2384 = vmatprep.subr.bf16.mxu0 0
    %2385 = vmatpush1.bf16.msra.mxu0 0
    %2386 = vmatprep.subr.bf16.mxu0 0
    %2387 = vmatpush1.bf16.msra.mxu0 %v2370
    %2388 = vmatprep.subr.bf16.mxu0 0
    %2389 = vmatpush1.bf16.msra.mxu0 %v2369
    %2390 = vmatprep.subr.bf16.mxu0 0
    %2391 = vmatpush1.bf16.msra.mxu0 %v2368
    %2392 = vmatprep.subr.bf16.mxu0 0
    %2393 = vmatpush1.bf16.msra.mxu0 %v2367
    %2394 = vmatprep.subr.bf16.mxu0 0
    %2395 = vmatpush2.bf16.msra.mxu0 0
    %2396 = vmatprep.subr.bf16.mxu0 0
    %2397 = vmatpush2.bf16.msra.mxu0 0
    %2398 = vmatprep.subr.bf16.mxu0 0
    %2399 = vmatpush2.bf16.msra.mxu0 0
    %2400 = vmatprep.subr.bf16.mxu0 0
    %2401 = vmatpush2.bf16.msra.mxu0 0
    %2402 = vmatprep.subr.bf16.mxu0 0
    %2403 = vmatpush2.bf16.msra.mxu0 0
    %2404 = vmatprep.subr.bf16.mxu0 0
    %2405 = vmatpush2.bf16.msra.mxu0 0
    %2406 = vmatprep.subr.bf16.mxu0 0
    %2407 = vmatpush2.bf16.msra.mxu0 0
    %2408 = vmatprep.subr.bf16.mxu0 0
    %2409 = vmatpush2.bf16.msra.mxu0 0
    %2410 = vmatprep.mubr.bf16.mxu0 0
    %2411 = vmatmul.mubr.bf16.gmra.mxu0 %v2376
    %v2412 = vpop.f32.mrf.mxu0
    %v2413 = vadd.f32 0.0, %v2412
    %v2414 = vpop.f32.mrf.mxu0
    %v2415 = vpop.f32.mrf.mxu0
    %v2416 = vpop.f32.mrf.mxu0
    %2417 = vdwg.mxu0
    %v2418 = vadd.f32 %v2295, %v2413
    %s2419 = scalar_lea.vmem %s6, 28
    %v2420 = vld [vmem:[%s2419] sm:$0xf]
    %v2422 = vsel %vm413, %v2420, 0
    %2424 = vmatprep.subr.bf16.mxu0 0
    %2425 = vmatpush1.bf16.msra.mxu0 0
    %2426 = vmatprep.subr.bf16.mxu0 0
    %2427 = vmatpush1.bf16.msra.mxu0 0
    %2428 = vmatprep.subr.bf16.mxu0 0
    %2429 = vmatpush1.bf16.msra.mxu0 0
    %2430 = vmatprep.subr.bf16.mxu0 0
    %2431 = vmatpush1.bf16.msra.mxu0 0
    %2432 = vmatprep.subr.bf16.mxu0 0
    %2433 = vmatpush1.bf16.msra.mxu0 0
    %2434 = vmatprep.subr.bf16.mxu0 0
    %2435 = vmatpush1.bf16.msra.mxu0 0
    %2436 = vmatprep.subr.bf16.mxu0 0
    %2437 = vmatpush1.bf16.msra.mxu0 %v1560
    %2438 = vmatprep.subr.bf16.mxu0 0
    %2439 = vmatpush1.bf16.msra.mxu0 %v1559
    %2440 = vmatprep.subr.bf16.mxu0 0
    %2441 = vmatpush2.bf16.msra.mxu0 0
    %2442 = vmatprep.subr.bf16.mxu0 0
    %2443 = vmatpush2.bf16.msra.mxu0 0
    %2444 = vmatprep.subr.bf16.mxu0 0
    %2445 = vmatpush2.bf16.msra.mxu0 0
    %2446 = vmatprep.subr.bf16.mxu0 0
    %2447 = vmatpush2.bf16.msra.mxu0 0
    %2448 = vmatprep.subr.bf16.mxu0 0
    %2449 = vmatpush2.bf16.msra.mxu0 0
    %2450 = vmatprep.subr.bf16.mxu0 0
    %2451 = vmatpush2.bf16.msra.mxu0 0
    %2452 = vmatprep.subr.bf16.mxu0 0
    %2453 = vmatpush2.bf16.msra.mxu0 0
    %2454 = vmatprep.subr.bf16.mxu0 0
    %2455 = vmatpush2.bf16.msra.mxu0 0
    %2456 = vmatprep.mubr.bf16.mxu0 0
    %2457 = vmatmul.mubr.bf16.gmra.mxu0 %v2422
    %v2458 = vpop.f32.mrf.mxu0
    %v2459 = vadd.f32 0.0, %v2458
    %v2460 = vpop.f32.mrf.mxu0
    %v2461 = vpop.f32.mrf.mxu0
    %v2462 = vpop.f32.mrf.mxu0
    %2463 = vdwg.mxu0
    %v2464 = vpack.c.bf16 %v2459, %v2459
    %s2465 = scalar_lea.vmem %s7, 224
    %v2466 = vld [vmem:[%s2465] sm:$0xf]
    %v2467 = vld [vmem:[%s2465 + $0x4] sm:$0xf]
    %v2468 = vld [vmem:[%s2465 + $0x8] sm:$0xf]
    %v2469 = vld [vmem:[%s2465 + $0xc] sm:$0xf]
    %v2470 = vld [vmem:[%s2465 + $0x10] sm:$0xf]
    %v2471 = vld [vmem:[%s2465 + $0x14] sm:$0xf]
    %v2472 = vld [vmem:[%s2465 + $0x18] sm:$0xf]
    %v2473 = vld [vmem:[%s2465 + $0x1c] sm:$0xf]
    %v2482 = vunpack.c.l.b16 %v2466
    %v2483 = vunpack.c.l.b16 %v2467
    %v2484 = vunpack.c.l.b16 %v2468
    %v2485 = vunpack.c.l.b16 %v2469
    %v2486 = vunpack.c.l.b16 %v2470
    %v2487 = vunpack.c.l.b16 %v2471
    %v2488 = vunpack.c.l.b16 %v2472
    %v2489 = vunpack.c.l.b16 %v2473
    %v2490 = vpack.c.b16 %v2483, %v2482
    %v2491 = vpack.c.b16 %v2485, %v2484
    %v2492 = vpack.c.b16 %v2487, %v2486
    %v2493 = vpack.c.b16 %v2489, %v2488
    %v2499 = vsel %vm1693, %v2464, 0
    %2501 = vmatprep.subr.bf16.mxu0 0
    %2502 = vmatpush1.bf16.msra.mxu0 0
    %2503 = vmatprep.subr.bf16.mxu0 0
    %2504 = vmatpush1.bf16.msra.mxu0 0
    %2505 = vmatprep.subr.bf16.mxu0 0
    %2506 = vmatpush1.bf16.msra.mxu0 0
    %2507 = vmatprep.subr.bf16.mxu0 0
    %2508 = vmatpush1.bf16.msra.mxu0 0
    %2509 = vmatprep.subr.bf16.mxu0 0
    %2510 = vmatpush1.bf16.msra.mxu0 %v2493
    %2511 = vmatprep.subr.bf16.mxu0 0
    %2512 = vmatpush1.bf16.msra.mxu0 %v2492
    %2513 = vmatprep.subr.bf16.mxu0 0
    %2514 = vmatpush1.bf16.msra.mxu0 %v2491
    %2515 = vmatprep.subr.bf16.mxu0 0
    %2516 = vmatpush1.bf16.msra.mxu0 %v2490
    %2517 = vmatprep.subr.bf16.mxu0 0
    %2518 = vmatpush2.bf16.msra.mxu0 0
    %2519 = vmatprep.subr.bf16.mxu0 0
    %2520 = vmatpush2.bf16.msra.mxu0 0
    %2521 = vmatprep.subr.bf16.mxu0 0
    %2522 = vmatpush2.bf16.msra.mxu0 0
    %2523 = vmatprep.subr.bf16.mxu0 0
    %2524 = vmatpush2.bf16.msra.mxu0 0
    %2525 = vmatprep.subr.bf16.mxu0 0
    %2526 = vmatpush2.bf16.msra.mxu0 0
    %2527 = vmatprep.subr.bf16.mxu0 0
    %2528 = vmatpush2.bf16.msra.mxu0 0
    %2529 = vmatprep.subr.bf16.mxu0 0
    %2530 = vmatpush2.bf16.msra.mxu0 0
    %2531 = vmatprep.subr.bf16.mxu0 0
    %2532 = vmatpush2.bf16.msra.mxu0 0
    %2533 = vmatprep.mubr.bf16.mxu0 0
    %2534 = vmatmul.mubr.bf16.gmra.mxu0 %v2499
    %v2535 = vpop.f32.mrf.mxu0
    %v2536 = vadd.f32 0.0, %v2535
    %v2537 = vpop.f32.mrf.mxu0
    %v2538 = vpop.f32.mrf.mxu0
    %v2539 = vpop.f32.mrf.mxu0
    %2540 = vdwg.mxu0
    %v2541 = vadd.f32 %v2418, %v2536
    %s2542 = scalar_lea.vmem %s6, 32
    %v2543 = vld [vmem:[%s2542] sm:$0xf]
    %v2545 = vsel %vm413, %v2543, 0
    %2547 = vmatprep.subr.bf16.mxu0 0
    %2548 = vmatpush1.bf16.msra.mxu0 0
    %2549 = vmatprep.subr.bf16.mxu0 0
    %2550 = vmatpush1.bf16.msra.mxu0 0
    %2551 = vmatprep.subr.bf16.mxu0 0
    %2552 = vmatpush1.bf16.msra.mxu0 0
    %2553 = vmatprep.subr.bf16.mxu0 0
    %2554 = vmatpush1.bf16.msra.mxu0 0
    %2555 = vmatprep.subr.bf16.mxu0 0
    %2556 = vmatpush1.bf16.msra.mxu0 0
    %2557 = vmatprep.subr.bf16.mxu0 0
    %2558 = vmatpush1.bf16.msra.mxu0 0
    %2559 = vmatprep.subr.bf16.mxu0 0
    %2560 = vmatpush1.bf16.msra.mxu0 %v1560
    %2561 = vmatprep.subr.bf16.mxu0 0
    %2562 = vmatpush1.bf16.msra.mxu0 %v1559
    %2563 = vmatprep.subr.bf16.mxu0 0
    %2564 = vmatpush2.bf16.msra.mxu0 0
    %2565 = vmatprep.subr.bf16.mxu0 0
    %2566 = vmatpush2.bf16.msra.mxu0 0
    %2567 = vmatprep.subr.bf16.mxu0 0
    %2568 = vmatpush2.bf16.msra.mxu0 0
    %2569 = vmatprep.subr.bf16.mxu0 0
    %2570 = vmatpush2.bf16.msra.mxu0 0
    %2571 = vmatprep.subr.bf16.mxu0 0
    %2572 = vmatpush2.bf16.msra.mxu0 0
    %2573 = vmatprep.subr.bf16.mxu0 0
    %2574 = vmatpush2.bf16.msra.mxu0 0
    %2575 = vmatprep.subr.bf16.mxu0 0
    %2576 = vmatpush2.bf16.msra.mxu0 0
    %2577 = vmatprep.subr.bf16.mxu0 0
    %2578 = vmatpush2.bf16.msra.mxu0 0
    %2579 = vmatprep.mubr.bf16.mxu0 0
    %2580 = vmatmul.mubr.bf16.gmra.mxu0 %v2545
    %v2581 = vpop.f32.mrf.mxu0
    %v2582 = vadd.f32 0.0, %v2581
    %v2583 = vpop.f32.mrf.mxu0
    %v2584 = vpop.f32.mrf.mxu0
    %v2585 = vpop.f32.mrf.mxu0
    %2586 = vdwg.mxu0
    %v2587 = vpack.c.bf16 %v2582, %v2582
    %s2588 = scalar_lea.vmem %s7, 256
    %v2589 = vld [vmem:[%s2588] sm:$0xf]
    %v2590 = vld [vmem:[%s2588 + $0x4] sm:$0xf]
    %v2591 = vld [vmem:[%s2588 + $0x8] sm:$0xf]
    %v2592 = vld [vmem:[%s2588 + $0xc] sm:$0xf]
    %v2593 = vld [vmem:[%s2588 + $0x10] sm:$0xf]
    %v2594 = vld [vmem:[%s2588 + $0x14] sm:$0xf]
    %v2595 = vld [vmem:[%s2588 + $0x18] sm:$0xf]
    %v2596 = vld [vmem:[%s2588 + $0x1c] sm:$0xf]
    %v2605 = vunpack.c.l.b16 %v2589
    %v2606 = vunpack.c.l.b16 %v2590
    %v2607 = vunpack.c.l.b16 %v2591
    %v2608 = vunpack.c.l.b16 %v2592
    %v2609 = vunpack.c.l.b16 %v2593
    %v2610 = vunpack.c.l.b16 %v2594
    %v2611 = vunpack.c.l.b16 %v2595
    %v2612 = vunpack.c.l.b16 %v2596
    %v2613 = vpack.c.b16 %v2606, %v2605
    %v2614 = vpack.c.b16 %v2608, %v2607
    %v2615 = vpack.c.b16 %v2610, %v2609
    %v2616 = vpack.c.b16 %v2612, %v2611
    %v2622 = vsel %vm1693, %v2587, 0
    %2624 = vmatprep.subr.bf16.mxu0 0
    %2625 = vmatpush1.bf16.msra.mxu0 0
    %2626 = vmatprep.subr.bf16.mxu0 0
    %2627 = vmatpush1.bf16.msra.mxu0 0
    %2628 = vmatprep.subr.bf16.mxu0 0
    %2629 = vmatpush1.bf16.msra.mxu0 0
    %2630 = vmatprep.subr.bf16.mxu0 0
    %2631 = vmatpush1.bf16.msra.mxu0 0
    %2632 = vmatprep.subr.bf16.mxu0 0
    %2633 = vmatpush1.bf16.msra.mxu0 %v2616
    %2634 = vmatprep.subr.bf16.mxu0 0
    %2635 = vmatpush1.bf16.msra.mxu0 %v2615
    %2636 = vmatprep.subr.bf16.mxu0 0
    %2637 = vmatpush1.bf16.msra.mxu0 %v2614
    %2638 = vmatprep.subr.bf16.mxu0 0
    %2639 = vmatpush1.bf16.msra.mxu0 %v2613
    %2640 = vmatprep.subr.bf16.mxu0 0
    %2641 = vmatpush2.bf16.msra.mxu0 0
    %2642 = vmatprep.subr.bf16.mxu0 0
    %2643 = vmatpush2.bf16.msra.mxu0 0
    %2644 = vmatprep.subr.bf16.mxu0 0
    %2645 = vmatpush2.bf16.msra.mxu0 0
    %2646 = vmatprep.subr.bf16.mxu0 0
    %2647 = vmatpush2.bf16.msra.mxu0 0
    %2648 = vmatprep.subr.bf16.mxu0 0
    %2649 = vmatpush2.bf16.msra.mxu0 0
    %2650 = vmatprep.subr.bf16.mxu0 0
    %2651 = vmatpush2.bf16.msra.mxu0 0
    %2652 = vmatprep.subr.bf16.mxu0 0
    %2653 = vmatpush2.bf16.msra.mxu0 0
    %2654 = vmatprep.subr.bf16.mxu0 0
    %2655 = vmatpush2.bf16.msra.mxu0 0
    %2656 = vmatprep.mubr.bf16.mxu0 0
    %2657 = vmatmul.mubr.bf16.gmra.mxu0 %v2622
    %v2658 = vpop.f32.mrf.mxu0
    %v2659 = vadd.f32 0.0, %v2658
    %v2660 = vpop.f32.mrf.mxu0
    %v2661 = vpop.f32.mrf.mxu0
    %v2662 = vpop.f32.mrf.mxu0
    %2663 = vdwg.mxu0
    %v2664 = vadd.f32 %v2541, %v2659
    %v2665 = vld [vmem:[%s8] sm:$0x1]
    %v2667 = vlaneseq
    %v2668 = vshrl.u32 %v2667, 7
    %v2669 = vsub.s32 0, %v2668
    %v2670 = vrot.slane %v2665, %v2669
    %v2672 = vadd.f32 %v2664, %v2670
    %v2673 = vmax.f32 %v2672, 0.0
    %v2674 = vpack.c.bf16 %v2673, %v2673
    %v2675 = vld [vmem:[%s9] sm:$0xf]
    %v2676 = vld [vmem:[%s9 + $0x4] sm:$0xf]
    %v2677 = vld [vmem:[%s9 + $0x8] sm:$0xf]
    %v2678 = vld [vmem:[%s9 + $0xc] sm:$0xf]
    %v2679 = vld [vmem:[%s9 + $0x10] sm:$0xf]
    %v2680 = vld [vmem:[%s9 + $0x14] sm:$0xf]
    %v2681 = vld [vmem:[%s9 + $0x18] sm:$0xf]
    %v2682 = vld [vmem:[%s9 + $0x1c] sm:$0xf]
    %v2683 = vld [vmem:[%s9 + $0x20] sm:$0xf]
    %v2684 = vld [vmem:[%s9 + $0x24] sm:$0xf]
    %v2685 = vld [vmem:[%s9 + $0x28] sm:$0xf]
    %v2686 = vld [vmem:[%s9 + $0x2c] sm:$0xf]
    %v2687 = vld [vmem:[%s9 + $0x30] sm:$0xf]
    %v2688 = vld [vmem:[%s9 + $0x34] sm:$0xf]
    %v2689 = vld [vmem:[%s9 + $0x38] sm:$0xf]
    %v2690 = vld [vmem:[%s9 + $0x3c] sm:$0xf]
    %v2691 = vld [vmem:[%s10] sm:$0x1]
    %v2693 = vlaneseq
    %v2694 = vshrl.u32 %v2693, 7
    %v2695 = vsub.s32 0, %v2694
    %v2696 = vrot.slane %v2691, %v2695
    %v2714 = vunpack.c.l.b16 %v2675
    %v2715 = vunpack.c.l.b16 %v2676
    %v2716 = vunpack.c.l.b16 %v2677
    %v2717 = vunpack.c.l.b16 %v2678
    %v2718 = vunpack.c.l.b16 %v2679
    %v2719 = vunpack.c.l.b16 %v2680
    %v2720 = vunpack.c.l.b16 %v2681
    %v2721 = vunpack.c.l.b16 %v2682
    %v2722 = vunpack.c.l.b16 %v2683
    %v2723 = vunpack.c.l.b16 %v2684
    %v2724 = vunpack.c.l.b16 %v2685
    %v2725 = vunpack.c.l.b16 %v2686
    %v2726 = vunpack.c.l.b16 %v2687
    %v2727 = vunpack.c.l.b16 %v2688
    %v2728 = vunpack.c.l.b16 %v2689
    %v2729 = vunpack.c.l.b16 %v2690
    %v2730 = vpack.c.b16 %v2715, %v2714
    %v2731 = vpack.c.b16 %v2717, %v2716
    %v2732 = vpack.c.b16 %v2719, %v2718
    %v2733 = vpack.c.b16 %v2721, %v2720
    %v2734 = vpack.c.b16 %v2723, %v2722
    %v2735 = vpack.c.b16 %v2725, %v2724
    %v2736 = vpack.c.b16 %v2727, %v2726
    %v2737 = vpack.c.b16 %v2729, %v2728
    %2746 = vmatprep.subr.bf16.mxu0 0
    %2747 = vmatpush1.bf16.msra.mxu0 %v2737
    %2748 = vmatprep.subr.bf16.mxu0 0
    %2749 = vmatpush1.bf16.msra.mxu0 %v2736
    %2750 = vmatprep.subr.bf16.mxu0 0
    %2751 = vmatpush1.bf16.msra.mxu0 %v2735
    %2752 = vmatprep.subr.bf16.mxu0 0
    %2753 = vmatpush1.bf16.msra.mxu0 %v2734
    %2754 = vmatprep.subr.bf16.mxu0 0
    %2755 = vmatpush1.bf16.msra.mxu0 %v2733
    %2756 = vmatprep.subr.bf16.mxu0 0
    %2757 = vmatpush1.bf16.msra.mxu0 %v2732
    %2758 = vmatprep.subr.bf16.mxu0 0
    %2759 = vmatpush1.bf16.msra.mxu0 %v2731
    %2760 = vmatprep.subr.bf16.mxu0 0
    %2761 = vmatpush1.bf16.msra.mxu0 %v2730
    %2762 = vmatprep.subr.bf16.mxu0 0
    %2763 = vmatpush2.bf16.msra.mxu0 0
    %2764 = vmatprep.subr.bf16.mxu0 0
    %2765 = vmatpush2.bf16.msra.mxu0 0
    %2766 = vmatprep.subr.bf16.mxu0 0
    %2767 = vmatpush2.bf16.msra.mxu0 0
    %2768 = vmatprep.subr.bf16.mxu0 0
    %2769 = vmatpush2.bf16.msra.mxu0 0
    %2770 = vmatprep.subr.bf16.mxu0 0
    %2771 = vmatpush2.bf16.msra.mxu0 0
    %2772 = vmatprep.subr.bf16.mxu0 0
    %2773 = vmatpush2.bf16.msra.mxu0 0
    %2774 = vmatprep.subr.bf16.mxu0 0
    %2775 = vmatpush2.bf16.msra.mxu0 0
    %2776 = vmatprep.subr.bf16.mxu0 0
    %2777 = vmatpush2.bf16.msra.mxu0 0
    %2778 = vmatprep.mubr.bf16.mxu0 0
    %2779 = vmatmul.mubr.bf16.gmra.mxu0 %v2674
    %v2780 = vpop.f32.mrf.mxu0
    %v2781 = vadd.f32 %v2696, %v2780
    %v2782 = vpop.f32.mrf.mxu0
    %v2783 = vpop.f32.mrf.mxu0
    %v2784 = vpop.f32.mrf.mxu0
    %2785 = vdwg.mxu0
    %2786 = vst.msk [vmem:[#allocation2] sm:$0xff] %vm413, %v2781
    // Predicated region
    $region46: #{encoder_forward.1} parent=1 // pred_check
      _
    $region47: #{encoder_forward.1} parent=1 // pred_check_branch
      %2788 = sbr.rel (0) target = $region49
    $region48: #{encoder_forward.1} parent=1 // pred_region
      %s2790 = ssub.s32 128, 128
      %2791 = vsyncadd [#allocation3], %s2790
      %s2793 = sshll.u32 [#allocation2], 4
      %s2794 = int_to_ptr.vmem [resolvable:$true] %s2793
      %2796 = dma.vmem_to_hbm [thread:$0]  %s2794, 128, %s11, [#allocation3]
    $region49: #{encoder_forward.1} parent=1 // pred_fallthru
      _
    // Predicated region
    $region50: #{encoder_forward.1} parent=1 // pred_check
      _
    $region51: #{encoder_forward.1} parent=1 // pred_check_branch
      %2798 = sbr.rel (0) target = $region53
    $region52: #{encoder_forward.1} parent=1 // pred_region
      %2799 = dma.done [#allocation3], 128
    $region53: #{encoder_forward.1} parent=1 // pred_fallthru
      _
    %2800 = vsyncpa [#allocation3], 1

</llo_original>
